<compile_context>
chip_gen: v7x
topology: tpu7x:2x2x1
jax: 0.10.0
libtpu: 0.0.40
codegen_flags: <defaults>
</compile_context>

<pallas_src>
import functools
import math

import jax
import jax.numpy as jnp
from jax.experimental import pallas as pl
from jax.experimental.pallas import tpu as pltpu


def _round_up(x, m):
    return ((x + m - 1) // m) * m


# ----------------------------------------------------------------------------
# Pallas kernel: one (Cout, KK*Cin) x (KK*Cin, tm) MXU contraction per grid
# step, f32 accumulate, bias add + optional LeakyReLU, lane-dense store.
# ----------------------------------------------------------------------------
def _conv_mm_kernel(w_ref, p_ref, b_ref, o_ref, *, apply_act, slope):
    acc = jnp.dot(w_ref[...], p_ref[...], preferred_element_type=jnp.float32)
    acc = acc + b_ref[...]                              # (Cout, tm) + (Cout, 1)
    if apply_act:
        acc = jnp.where(acc >= 0, acc, slope * acc)     # LeakyReLU
    o_ref[...] = acc.astype(o_ref.dtype)


def _pallas_conv_matmul(wmat, patches_t, bias, act_slope, tm=512):
    """wmat: (Cout, KKC) bf16, patches_t: (KKC, M) bf16, bias: (Cout,) -> (Cout, M) f32."""
    Cout, KKC = wmat.shape
    M = patches_t.shape[1]
    tm_eff = min(tm, _round_up(M, 128))
    Mp = _round_up(M, tm_eff)
    if Mp != M:
        patches_t = jnp.pad(patches_t, ((0, 0), (0, Mp - M)))
    bias2d = bias.reshape(Cout, 1).astype(jnp.float32)

    apply_act = act_slope is not None
    kernel = functools.partial(_conv_mm_kernel, apply_act=apply_act,
                               slope=float(act_slope) if apply_act else 0.0)

    out = pl.pallas_call(
        kernel,
        out_shape=jax.ShapeDtypeStruct((Cout, Mp), jnp.float32),
        grid_spec=pltpu.PrefetchScalarGridSpec(
            num_scalar_prefetch=0,
            grid=(Mp // tm_eff,),
            in_specs=[
                # whole weight matrix, constant index_map -> stays VMEM-resident
                pl.BlockSpec((Cout, KKC), lambda i: (0, 0)),
                # lane-dense patch tile (tm on lanes)
                pl.BlockSpec((KKC, tm_eff), lambda i: (0, i)),
                # bias column
                pl.BlockSpec((Cout, 1), lambda i: (0, 0)),
            ],
            out_specs=pl.BlockSpec((Cout, tm_eff), lambda i: (0, i)),
        ),
        compiler_params=pltpu.CompilerParams(
            dimension_semantics=("parallel",)),
    )(wmat, patches_t, bias2d)
    return out[:, :M]


# ----------------------------------------------------------------------------
# conv3d wrapper (stride 1, "same" zero padding), NCDHW in / NCDHW out.
# ----------------------------------------------------------------------------
def conv3d(x, w, b, *, act_slope=None, tm=512):
    N, Cin, D, H, W = x.shape
    Cout, _, Kd, Kh, Kw = w.shape
    pd, ph, pw = (Kd - 1) // 2, (Kh - 1) // 2, (Kw - 1) // 2
    xp = jnp.pad(x, ((0, 0), (0, 0), (pd, pd), (ph, ph), (pw, pw)))
    xp = xp.astype(jnp.bfloat16)                         # halve patch HBM traffic
    M = N * D * H * W

    # Build the transposed patch matrix (KK*Cin, M): rows are (tap-major,
    # channel-minor), columns are flattened (N, D, H, W) positions.  Channel-
    # first slices need NO transposes (moveaxis over N=1 is free).
    # TODO(synk): a windowed BlockSpec / in-kernel halo DMA would avoid
    # materializing this KKx-sized matrix in HBM entirely.
    rows = []
    for kd in range(Kd):
        for kh in range(Kh):
            for kw in range(Kw):
                s = xp[:, :, kd:kd + D, kh:kh + H, kw:kw + W]   # (N,Cin,D,H,W)
                rows.append(jnp.moveaxis(s, 1, 0).reshape(Cin, M))
    patches_t = jnp.concatenate(rows, axis=0)                    # (KK*Cin, M)

    # weights -> (Cout, KK*Cin) with matching (tap, channel) ordering
    wmat = jnp.transpose(w, (0, 2, 3, 4, 1)).reshape(Cout, Kd * Kh * Kw * Cin)
    wmat = wmat.astype(jnp.bfloat16)

    out = _pallas_conv_matmul(wmat, patches_t, b, act_slope, tm)  # (Cout, M)
    out = out.reshape(Cout, N, D, H, W).transpose(1, 0, 2, 3, 4)  # NCDHW
    return out


def nearest_up2(x):
    # nearest-neighbor x2 upsample in D, H, W (NCDHW)
    x = jnp.repeat(x, 2, axis=2)
    x = jnp.repeat(x, 2, axis=3)
    x = jnp.repeat(x, 2, axis=4)
    return x


# ----------------------------------------------------------------------------
# Deterministic parameter construction (shapes follow Generator_3D.__init__).
# Params contain ONLY arrays (kernel size is derived from weight shape, so the
# pytree is jit-safe).
# ----------------------------------------------------------------------------
class _ParamGen:
    def __init__(self, key):
        self.key = key

    def conv(self, cin, cout, k):
        self.key, k1, k2 = jax.random.split(self.key, 3)
        fan_in = cin * k * k * k
        w = jax.random.normal(k1, (cout, cin, k, k, k), jnp.float32) * (0.1 / math.sqrt(fan_in))
        b = jax.random.normal(k2, (cout,), jnp.float32) * 0.01
        return {"w": w, "b": b}


def init_generator_params(key, *, in_channels, out_channels, nf, n_rrdb,
                          n_rdb_convs, gc, lff_k, hr_k, tnf, n_up):
    pg = _ParamGen(key)
    P = {}
    P["feature"] = pg.conv(in_channels, nf, 3)
    P["rrdbs"] = []
    for _ in range(n_rrdb):
        rdbs = []
        for _ in range(3):  # 3 RDBs per RRDB (standard ESRGAN)
            convs = [pg.conv(nf + i * gc, gc, 3) for i in range(n_rdb_convs - 1)]
            lff = pg.conv(nf + (n_rdb_convs - 1) * gc, nf, lff_k)
            rdbs.append({"convs": convs, "lff": lff})
        P["rrdbs"].append(rdbs)
    P["lr_conv"] = pg.conv(nf, nf, 3)
    P["up"] = [pg.conv(nf, nf, 3) for _ in range(n_up)]
    P["terrain"] = [pg.conv(1, tnf, 3), pg.conv(tnf, tnf, 3)]
    P["hr"] = [pg.conv(nf + tnf, nf + tnf, hr_k), pg.conv(nf + tnf, out_channels, hr_k)]
    return P


# ----------------------------------------------------------------------------
# Forward pass (mirrors Generator_3D.forward for conv_mode='3D').
# ----------------------------------------------------------------------------
def generator_forward(P, x, Z, *, slope=0.2, rdb_scale=0.2, rrdb_scale=0.2):
    def conv(p, h, act):
        return conv3d(h, p["w"], p["b"], act_slope=(slope if act else None))

    # feature_conv (no activation)
    h = conv(P["feature"], x, act=False)

    # SkipConnectionBlock( Sequential(*RRDBs, lr_conv) )
    trunk = h
    for rdbs in P["rrdbs"]:
        rrdb_in = trunk
        t = trunk
        for rdb in rdbs:
            rdb_in = t
            feat = t
            for c in rdb["convs"]:
                o = conv(c, feat, act=True)
                # TODO(synk): dense concat could write into a preallocated
                # buffer slice (input_output_aliases) to avoid re-copying.
                feat = jnp.concatenate([feat, o], axis=1)
            fused = conv(rdb["lff"], feat, act=False)
            t = rdb_in + rdb_scale * fused
        trunk = rrdb_in + rrdb_scale * t
    trunk = conv(P["lr_conv"], trunk, act=False)
    h = h + trunk

    # upsampling blocks: nearest x2 -> conv -> LReLU
    for up in P["up"]:
        h = nearest_up2(h)
        h = conv(up, h, act=True)

    # terrain branch: conv+LReLU, conv
    z = conv(P["terrain"][0], Z, act=True)
    z = conv(P["terrain"][1], z, act=False)

    # concatenate along channel dim and run HR convs
    h = jnp.concatenate([h, z], axis=1)
    h = conv(P["hr"][0], h, act=True)
    # Dropout3d(p=0.0) is the identity.
    h = conv(P["hr"][1], h, act=False)
    return h


if __name__ == "__main__":
    # small, shape-consistent configuration
    in_channels, out_channels = 3, 3
    nf, gc, tnf = 8, 8, 4
    n_rrdb, n_rdb_convs, lff_k, hr_k = 1, 3, 1, 3
    upscale = 4
    n_up = int(math.floor(math.log2(upscale)))   # 2

    N, D, H, W = 1, 4, 8, 8                      # LR wind field
    Dh, Hh, Wh = D * upscale, H * upscale, W * upscale

    key = jax.random.PRNGKey(0)
    kx, kz, kp = jax.random.split(key, 3)
    x = jax.random.normal(kx, (N, in_channels, D, H, W), jnp.float32)
    Z = jax.random.normal(kz, (N, 1, Dh, Hh, Wh), jnp.float32)

    params = init_generator_params(
        kp, in_channels=in_channels, out_channels=out_channels, nf=nf,
        n_rrdb=n_rrdb, n_rdb_convs=n_rdb_convs, gc=gc, lff_k=lff_k,
        hr_k=hr_k, tnf=tnf, n_up=n_up)

    fwd = jax.jit(functools.partial(generator_forward, slope=0.2,
                                    rdb_scale=0.2, rrdb_scale=0.2))
    out = fwd(params, x, Z)
    out = jax.block_until_ready(out)

    assert out.shape == (N, out_channels, Dh, Hh, Wh), out.shape
    assert jnp.all(jnp.isfinite(out))
    print("KERNEL_OK")
</pallas_src>

<mosaic_0001>
module attributes {stable_mosaic.version = 11 : i64} {
  func.func @_conv_mm_kernel(%arg0: i32, %arg1: memref<8x81xbf16, #tpu.memory_space<vmem>>, %arg2: memref<81x256xbf16, #tpu.memory_space<vmem>>, %arg3: memref<8x1xf32, #tpu.memory_space<vmem>>, %arg4: memref<8x256xf32, #tpu.memory_space<vmem>>) attributes {dimension_semantics = [#tpu.dimension_semantics<parallel>], iteration_bounds = array<i64: 1>, scalar_prefetch = 0 : i64, scratch_operands = 0 : i64, tpu.core_type = #tpu.core_type<tc>, window_params = [{pipeline_mode = #tpu.pipeline_mode<synchronous>, transform_indices = @transform_0, window_bounds = array<i64: 8, 81>}, {transform_indices = @transform_1, window_bounds = array<i64: 81, 256>}, {pipeline_mode = #tpu.pipeline_mode<synchronous>, transform_indices = @transform_2, window_bounds = array<i64: 8, 1>}, {transform_indices = @transform_3, window_bounds = array<i64: 8, 256>}]} {
    %c0 = arith.constant 0 : index
    %c0_0 = arith.constant 0 : index
    %0 = vector.load %arg1[%c0, %c0_0] : memref<8x81xbf16, #tpu.memory_space<vmem>>, vector<8x81xbf16>
    %c0_1 = arith.constant 0 : index
    %c0_2 = arith.constant 0 : index
    %1 = vector.load %arg2[%c0_1, %c0_2] : memref<81x256xbf16, #tpu.memory_space<vmem>>, vector<81x256xbf16>
    %cst = arith.constant dense<0.000000e+00> : vector<8x256xf32>
    %2 = tpu.matmul %0, %1, %cst {dimension_numbers = #tpu.dot_dimension_numbers<[1], [0], [0], [1], [0, 0, 1, 1], [], []>} : vector<8x81xbf16>, vector<81x256xbf16>, vector<8x256xf32> -> vector<8x256xf32>
    %c0_3 = arith.constant 0 : index
    %c0_4 = arith.constant 0 : index
    %3 = vector.load %arg3[%c0_3, %c0_4] : memref<8x1xf32, #tpu.memory_space<vmem>>, vector<8x1xf32>
    %4 = vector.broadcast %3 : vector<8x1xf32> to vector<8x256xf32>
    %5 = arith.addf %2, %4 : vector<8x256xf32>
    %c0_5 = arith.constant 0 : index
    %c0_6 = arith.constant 0 : index
    %6 = vector.load %arg4[%c0_5, %c0_6] : memref<8x256xf32, #tpu.memory_space<vmem>>, vector<8x256xf32>
    tpu.vector_store %arg4[%c0_5, %c0_6], %5 {strides = array<i32>} : memref<8x256xf32, #tpu.memory_space<vmem>>, vector<8x256xf32>,
    return
  }
  func.func @transform_0(%arg0: i32) -> (i32, i32) {
    %c0_i32 = arith.constant 0 : i32
    %c0_i32_0 = arith.constant 0 : i32
    %c0_i32_1 = arith.constant 0 : i32
    return %c0_i32, %c0_i32_0 : i32, i32
  }
  func.func @transform_1(%arg0: i32) -> (i32, i32) {
    %c0_i32 = arith.constant 0 : i32
    %c0_i32_0 = arith.constant 0 : i32
    return %c0_i32, %arg0 : i32, i32
  }
  func.func @transform_2(%arg0: i32) -> (i32, i32) {
    %c0_i32 = arith.constant 0 : i32
    %c0_i32_0 = arith.constant 0 : i32
    %c0_i32_1 = arith.constant 0 : i32
    return %c0_i32, %c0_i32_0 : i32, i32
  }
  func.func @transform_3(%arg0: i32) -> (i32, i32) {
    %c0_i32 = arith.constant 0 : i32
    %c0_i32_0 = arith.constant 0 : i32
    return %c0_i32, %arg0 : i32, i32
  }
}

module attributes {stable_mosaic.version = 11 : i64} {
  func.func @_conv_mm_kernel(%arg0: i32, %arg1: memref<8x216xbf16, #tpu.memory_space<vmem>>, %arg2: memref<216x256xbf16, #tpu.memory_space<vmem>>, %arg3: memref<8x1xf32, #tpu.memory_space<vmem>>, %arg4: memref<8x256xf32, #tpu.memory_space<vmem>>) attributes {dimension_semantics = [#tpu.dimension_semantics<parallel>], iteration_bounds = array<i64: 1>, scalar_prefetch = 0 : i64, scratch_operands = 0 : i64, tpu.core_type = #tpu.core_type<tc>, window_params = [{pipeline_mode = #tpu.pipeline_mode<synchronous>, transform_indices = @transform_0, window_bounds = array<i64: 8, 216>}, {transform_indices = @transform_1, window_bounds = array<i64: 216, 256>}, {pipeline_mode = #tpu.pipeline_mode<synchronous>, transform_indices = @transform_2, window_bounds = array<i64: 8, 1>}, {transform_indices = @transform_3, window_bounds = array<i64: 8, 256>}]} {
    %c0 = arith.constant 0 : index
    %c0_0 = arith.constant 0 : index
    %0 = vector.load %arg1[%c0, %c0_0] : memref<8x216xbf16, #tpu.memory_space<vmem>>, vector<8x216xbf16>
    %c0_1 = arith.constant 0 : index
    %c0_2 = arith.constant 0 : index
    %1 = vector.load %arg2[%c0_1, %c0_2] : memref<216x256xbf16, #tpu.memory_space<vmem>>, vector<216x256xbf16>
    %cst = arith.constant dense<0.000000e+00> : vector<8x256xf32>
    %2 = tpu.matmul %0, %1, %cst {dimension_numbers = #tpu.dot_dimension_numbers<[1], [0], [0], [1], [0, 0, 1, 1], [], []>} : vector<8x216xbf16>, vector<216x256xbf16>, vector<8x256xf32> -> vector<8x256xf32>
    %c0_3 = arith.constant 0 : index
    %c0_4 = arith.constant 0 : index
    %3 = vector.load %arg3[%c0_3, %c0_4] : memref<8x1xf32, #tpu.memory_space<vmem>>, vector<8x1xf32>
    %4 = vector.broadcast %3 : vector<8x1xf32> to vector<8x256xf32>
    %5 = arith.addf %2, %4 : vector<8x256xf32>
    %cst_5 = arith.constant 0.000000e+00 : f32
    %6 = vector.broadcast %cst_5 : f32 to vector<8x256xf32>
    %7 = arith.cmpf oge, %5, %6 : vector<8x256xf32>
    %cst_6 = arith.constant 2.000000e-01 : f32
    %8 = vector.broadcast %cst_6 : f32 to vector<8x256xf32>
    %9 = arith.mulf %8, %5 : vector<8x256xf32>
    %10 = arith.select %7, %5, %9 : vector<8x256xi1>, vector<8x256xf32>
    %c0_7 = arith.constant 0 : index
    %c0_8 = arith.constant 0 : index
    %11 = vector.load %arg4[%c0_7, %c0_8] : memref<8x256xf32, #tpu.memory_space<vmem>>, vector<8x256xf32>
    tpu.vector_store %arg4[%c0_7, %c0_8], %10 {strides = array<i32>} : memref<8x256xf32, #tpu.memory_space<vmem>>, vector<8x256xf32>,
    return
  }
  func.func @transform_0(%arg0: i32) -> (i32, i32) {
    %c0_i32 = arith.constant 0 : i32
    %c0_i32_0 = arith.constant 0 : i32
    %c0_i32_1 = arith.constant 0 : i32
    return %c0_i32, %c0_i32_0 : i32, i32
  }
  func.func @transform_1(%arg0: i32) -> (i32, i32) {
    %c0_i32 = arith.constant 0 : i32
    %c0_i32_0 = arith.constant 0 : i32
    return %c0_i32, %arg0 : i32, i32
  }
  func.func @transform_2(%arg0: i32) -> (i32, i32) {
    %c0_i32 = arith.constant 0 : i32
    %c0_i32_0 = arith.constant 0 : i32
    %c0_i32_1 = arith.constant 0 : i32
    return %c0_i32, %c0_i32_0 : i32, i32
  }
  func.func @transform_3(%arg0: i32) -> (i32, i32) {
    %c0_i32 = arith.constant 0 : i32
    %c0_i32_0 = arith.constant 0 : i32
    return %c0_i32, %arg0 : i32, i32
  }
}

module attributes {stable_mosaic.version = 11 : i64} {
  func.func @_conv_mm_kernel(%arg0: i32, %arg1: memref<8x24xbf16, #tpu.memory_space<vmem>>, %arg2: memref<24x256xbf16, #tpu.memory_space<vmem>>, %arg3: memref<8x1xf32, #tpu.memory_space<vmem>>, %arg4: memref<8x256xf32, #tpu.memory_space<vmem>>) attributes {dimension_semantics = [#tpu.dimension_semantics<parallel>], iteration_bounds = array<i64: 1>, scalar_prefetch = 0 : i64, scratch_operands = 0 : i64, tpu.core_type = #tpu.core_type<tc>, window_params = [{pipeline_mode = #tpu.pipeline_mode<synchronous>, transform_indices = @transform_0, window_bounds = array<i64: 8, 24>}, {transform_indices = @transform_1, window_bounds = array<i64: 24, 256>}, {pipeline_mode = #tpu.pipeline_mode<synchronous>, transform_indices = @transform_2, window_bounds = array<i64: 8, 1>}, {transform_indices = @transform_3, window_bounds = array<i64: 8, 256>}]} {
    %c0 = arith.constant 0 : index
    %c0_0 = arith.constant 0 : index
    %0 = vector.load %arg1[%c0, %c0_0] : memref<8x24xbf16, #tpu.memory_space<vmem>>, vector<8x24xbf16>
    %c0_1 = arith.constant 0 : index
    %c0_2 = arith.constant 0 : index
    %1 = vector.load %arg2[%c0_1, %c0_2] : memref<24x256xbf16, #tpu.memory_space<vmem>>, vector<24x256xbf16>
    %cst = arith.constant dense<0.000000e+00> : vector<8x256xf32>
    %2 = tpu.matmul %0, %1, %cst {dimension_numbers = #tpu.dot_dimension_numbers<[1], [0], [0], [1], [0, 0, 1, 1], [], []>} : vector<8x24xbf16>, vector<24x256xbf16>, vector<8x256xf32> -> vector<8x256xf32>
    %c0_3 = arith.constant 0 : index
    %c0_4 = arith.constant 0 : index
    %3 = vector.load %arg3[%c0_3, %c0_4] : memref<8x1xf32, #tpu.memory_space<vmem>>, vector<8x1xf32>
    %4 = vector.broadcast %3 : vector<8x1xf32> to vector<8x256xf32>
    %5 = arith.addf %2, %4 : vector<8x256xf32>
    %c0_5 = arith.constant 0 : index
    %c0_6 = arith.constant 0 : index
    %6 = vector.load %arg4[%c0_5, %c0_6] : memref<8x256xf32, #tpu.memory_space<vmem>>, vector<8x256xf32>
    tpu.vector_store %arg4[%c0_5, %c0_6], %5 {strides = array<i32>} : memref<8x256xf32, #tpu.memory_space<vmem>>, vector<8x256xf32>,
    return
  }
  func.func @transform_0(%arg0: i32) -> (i32, i32) {
    %c0_i32 = arith.constant 0 : i32
    %c0_i32_0 = arith.constant 0 : i32
    %c0_i32_1 = arith.constant 0 : i32
    return %c0_i32, %c0_i32_0 : i32, i32
  }
  func.func @transform_1(%arg0: i32) -> (i32, i32) {
    %c0_i32 = arith.constant 0 : i32
    %c0_i32_0 = arith.constant 0 : i32
    return %c0_i32, %arg0 : i32, i32
  }
  func.func @transform_2(%arg0: i32) -> (i32, i32) {
    %c0_i32 = arith.constant 0 : i32
    %c0_i32_0 = arith.constant 0 : i32
    %c0_i32_1 = arith.constant 0 : i32
    return %c0_i32, %c0_i32_0 : i32, i32
  }
  func.func @transform_3(%arg0: i32) -> (i32, i32) {
    %c0_i32 = arith.constant 0 : i32
    %c0_i32_0 = arith.constant 0 : i32
    return %c0_i32, %arg0 : i32, i32
  }
}

module attributes {stable_mosaic.version = 11 : i64} {
  func.func @_conv_mm_kernel(%arg0: i32, %arg1: memref<8x432xbf16, #tpu.memory_space<vmem>>, %arg2: memref<432x256xbf16, #tpu.memory_space<vmem>>, %arg3: memref<8x1xf32, #tpu.memory_space<vmem>>, %arg4: memref<8x256xf32, #tpu.memory_space<vmem>>) attributes {dimension_semantics = [#tpu.dimension_semantics<parallel>], iteration_bounds = array<i64: 1>, scalar_prefetch = 0 : i64, scratch_operands = 0 : i64, tpu.core_type = #tpu.core_type<tc>, window_params = [{pipeline_mode = #tpu.pipeline_mode<synchronous>, transform_indices = @transform_0, window_bounds = array<i64: 8, 432>}, {transform_indices = @transform_1, window_bounds = array<i64: 432, 256>}, {pipeline_mode = #tpu.pipeline_mode<synchronous>, transform_indices = @transform_2, window_bounds = array<i64: 8, 1>}, {transform_indices = @transform_3, window_bounds = array<i64: 8, 256>}]} {
    %c0 = arith.constant 0 : index
    %c0_0 = arith.constant 0 : index
    %0 = vector.load %arg1[%c0, %c0_0] : memref<8x432xbf16, #tpu.memory_space<vmem>>, vector<8x432xbf16>
    %c0_1 = arith.constant 0 : index
    %c0_2 = arith.constant 0 : index
    %1 = vector.load %arg2[%c0_1, %c0_2] : memref<432x256xbf16, #tpu.memory_space<vmem>>, vector<432x256xbf16>
    %cst = arith.constant dense<0.000000e+00> : vector<8x256xf32>
    %2 = tpu.matmul %0, %1, %cst {dimension_numbers = #tpu.dot_dimension_numbers<[1], [0], [0], [1], [0, 0, 1, 1], [], []>} : vector<8x432xbf16>, vector<432x256xbf16>, vector<8x256xf32> -> vector<8x256xf32>
    %c0_3 = arith.constant 0 : index
    %c0_4 = arith.constant 0 : index
    %3 = vector.load %arg3[%c0_3, %c0_4] : memref<8x1xf32, #tpu.memory_space<vmem>>, vector<8x1xf32>
    %4 = vector.broadcast %3 : vector<8x1xf32> to vector<8x256xf32>
    %5 = arith.addf %2, %4 : vector<8x256xf32>
    %cst_5 = arith.constant 0.000000e+00 : f32
    %6 = vector.broadcast %cst_5 : f32 to vector<8x256xf32>
    %7 = arith.cmpf oge, %5, %6 : vector<8x256xf32>
    %cst_6 = arith.constant 2.000000e-01 : f32
    %8 = vector.broadcast %cst_6 : f32 to vector<8x256xf32>
    %9 = arith.mulf %8, %5 : vector<8x256xf32>
    %10 = arith.select %7, %5, %9 : vector<8x256xi1>, vector<8x256xf32>
    %c0_7 = arith.constant 0 : index
    %c0_8 = arith.constant 0 : index
    %11 = vector.load %arg4[%c0_7, %c0_8] : memref<8x256xf32, #tpu.memory_space<vmem>>, vector<8x256xf32>
    tpu.vector_store %arg4[%c0_7, %c0_8], %10 {strides = array<i32>} : memref<8x256xf32, #tpu.memory_space<vmem>>, vector<8x256xf32>,
    return
  }
  func.func @transform_0(%arg0: i32) -> (i32, i32) {
    %c0_i32 = arith.constant 0 : i32
    %c0_i32_0 = arith.constant 0 : i32
    %c0_i32_1 = arith.constant 0 : i32
    return %c0_i32, %c0_i32_0 : i32, i32
  }
  func.func @transform_1(%arg0: i32) -> (i32, i32) {
    %c0_i32 = arith.constant 0 : i32
    %c0_i32_0 = arith.constant 0 : i32
    return %c0_i32, %arg0 : i32, i32
  }
  func.func @transform_2(%arg0: i32) -> (i32, i32) {
    %c0_i32 = arith.constant 0 : i32
    %c0_i32_0 = arith.constant 0 : i32
    %c0_i32_1 = arith.constant 0 : i32
    return %c0_i32, %c0_i32_0 : i32, i32
  }
  func.func @transform_3(%arg0: i32) -> (i32, i32) {
    %c0_i32 = arith.constant 0 : i32
    %c0_i32_0 = arith.constant 0 : i32
    return %c0_i32, %arg0 : i32, i32
  }
}

module attributes {stable_mosaic.version = 11 : i64} {
  func.func @_conv_mm_kernel(%arg0: i32, %arg1: memref<8x216xbf16, #tpu.memory_space<vmem>>, %arg2: memref<216x256xbf16, #tpu.memory_space<vmem>>, %arg3: memref<8x1xf32, #tpu.memory_space<vmem>>, %arg4: memref<8x256xf32, #tpu.memory_space<vmem>>) attributes {dimension_semantics = [#tpu.dimension_semantics<parallel>], iteration_bounds = array<i64: 1>, scalar_prefetch = 0 : i64, scratch_operands = 0 : i64, tpu.core_type = #tpu.core_type<tc>, window_params = [{pipeline_mode = #tpu.pipeline_mode<synchronous>, transform_indices = @transform_0, window_bounds = array<i64: 8, 216>}, {transform_indices = @transform_1, window_bounds = array<i64: 216, 256>}, {pipeline_mode = #tpu.pipeline_mode<synchronous>, transform_indices = @transform_2, window_bounds = array<i64: 8, 1>}, {transform_indices = @transform_3, window_bounds = array<i64: 8, 256>}]} {
    %c0 = arith.constant 0 : index
    %c0_0 = arith.constant 0 : index
    %0 = vector.load %arg1[%c0, %c0_0] : memref<8x216xbf16, #tpu.memory_space<vmem>>, vector<8x216xbf16>
    %c0_1 = arith.constant 0 : index
    %c0_2 = arith.constant 0 : index
    %1 = vector.load %arg2[%c0_1, %c0_2] : memref<216x256xbf16, #tpu.memory_space<vmem>>, vector<216x256xbf16>
    %cst = arith.constant dense<0.000000e+00> : vector<8x256xf32>
    %2 = tpu.matmul %0, %1, %cst {dimension_numbers = #tpu.dot_dimension_numbers<[1], [0], [0], [1], [0, 0, 1, 1], [], []>} : vector<8x216xbf16>, vector<216x256xbf16>, vector<8x256xf32> -> vector<8x256xf32>
    %c0_3 = arith.constant 0 : index
    %c0_4 = arith.constant 0 : index
    %3 = vector.load %arg3[%c0_3, %c0_4] : memref<8x1xf32, #tpu.memory_space<vmem>>, vector<8x1xf32>
    %4 = vector.broadcast %3 : vector<8x1xf32> to vector<8x256xf32>
    %5 = arith.addf %2, %4 : vector<8x256xf32>
    %c0_5 = arith.constant 0 : index
    %c0_6 = arith.constant 0 : index
    %6 = vector.load %arg4[%c0_5, %c0_6] : memref<8x256xf32, #tpu.memory_space<vmem>>, vector<8x256xf32>
    tpu.vector_store %arg4[%c0_5, %c0_6], %5 {strides = array<i32>} : memref<8x256xf32, #tpu.memory_space<vmem>>, vector<8x256xf32>,
    return
  }
  func.func @transform_0(%arg0: i32) -> (i32, i32) {
    %c0_i32 = arith.constant 0 : i32
    %c0_i32_0 = arith.constant 0 : i32
    %c0_i32_1 = arith.constant 0 : i32
    return %c0_i32, %c0_i32_0 : i32, i32
  }
  func.func @transform_1(%arg0: i32) -> (i32, i32) {
    %c0_i32 = arith.constant 0 : i32
    %c0_i32_0 = arith.constant 0 : i32
    return %c0_i32, %arg0 : i32, i32
  }
  func.func @transform_2(%arg0: i32) -> (i32, i32) {
    %c0_i32 = arith.constant 0 : i32
    %c0_i32_0 = arith.constant 0 : i32
    %c0_i32_1 = arith.constant 0 : i32
    return %c0_i32, %c0_i32_0 : i32, i32
  }
  func.func @transform_3(%arg0: i32) -> (i32, i32) {
    %c0_i32 = arith.constant 0 : i32
    %c0_i32_0 = arith.constant 0 : i32
    return %c0_i32, %arg0 : i32, i32
  }
}

module attributes {stable_mosaic.version = 11 : i64} {
  func.func @_conv_mm_kernel(%arg0: i32, %arg1: memref<4x27xbf16, #tpu.memory_space<vmem>>, %arg2: memref<27x512xbf16, #tpu.memory_space<vmem>>, %arg3: memref<4x1xf32, #tpu.memory_space<vmem>>, %arg4: memref<4x512xf32, #tpu.memory_space<vmem>>) attributes {dimension_semantics = [#tpu.dimension_semantics<parallel>], iteration_bounds = array<i64: 32>, scalar_prefetch = 0 : i64, scratch_operands = 0 : i64, tpu.core_type = #tpu.core_type<tc>, window_params = [{pipeline_mode = #tpu.pipeline_mode<synchronous>, transform_indices = @transform_0, window_bounds = array<i64: 4, 27>}, {transform_indices = @transform_1, window_bounds = array<i64: 27, 512>}, {pipeline_mode = #tpu.pipeline_mode<synchronous>, transform_indices = @transform_2, window_bounds = array<i64: 4, 1>}, {transform_indices = @transform_3, window_bounds = array<i64: 4, 512>}]} {
    %c0 = arith.constant 0 : index
    %c0_0 = arith.constant 0 : index
    %0 = vector.load %arg1[%c0, %c0_0] : memref<4x27xbf16, #tpu.memory_space<vmem>>, vector<4x27xbf16>
    %c0_1 = arith.constant 0 : index
    %c0_2 = arith.constant 0 : index
    %1 = vector.load %arg2[%c0_1, %c0_2] : memref<27x512xbf16, #tpu.memory_space<vmem>>, vector<27x512xbf16>
    %cst = arith.constant dense<0.000000e+00> : vector<4x512xf32>
    %2 = tpu.matmul %0, %1, %cst {dimension_numbers = #tpu.dot_dimension_numbers<[1], [0], [0], [1], [0, 0, 1, 1], [], []>} : vector<4x27xbf16>, vector<27x512xbf16>, vector<4x512xf32> -> vector<4x512xf32>
    %c0_3 = arith.constant 0 : index
    %c0_4 = arith.constant 0 : index
    %3 = vector.load %arg3[%c0_3, %c0_4] : memref<4x1xf32, #tpu.memory_space<vmem>>, vector<4x1xf32>
    %4 = vector.broadcast %3 : vector<4x1xf32> to vector<4x512xf32>
    %5 = arith.addf %2, %4 : vector<4x512xf32>
    %cst_5 = arith.constant 0.000000e+00 : f32
    %6 = vector.broadcast %cst_5 : f32 to vector<4x512xf32>
    %7 = arith.cmpf oge, %5, %6 : vector<4x512xf32>
    %cst_6 = arith.constant 2.000000e-01 : f32
    %8 = vector.broadcast %cst_6 : f32 to vector<4x512xf32>
    %9 = arith.mulf %8, %5 : vector<4x512xf32>
    %10 = arith.select %7, %5, %9 : vector<4x512xi1>, vector<4x512xf32>
    %c0_7 = arith.constant 0 : index
    %c0_8 = arith.constant 0 : index
    %11 = vector.load %arg4[%c0_7, %c0_8] : memref<4x512xf32, #tpu.memory_space<vmem>>, vector<4x512xf32>
    tpu.vector_store %arg4[%c0_7, %c0_8], %10 {strides = array<i32>} : memref<4x512xf32, #tpu.memory_space<vmem>>, vector<4x512xf32>,
    return
  }
  func.func @transform_0(%arg0: i32) -> (i32, i32) {
    %c0_i32 = arith.constant 0 : i32
    %c0_i32_0 = arith.constant 0 : i32
    %c0_i32_1 = arith.constant 0 : i32
    return %c0_i32, %c0_i32_0 : i32, i32
  }
  func.func @transform_1(%arg0: i32) -> (i32, i32) {
    %c0_i32 = arith.constant 0 : i32
    %c0_i32_0 = arith.constant 0 : i32
    return %c0_i32, %arg0 : i32, i32
  }
  func.func @transform_2(%arg0: i32) -> (i32, i32) {
    %c0_i32 = arith.constant 0 : i32
    %c0_i32_0 = arith.constant 0 : i32
    %c0_i32_1 = arith.constant 0 : i32
    return %c0_i32, %c0_i32_0 : i32, i32
  }
  func.func @transform_3(%arg0: i32) -> (i32, i32) {
    %c0_i32 = arith.constant 0 : i32
    %c0_i32_0 = arith.constant 0 : i32
    return %c0_i32, %arg0 : i32, i32
  }
}

module attributes {stable_mosaic.version = 11 : i64} {
  func.func @_conv_mm_kernel(%arg0: i32, %arg1: memref<8x216xbf16, #tpu.memory_space<vmem>>, %arg2: memref<216x512xbf16, #tpu.memory_space<vmem>>, %arg3: memref<8x1xf32, #tpu.memory_space<vmem>>, %arg4: memref<8x512xf32, #tpu.memory_space<vmem>>) attributes {dimension_semantics = [#tpu.dimension_semantics<parallel>], iteration_bounds = array<i64: 4>, scalar_prefetch = 0 : i64, scratch_operands = 0 : i64, tpu.core_type = #tpu.core_type<tc>, window_params = [{pipeline_mode = #tpu.pipeline_mode<synchronous>, transform_indices = @transform_0, window_bounds = array<i64: 8, 216>}, {transform_indices = @transform_1, window_bounds = array<i64: 216, 512>}, {pipeline_mode = #tpu.pipeline_mode<synchronous>, transform_indices = @transform_2, window_bounds = array<i64: 8, 1>}, {transform_indices = @transform_3, window_bounds = array<i64: 8, 512>}]} {
    %c0 = arith.constant 0 : index
    %c0_0 = arith.constant 0 : index
    %0 = vector.load %arg1[%c0, %c0_0] : memref<8x216xbf16, #tpu.memory_space<vmem>>, vector<8x216xbf16>
    %c0_1 = arith.constant 0 : index
    %c0_2 = arith.constant 0 : index
    %1 = vector.load %arg2[%c0_1, %c0_2] : memref<216x512xbf16, #tpu.memory_space<vmem>>, vector<216x512xbf16>
    %cst = arith.constant dense<0.000000e+00> : vector<8x512xf32>
    %2 = tpu.matmul %0, %1, %cst {dimension_numbers = #tpu.dot_dimension_numbers<[1], [0], [0], [1], [0, 0, 1, 1], [], []>} : vector<8x216xbf16>, vector<216x512xbf16>, vector<8x512xf32> -> vector<8x512xf32>
    %c0_3 = arith.constant 0 : index
    %c0_4 = arith.constant 0 : index
    %3 = vector.load %arg3[%c0_3, %c0_4] : memref<8x1xf32, #tpu.memory_space<vmem>>, vector<8x1xf32>
    %4 = vector.broadcast %3 : vector<8x1xf32> to vector<8x512xf32>
    %5 = arith.addf %2, %4 : vector<8x512xf32>
    %cst_5 = arith.constant 0.000000e+00 : f32
    %6 = vector.broadcast %cst_5 : f32 to vector<8x512xf32>
    %7 = arith.cmpf oge, %5, %6 : vector<8x512xf32>
    %cst_6 = arith.constant 2.000000e-01 : f32
    %8 = vector.broadcast %cst_6 : f32 to vector<8x512xf32>
    %9 = arith.mulf %8, %5 : vector<8x512xf32>
    %10 = arith.select %7, %5, %9 : vector<8x512xi1>, vector<8x512xf32>
    %c0_7 = arith.constant 0 : index
    %c0_8 = arith.constant 0 : index
    %11 = vector.load %arg4[%c0_7, %c0_8] : memref<8x512xf32, #tpu.memory_space<vmem>>, vector<8x512xf32>
    tpu.vector_store %arg4[%c0_7, %c0_8], %10 {strides = array<i32>} : memref<8x512xf32, #tpu.memory_space<vmem>>, vector<8x512xf32>,
    return
  }
  func.func @transform_0(%arg0: i32) -> (i32, i32) {
    %c0_i32 = arith.constant 0 : i32
    %c0_i32_0 = arith.constant 0 : i32
    %c0_i32_1 = arith.constant 0 : i32
    return %c0_i32, %c0_i32_0 : i32, i32
  }
  func.func @transform_1(%arg0: i32) -> (i32, i32) {
    %c0_i32 = arith.constant 0 : i32
    %c0_i32_0 = arith.constant 0 : i32
    return %c0_i32, %arg0 : i32, i32
  }
  func.func @transform_2(%arg0: i32) -> (i32, i32) {
    %c0_i32 = arith.constant 0 : i32
    %c0_i32_0 = arith.constant 0 : i32
    %c0_i32_1 = arith.constant 0 : i32
    return %c0_i32, %c0_i32_0 : i32, i32
  }
  func.func @transform_3(%arg0: i32) -> (i32, i32) {
    %c0_i32 = arith.constant 0 : i32
    %c0_i32_0 = arith.constant 0 : i32
    return %c0_i32, %arg0 : i32, i32
  }
}

module attributes {stable_mosaic.version = 11 : i64} {
  func.func @_conv_mm_kernel(%arg0: i32, %arg1: memref<4x108xbf16, #tpu.memory_space<vmem>>, %arg2: memref<108x512xbf16, #tpu.memory_space<vmem>>, %arg3: memref<4x1xf32, #tpu.memory_space<vmem>>, %arg4: memref<4x512xf32, #tpu.memory_space<vmem>>) attributes {dimension_semantics = [#tpu.dimension_semantics<parallel>], iteration_bounds = array<i64: 32>, scalar_prefetch = 0 : i64, scratch_operands = 0 : i64, tpu.core_type = #tpu.core_type<tc>, window_params = [{pipeline_mode = #tpu.pipeline_mode<synchronous>, transform_indices = @transform_0, window_bounds = array<i64: 4, 108>}, {transform_indices = @transform_1, window_bounds = array<i64: 108, 512>}, {pipeline_mode = #tpu.pipeline_mode<synchronous>, transform_indices = @transform_2, window_bounds = array<i64: 4, 1>}, {transform_indices = @transform_3, window_bounds = array<i64: 4, 512>}]} {
    %c0 = arith.constant 0 : index
    %c0_0 = arith.constant 0 : index
    %0 = vector.load %arg1[%c0, %c0_0] : memref<4x108xbf16, #tpu.memory_space<vmem>>, vector<4x108xbf16>
    %c0_1 = arith.constant 0 : index
    %c0_2 = arith.constant 0 : index
    %1 = vector.load %arg2[%c0_1, %c0_2] : memref<108x512xbf16, #tpu.memory_space<vmem>>, vector<108x512xbf16>
    %cst = arith.constant dense<0.000000e+00> : vector<4x512xf32>
    %2 = tpu.matmul %0, %1, %cst {dimension_numbers = #tpu.dot_dimension_numbers<[1], [0], [0], [1], [0, 0, 1, 1], [], []>} : vector<4x108xbf16>, vector<108x512xbf16>, vector<4x512xf32> -> vector<4x512xf32>
    %c0_3 = arith.constant 0 : index
    %c0_4 = arith.constant 0 : index
    %3 = vector.load %arg3[%c0_3, %c0_4] : memref<4x1xf32, #tpu.memory_space<vmem>>, vector<4x1xf32>
    %4 = vector.broadcast %3 : vector<4x1xf32> to vector<4x512xf32>
    %5 = arith.addf %2, %4 : vector<4x512xf32>
    %c0_5 = arith.constant 0 : index
    %c0_6 = arith.constant 0 : index
    %6 = vector.load %arg4[%c0_5, %c0_6] : memref<4x512xf32, #tpu.memory_space<vmem>>, vector<4x512xf32>
    tpu.vector_store %arg4[%c0_5, %c0_6], %5 {strides = array<i32>} : memref<4x512xf32, #tpu.memory_space<vmem>>, vector<4x512xf32>,
    return
  }
  func.func @transform_0(%arg0: i32) -> (i32, i32) {
    %c0_i32 = arith.constant 0 : i32
    %c0_i32_0 = arith.constant 0 : i32
    %c0_i32_1 = arith.constant 0 : i32
    return %c0_i32, %c0_i32_0 : i32, i32
  }
  func.func @transform_1(%arg0: i32) -> (i32, i32) {
    %c0_i32 = arith.constant 0 : i32
    %c0_i32_0 = arith.constant 0 : i32
    return %c0_i32, %arg0 : i32, i32
  }
  func.func @transform_2(%arg0: i32) -> (i32, i32) {
    %c0_i32 = arith.constant 0 : i32
    %c0_i32_0 = arith.constant 0 : i32
    %c0_i32_1 = arith.constant 0 : i32
    return %c0_i32, %c0_i32_0 : i32, i32
  }
  func.func @transform_3(%arg0: i32) -> (i32, i32) {
    %c0_i32 = arith.constant 0 : i32
    %c0_i32_0 = arith.constant 0 : i32
    return %c0_i32, %arg0 : i32, i32
  }
}

module attributes {stable_mosaic.version = 11 : i64} {
  func.func @_conv_mm_kernel(%arg0: i32, %arg1: memref<8x216xbf16, #tpu.memory_space<vmem>>, %arg2: memref<216x512xbf16, #tpu.memory_space<vmem>>, %arg3: memref<8x1xf32, #tpu.memory_space<vmem>>, %arg4: memref<8x512xf32, #tpu.memory_space<vmem>>) attributes {dimension_semantics = [#tpu.dimension_semantics<parallel>], iteration_bounds = array<i64: 32>, scalar_prefetch = 0 : i64, scratch_operands = 0 : i64, tpu.core_type = #tpu.core_type<tc>, window_params = [{pipeline_mode = #tpu.pipeline_mode<synchronous>, transform_indices = @transform_0, window_bounds = array<i64: 8, 216>}, {transform_indices = @transform_1, window_bounds = array<i64: 216, 512>}, {pipeline_mode = #tpu.pipeline_mode<synchronous>, transform_indices = @transform_2, window_bounds = array<i64: 8, 1>}, {transform_indices = @transform_3, window_bounds = array<i64: 8, 512>}]} {
    %c0 = arith.constant 0 : index
    %c0_0 = arith.constant 0 : index
    %0 = vector.load %arg1[%c0, %c0_0] : memref<8x216xbf16, #tpu.memory_space<vmem>>, vector<8x216xbf16>
    %c0_1 = arith.constant 0 : index
    %c0_2 = arith.constant 0 : index
    %1 = vector.load %arg2[%c0_1, %c0_2] : memref<216x512xbf16, #tpu.memory_space<vmem>>, vector<216x512xbf16>
    %cst = arith.constant dense<0.000000e+00> : vector<8x512xf32>
    %2 = tpu.matmul %0, %1, %cst {dimension_numbers = #tpu.dot_dimension_numbers<[1], [0], [0], [1], [0, 0, 1, 1], [], []>} : vector<8x216xbf16>, vector<216x512xbf16>, vector<8x512xf32> -> vector<8x512xf32>
    %c0_3 = arith.constant 0 : index
    %c0_4 = arith.constant 0 : index
    %3 = vector.load %arg3[%c0_3, %c0_4] : memref<8x1xf32, #tpu.memory_space<vmem>>, vector<8x1xf32>
    %4 = vector.broadcast %3 : vector<8x1xf32> to vector<8x512xf32>
    %5 = arith.addf %2, %4 : vector<8x512xf32>
    %cst_5 = arith.constant 0.000000e+00 : f32
    %6 = vector.broadcast %cst_5 : f32 to vector<8x512xf32>
    %7 = arith.cmpf oge, %5, %6 : vector<8x512xf32>
    %cst_6 = arith.constant 2.000000e-01 : f32
    %8 = vector.broadcast %cst_6 : f32 to vector<8x512xf32>
    %9 = arith.mulf %8, %5 : vector<8x512xf32>
    %10 = arith.select %7, %5, %9 : vector<8x512xi1>, vector<8x512xf32>
    %c0_7 = arith.constant 0 : index
    %c0_8 = arith.constant 0 : index
    %11 = vector.load %arg4[%c0_7, %c0_8] : memref<8x512xf32, #tpu.memory_space<vmem>>, vector<8x512xf32>
    tpu.vector_store %arg4[%c0_7, %c0_8], %10 {strides = array<i32>} : memref<8x512xf32, #tpu.memory_space<vmem>>, vector<8x512xf32>,
    return
  }
  func.func @transform_0(%arg0: i32) -> (i32, i32) {
    %c0_i32 = arith.constant 0 : i32
    %c0_i32_0 = arith.constant 0 : i32
    %c0_i32_1 = arith.constant 0 : i32
    return %c0_i32, %c0_i32_0 : i32, i32
  }
  func.func @transform_1(%arg0: i32) -> (i32, i32) {
    %c0_i32 = arith.constant 0 : i32
    %c0_i32_0 = arith.constant 0 : i32
    return %c0_i32, %arg0 : i32, i32
  }
  func.func @transform_2(%arg0: i32) -> (i32, i32) {
    %c0_i32 = arith.constant 0 : i32
    %c0_i32_0 = arith.constant 0 : i32
    %c0_i32_1 = arith.constant 0 : i32
    return %c0_i32, %c0_i32_0 : i32, i32
  }
  func.func @transform_3(%arg0: i32) -> (i32, i32) {
    %c0_i32 = arith.constant 0 : i32
    %c0_i32_0 = arith.constant 0 : i32
    return %c0_i32, %arg0 : i32, i32
  }
}

module attributes {stable_mosaic.version = 11 : i64} {
  func.func @_conv_mm_kernel(%arg0: i32, %arg1: memref<12x324xbf16, #tpu.memory_space<vmem>>, %arg2: memref<324x512xbf16, #tpu.memory_space<vmem>>, %arg3: memref<12x1xf32, #tpu.memory_space<vmem>>, %arg4: memref<12x512xf32, #tpu.memory_space<vmem>>) attributes {dimension_semantics = [#tpu.dimension_semantics<parallel>], iteration_bounds = array<i64: 32>, scalar_prefetch = 0 : i64, scratch_operands = 0 : i64, tpu.core_type = #tpu.core_type<tc>, window_params = [{pipeline_mode = #tpu.pipeline_mode<synchronous>, transform_indices = @transform_0, window_bounds = array<i64: 12, 324>}, {transform_indices = @transform_1, window_bounds = array<i64: 324, 512>}, {pipeline_mode = #tpu.pipeline_mode<synchronous>, transform_indices = @transform_2, window_bounds = array<i64: 12, 1>}, {transform_indices = @transform_3, window_bounds = array<i64: 12, 512>}]} {
    %c0 = arith.constant 0 : index
    %c0_0 = arith.constant 0 : index
    %0 = vector.load %arg1[%c0, %c0_0] : memref<12x324xbf16, #tpu.memory_space<vmem>>, vector<12x324xbf16>
    %c0_1 = arith.constant 0 : index
    %c0_2 = arith.constant 0 : index
    %1 = vector.load %arg2[%c0_1, %c0_2] : memref<324x512xbf16, #tpu.memory_space<vmem>>, vector<324x512xbf16>
    %cst = arith.constant dense<0.000000e+00> : vector<12x512xf32>
    %2 = tpu.matmul %0, %1, %cst {dimension_numbers = #tpu.dot_dimension_numbers<[1], [0], [0], [1], [0, 0, 1, 1], [], []>} : vector<12x324xbf16>, vector<324x512xbf16>, vector<12x512xf32> -> vector<12x512xf32>
    %c0_3 = arith.constant 0 : index
    %c0_4 = arith.constant 0 : index
    %3 = vector.load %arg3[%c0_3, %c0_4] : memref<12x1xf32, #tpu.memory_space<vmem>>, vector<12x1xf32>
    %4 = vector.broadcast %3 : vector<12x1xf32> to vector<12x512xf32>
    %5 = arith.addf %2, %4 : vector<12x512xf32>
    %cst_5 = arith.constant 0.000000e+00 : f32
    %6 = vector.broadcast %cst_5 : f32 to vector<12x512xf32>
    %7 = arith.cmpf oge, %5, %6 : vector<12x512xf32>
    %cst_6 = arith.constant 2.000000e-01 : f32
    %8 = vector.broadcast %cst_6 : f32 to vector<12x512xf32>
    %9 = arith.mulf %8, %5 : vector<12x512xf32>
    %10 = arith.select %7, %5, %9 : vector<12x512xi1>, vector<12x512xf32>
    %c0_7 = arith.constant 0 : index
    %c0_8 = arith.constant 0 : index
    %11 = vector.load %arg4[%c0_7, %c0_8] : memref<12x512xf32, #tpu.memory_space<vmem>>, vector<12x512xf32>
    tpu.vector_store %arg4[%c0_7, %c0_8], %10 {strides = array<i32>} : memref<12x512xf32, #tpu.memory_space<vmem>>, vector<12x512xf32>,
    return
  }
  func.func @transform_0(%arg0: i32) -> (i32, i32) {
    %c0_i32 = arith.constant 0 : i32
    %c0_i32_0 = arith.constant 0 : i32
    %c0_i32_1 = arith.constant 0 : i32
    return %c0_i32, %c0_i32_0 : i32, i32
  }
  func.func @transform_1(%arg0: i32) -> (i32, i32) {
    %c0_i32 = arith.constant 0 : i32
    %c0_i32_0 = arith.constant 0 : i32
    return %c0_i32, %arg0 : i32, i32
  }
  func.func @transform_2(%arg0: i32) -> (i32, i32) {
    %c0_i32 = arith.constant 0 : i32
    %c0_i32_0 = arith.constant 0 : i32
    %c0_i32_1 = arith.constant 0 : i32
    return %c0_i32, %c0_i32_0 : i32, i32
  }
  func.func @transform_3(%arg0: i32) -> (i32, i32) {
    %c0_i32 = arith.constant 0 : i32
    %c0_i32_0 = arith.constant 0 : i32
    return %c0_i32, %arg0 : i32, i32
  }
}

module attributes {stable_mosaic.version = 11 : i64} {
  func.func @_conv_mm_kernel(%arg0: i32, %arg1: memref<3x324xbf16, #tpu.memory_space<vmem>>, %arg2: memref<324x512xbf16, #tpu.memory_space<vmem>>, %arg3: memref<3x1xf32, #tpu.memory_space<vmem>>, %arg4: memref<3x512xf32, #tpu.memory_space<vmem>>) attributes {dimension_semantics = [#tpu.dimension_semantics<parallel>], iteration_bounds = array<i64: 32>, scalar_prefetch = 0 : i64, scratch_operands = 0 : i64, tpu.core_type = #tpu.core_type<tc>, window_params = [{pipeline_mode = #tpu.pipeline_mode<synchronous>, transform_indices = @transform_0, window_bounds = array<i64: 3, 324>}, {transform_indices = @transform_1, window_bounds = array<i64: 324, 512>}, {pipeline_mode = #tpu.pipeline_mode<synchronous>, transform_indices = @transform_2, window_bounds = array<i64: 3, 1>}, {transform_indices = @transform_3, window_bounds = array<i64: 3, 512>}]} {
    %c0 = arith.constant 0 : index
    %c0_0 = arith.constant 0 : index
    %0 = vector.load %arg1[%c0, %c0_0] : memref<3x324xbf16, #tpu.memory_space<vmem>>, vector<3x324xbf16>
    %c0_1 = arith.constant 0 : index
    %c0_2 = arith.constant 0 : index
    %1 = vector.load %arg2[%c0_1, %c0_2] : memref<324x512xbf16, #tpu.memory_space<vmem>>, vector<324x512xbf16>
    %cst = arith.constant dense<0.000000e+00> : vector<3x512xf32>
    %2 = tpu.matmul %0, %1, %cst {dimension_numbers = #tpu.dot_dimension_numbers<[1], [0], [0], [1], [0, 0, 1, 1], [], []>} : vector<3x324xbf16>, vector<324x512xbf16>, vector<3x512xf32> -> vector<3x512xf32>
    %c0_3 = arith.constant 0 : index
    %c0_4 = arith.constant 0 : index
    %3 = vector.load %arg3[%c0_3, %c0_4] : memref<3x1xf32, #tpu.memory_space<vmem>>, vector<3x1xf32>
    %4 = vector.broadcast %3 : vector<3x1xf32> to vector<3x512xf32>
    %5 = arith.addf %2, %4 : vector<3x512xf32>
    %c0_5 = arith.constant 0 : index
    %c0_6 = arith.constant 0 : index
    %6 = vector.load %arg4[%c0_5, %c0_6] : memref<3x512xf32, #tpu.memory_space<vmem>>, vector<3x512xf32>
    tpu.vector_store %arg4[%c0_5, %c0_6], %5 {strides = array<i32>} : memref<3x512xf32, #tpu.memory_space<vmem>>, vector<3x512xf32>,
    return
  }
  func.func @transform_0(%arg0: i32) -> (i32, i32) {
    %c0_i32 = arith.constant 0 : i32
    %c0_i32_0 = arith.constant 0 : i32
    %c0_i32_1 = arith.constant 0 : i32
    return %c0_i32, %c0_i32_0 : i32, i32
  }
  func.func @transform_1(%arg0: i32) -> (i32, i32) {
    %c0_i32 = arith.constant 0 : i32
    %c0_i32_0 = arith.constant 0 : i32
    return %c0_i32, %arg0 : i32, i32
  }
  func.func @transform_2(%arg0: i32) -> (i32, i32) {
    %c0_i32 = arith.constant 0 : i32
    %c0_i32_0 = arith.constant 0 : i32
    %c0_i32_1 = arith.constant 0 : i32
    return %c0_i32, %c0_i32_0 : i32, i32
  }
  func.func @transform_3(%arg0: i32) -> (i32, i32) {
    %c0_i32 = arith.constant 0 : i32
    %c0_i32_0 = arith.constant 0 : i32
    return %c0_i32, %arg0 : i32, i32
  }
}

</mosaic_0001>

<llo_original>
// kernel: generator_forward.17
$region0: #{generator_forward.17}
  #allocation0 [shape = 'u32[]', space=smem, size = 0x4, offset = 0x4, fixed_abs, tag = 'smem constant byte address 0x4 - core index']
  #allocation1 [shape = 'u32[144,128]{1,0:T(1,128)}', space=vmem, size = 0x12000, scoped, tag = 'internal scratch']
  %s0 = inlined_call_operand.vmem [shape: bf16[8,81], index: 0, kind: input, shape index: {}]
  %s1 = inlined_call_operand.vmem [shape: bf16[81,256], index: 1, kind: input, shape index: {}]
  %s2 = inlined_call_operand.vmem [shape: f32[8,1], index: 2, kind: input, shape index: {}]
  %s3 = inlined_call_operand.vmem [shape: f32[8,256], index: 3, kind: output, shape index: {}]
  %s4 = sld [smem:[#allocation0]]
  $region22: #{generator_forward.17} parent=0
    _
  %s6 = ssub.s32 1, %s4
  %s7 = scalar_select 0, %s6, %s4
  // Predicated region
  $region2: #{generator_forward.17} parent=0 // pred_check
    _
  $region3: #{generator_forward.17} parent=0 // pred_check_branch
    %9 = sbr.rel (0) target = $region5
  $region4: #{generator_forward.17} parent=0 // pred_region
    _
  $region5: #{generator_forward.17} parent=0 // pred_fallthru
    _
  // Predicated region
  $region6: #{generator_forward.17} parent=0 // pred_check
    _
  $region7: #{generator_forward.17} parent=0 // pred_check_branch
    %11 = sbr.rel (0) target = $region9
  $region8: #{generator_forward.17} parent=0 // pred_region
    _
  $region9: #{generator_forward.17} parent=0 // pred_fallthru
    _
  // Predicated region
  $region10: #{generator_forward.17} parent=0 // pred_check
    _
  $region11: #{generator_forward.17} parent=0 // pred_check_branch
    %13 = sbr.rel (0) target = $region13
  $region12: #{generator_forward.17} parent=0 // pred_region
    _
  $region13: #{generator_forward.17} parent=0 // pred_fallthru
    _
  %v15 = vld [vmem:[%s0] sm:$0xf]
  %v16 = vld [vmem:[%s1] sm:$0xff]
  %v17 = vld [vmem:[%s1 + $0x8] sm:$0xff]
  %v18 = vld [vmem:[%s1 + $0x10] sm:$0xff]
  %v19 = vld [vmem:[%s1 + $0x18] sm:$0xff]
  %v20 = vld [vmem:[%s1 + $0x20] sm:$0xff]
  %v21 = vld [vmem:[%s1 + $0x28] sm:$0xff]
  %v22 = vld [vmem:[%s1 + $0x30] sm:$0xff]
  %v23 = vld [vmem:[%s1 + $0x38] sm:$0xff]
  %v24 = vld [vmem:[%s1 + $0x40] sm:$0xff]
  %v25 = vld [vmem:[%s1 + $0x48] sm:$0xff]
  %v26 = vld [vmem:[%s1 + $0x50] sm:$0x11]
  %v27 = vld [vmem:[%s2] sm:$0xff]
  %29 = vset.pattern.permute.xlu0 0
  %30 = vperm.xlu0 %29, %v27
  %v31 = vpop.permute.xlu0 %30
  %v44 = vunpack.c.l.b16 %v16
  %v45 = vunpack.c.h.b16 %v16
  %v46 = vunpack.c.l.b16 %v17
  %v47 = vunpack.c.h.b16 %v17
  %v48 = vunpack.c.l.b16 %v18
  %v49 = vunpack.c.h.b16 %v18
  %v50 = vunpack.c.l.b16 %v19
  %v51 = vunpack.c.h.b16 %v19
  %v52 = vunpack.c.l.b16 %v20
  %v53 = vunpack.c.h.b16 %v20
  %v54 = vunpack.c.l.b16 %v21
  %v55 = vunpack.c.h.b16 %v21
  %v56 = vunpack.c.l.b16 %v22
  %v57 = vunpack.c.h.b16 %v22
  %v58 = vunpack.c.l.b16 %v23
  %v59 = vunpack.c.h.b16 %v23
  %v60 = vunpack.c.l.b16 %v24
  %v61 = vunpack.c.h.b16 %v24
  %v62 = vunpack.c.l.b16 %v25
  %v63 = vunpack.c.h.b16 %v25
  %v64 = vunpack.c.l.b16 %v26
  %v65 = vunpack.c.h.b16 %v26
  %v66 = vpack.c.b16 %v46, %v44
  %v67 = vpack.c.b16 %v47, %v45
  %v68 = vpack.c.b16 %v50, %v48
  %v69 = vpack.c.b16 %v51, %v49
  %v70 = vpack.c.b16 %v54, %v52
  %v71 = vpack.c.b16 %v55, %v53
  %v72 = vpack.c.b16 %v58, %v56
  %v73 = vpack.c.b16 %v59, %v57
  %v74 = vpack.c.b16 %v62, %v60
  %v75 = vpack.c.b16 %v63, %v61
  %v76 = vpack.c.b16 %v64, %v64
  %v77 = vpack.c.b16 %v65, %v65
  %vm88 = vcmask 662528
  %v90 = vsel %vm88, %v15, 0
  %vm92 = vcmask 1040384
  %v93 = vsel 0, 4294967295, 65535
  %v94 = vsel %vm92, %v93, 0
  %v96 = vand.u32 %v76, %v94
  %v99 = vand.u32 %v77, %v94
  %101 = vmatprep.subr.bf16.mxu0 %v67
  %102 = vmatpush1.bf16.msra.mxu0 %v66
  %103 = vmatprep.subr.bf16.mxu0 %v69
  %104 = vmatpush1.bf16.msra.mxu0 %v68
  %105 = vmatprep.subr.bf16.mxu0 %v71
  %106 = vmatpush1.bf16.msra.mxu0 %v70
  %107 = vmatprep.subr.bf16.mxu0 %v73
  %108 = vmatpush1.bf16.msra.mxu0 %v72
  %109 = vmatprep.subr.bf16.mxu0 %v75
  %110 = vmatpush1.bf16.msra.mxu0 %v74
  %111 = vmatprep.subr.bf16.mxu0 %v99
  %112 = vmatpush1.bf16.msra.mxu0 %v96
  %113 = vmatprep.subr.bf16.mxu0 0
  %114 = vmatpush1.bf16.msra.mxu0 0
  %115 = vmatprep.subr.bf16.mxu0 0
  %116 = vmatpush1.bf16.msra.mxu0 0
  %117 = vmatprep.subr.bf16.mxu0 0
  %118 = vmatpush1.bf16.msra.mxu0 0
  %119 = vmatprep.subr.bf16.mxu0 0
  %120 = vmatpush1.bf16.msra.mxu0 0
  %121 = vmatprep.subr.bf16.mxu0 0
  %122 = vmatpush1.bf16.msra.mxu0 0
  %123 = vmatprep.subr.bf16.mxu0 0
  %124 = vmatpush1.bf16.msra.mxu0 0
  %125 = vmatprep.subr.bf16.mxu0 0
  %126 = vmatpush1.bf16.msra.mxu0 0
  %127 = vmatprep.subr.bf16.mxu0 0
  %128 = vmatpush1.bf16.msra.mxu0 0
  %129 = vmatprep.subr.bf16.mxu0 0
  %130 = vmatpush1.bf16.msra.mxu0 0
  %131 = vmatprep.subr.bf16.mxu0 0
  %132 = vmatpush1.bf16.msra.mxu0 0
  %133 = vmatprep.mubr.bf16.mxu0 0
  %134 = vmatmul.mubr.bf16.gmra.mrb[0].mxu0 %v90
  %v135 = vpop.f32.mrb[0].mxu0
  %v136 = vadd.f32 %v31, %v135
  %v137 = vpop.f32.mrb[0].mxu0
  %v138 = vadd.f32 %v31, %v137
  %v139 = vpop.f32.mrb[0].mxu0
  %v140 = vpop.f32.mrb[0].mxu0
  %141 = vdwg.mxu0
  %142 = vst [vmem:[%s3] sm:$0xff] %v136
  %143 = vst [vmem:[%s3 + $0x8] sm:$0xff] %v138
  // Predicated region
  $region14: #{generator_forward.17} parent=0 // pred_check
    _
  $region15: #{generator_forward.17} parent=0 // pred_check_branch
    %145 = sbr.rel (0) target = $region17
  $region16: #{generator_forward.17} parent=0 // pred_region
    _
  $region17: #{generator_forward.17} parent=0 // pred_fallthru
    _
  // Predicated region
  $region18: #{generator_forward.17} parent=0 // pred_check
    _
  $region19: #{generator_forward.17} parent=0 // pred_check_branch
    %147 = sbr.rel (0) target = $region21
  $region20: #{generator_forward.17} parent=0 // pred_region
    _
  $region21: #{generator_forward.17} parent=0 // pred_fallthru
    _

// kernel: generator_forward.18
$region0: #{generator_forward.18}
  #allocation0 [shape = 'u32[]', space=smem, size = 0x4, offset = 0x4, fixed_abs, tag = 'smem constant byte address 0x4 - core index']
  #allocation1 [shape = 'u32[144,128]{1,0:T(1,128)}', space=vmem, size = 0x12000, scoped, tag = 'internal scratch']
  %s0 = inlined_call_operand.vmem [shape: bf16[8,216], index: 0, kind: input, shape index: {}]
  %s1 = inlined_call_operand.vmem [shape: bf16[216,256], index: 1, kind: input, shape index: {}]
  %s2 = inlined_call_operand.vmem [shape: f32[8,1], index: 2, kind: input, shape index: {}]
  %s3 = inlined_call_operand.vmem [shape: f32[8,256], index: 3, kind: output, shape index: {}]
  %s4 = sld [smem:[#allocation0]]
  $region22: #{generator_forward.18} parent=0
    _
  %s6 = ssub.s32 1, %s4
  %s7 = scalar_select 0, %s6, %s4
  // Predicated region
  $region2: #{generator_forward.18} parent=0 // pred_check
    _
  $region3: #{generator_forward.18} parent=0 // pred_check_branch
    %9 = sbr.rel (0) target = $region5
  $region4: #{generator_forward.18} parent=0 // pred_region
    _
  $region5: #{generator_forward.18} parent=0 // pred_fallthru
    _
  // Predicated region
  $region6: #{generator_forward.18} parent=0 // pred_check
    _
  $region7: #{generator_forward.18} parent=0 // pred_check_branch
    %11 = sbr.rel (0) target = $region9
  $region8: #{generator_forward.18} parent=0 // pred_region
    _
  $region9: #{generator_forward.18} parent=0 // pred_fallthru
    _
  // Predicated region
  $region10: #{generator_forward.18} parent=0 // pred_check
    _
  $region11: #{generator_forward.18} parent=0 // pred_check_branch
    %13 = sbr.rel (0) target = $region13
  $region12: #{generator_forward.18} parent=0 // pred_region
    _
  $region13: #{generator_forward.18} parent=0 // pred_fallthru
    _
  %v15 = vld [vmem:[%s0] sm:$0xff]
  %v16 = vld [vmem:[%s1] sm:$0xff]
  %v17 = vld [vmem:[%s1 + $0x8] sm:$0xff]
  %v18 = vld [vmem:[%s1 + $0x10] sm:$0xff]
  %v19 = vld [vmem:[%s1 + $0x18] sm:$0xff]
  %v20 = vld [vmem:[%s1 + $0x20] sm:$0xff]
  %v21 = vld [vmem:[%s1 + $0x28] sm:$0xff]
  %v22 = vld [vmem:[%s1 + $0x30] sm:$0xff]
  %v23 = vld [vmem:[%s1 + $0x38] sm:$0xff]
  %v24 = vld [vmem:[%s1 + $0x40] sm:$0xff]
  %v25 = vld [vmem:[%s1 + $0x48] sm:$0xff]
  %v26 = vld [vmem:[%s1 + $0x50] sm:$0xff]
  %v27 = vld [vmem:[%s1 + $0x58] sm:$0xff]
  %v28 = vld [vmem:[%s1 + $0x60] sm:$0xff]
  %v29 = vld [vmem:[%s1 + $0x68] sm:$0xff]
  %v30 = vld [vmem:[%s1 + $0x70] sm:$0xff]
  %v31 = vld [vmem:[%s1 + $0x78] sm:$0xff]
  %v32 = vld [vmem:[%s1 + $0x80] sm:$0xff]
  %v33 = vld [vmem:[%s1 + $0x88] sm:$0xff]
  %v34 = vld [vmem:[%s1 + $0x90] sm:$0xff]
  %v35 = vld [vmem:[%s1 + $0x98] sm:$0xff]
  %v36 = vld [vmem:[%s1 + $0xa0] sm:$0xff]
  %v37 = vld [vmem:[%s1 + $0xa8] sm:$0xff]
  %v38 = vld [vmem:[%s1 + $0xb0] sm:$0xff]
  %v39 = vld [vmem:[%s1 + $0xb8] sm:$0xff]
  %v40 = vld [vmem:[%s1 + $0xc0] sm:$0xff]
  %v41 = vld [vmem:[%s1 + $0xc8] sm:$0xff]
  %v42 = vld [vmem:[%s1 + $0xd0] sm:$0xff]
  %v43 = vld [vmem:[%s2] sm:$0xff]
  %45 = vset.pattern.permute.xlu0 0
  %46 = vperm.xlu0 %45, %v43
  %v47 = vpop.permute.xlu0 %46
  %v50 = vunpack.c.l.b16 %v15
  %v51 = vunpack.c.h.b16 %v15
  %v52 = vpack.c.b16 %v50, %v50
  %v53 = vpack.c.b16 %v51, %v51
  %v82 = vunpack.c.l.b16 %v16
  %v83 = vunpack.c.h.b16 %v16
  %v84 = vunpack.c.l.b16 %v17
  %v85 = vunpack.c.h.b16 %v17
  %v86 = vunpack.c.l.b16 %v18
  %v87 = vunpack.c.h.b16 %v18
  %v88 = vunpack.c.l.b16 %v19
  %v89 = vunpack.c.h.b16 %v19
  %v90 = vunpack.c.l.b16 %v20
  %v91 = vunpack.c.h.b16 %v20
  %v92 = vunpack.c.l.b16 %v21
  %v93 = vunpack.c.h.b16 %v21
  %v94 = vunpack.c.l.b16 %v22
  %v95 = vunpack.c.h.b16 %v22
  %v96 = vunpack.c.l.b16 %v23
  %v97 = vunpack.c.h.b16 %v23
  %v98 = vunpack.c.l.b16 %v24
  %v99 = vunpack.c.h.b16 %v24
  %v100 = vunpack.c.l.b16 %v25
  %v101 = vunpack.c.h.b16 %v25
  %v102 = vunpack.c.l.b16 %v26
  %v103 = vunpack.c.h.b16 %v26
  %v104 = vunpack.c.l.b16 %v27
  %v105 = vunpack.c.h.b16 %v27
  %v106 = vunpack.c.l.b16 %v28
  %v107 = vunpack.c.h.b16 %v28
  %v108 = vunpack.c.l.b16 %v29
  %v109 = vunpack.c.h.b16 %v29
  %v110 = vunpack.c.l.b16 %v30
  %v111 = vunpack.c.h.b16 %v30
  %v112 = vunpack.c.l.b16 %v31
  %v113 = vunpack.c.h.b16 %v31
  %v114 = vunpack.c.l.b16 %v32
  %v115 = vunpack.c.h.b16 %v32
  %v116 = vunpack.c.l.b16 %v33
  %v117 = vunpack.c.h.b16 %v33
  %v118 = vunpack.c.l.b16 %v34
  %v119 = vunpack.c.h.b16 %v34
  %v120 = vunpack.c.l.b16 %v35
  %v121 = vunpack.c.h.b16 %v35
  %v122 = vunpack.c.l.b16 %v36
  %v123 = vunpack.c.h.b16 %v36
  %v124 = vunpack.c.l.b16 %v37
  %v125 = vunpack.c.h.b16 %v37
  %v126 = vunpack.c.l.b16 %v38
  %v127 = vunpack.c.h.b16 %v38
  %v128 = vunpack.c.l.b16 %v39
  %v129 = vunpack.c.h.b16 %v39
  %v130 = vunpack.c.l.b16 %v40
  %v131 = vunpack.c.h.b16 %v40
  %v132 = vunpack.c.l.b16 %v41
  %v133 = vunpack.c.h.b16 %v41
  %v134 = vunpack.c.l.b16 %v42
  %v135 = vunpack.c.h.b16 %v42
  %v136 = vpack.c.b16 %v84, %v82
  %v137 = vpack.c.b16 %v85, %v83
  %v138 = vpack.c.b16 %v88, %v86
  %v139 = vpack.c.b16 %v89, %v87
  %v140 = vpack.c.b16 %v92, %v90
  %v141 = vpack.c.b16 %v93, %v91
  %v142 = vpack.c.b16 %v96, %v94
  %v143 = vpack.c.b16 %v97, %v95
  %v144 = vpack.c.b16 %v100, %v98
  %v145 = vpack.c.b16 %v101, %v99
  %v146 = vpack.c.b16 %v104, %v102
  %v147 = vpack.c.b16 %v105, %v103
  %v148 = vpack.c.b16 %v108, %v106
  %v149 = vpack.c.b16 %v109, %v107
  %v150 = vpack.c.b16 %v112, %v110
  %v151 = vpack.c.b16 %v113, %v111
  %v152 = vpack.c.b16 %v116, %v114
  %v153 = vpack.c.b16 %v117, %v115
  %v154 = vpack.c.b16 %v120, %v118
  %v155 = vpack.c.b16 %v121, %v119
  %v156 = vpack.c.b16 %v124, %v122
  %v157 = vpack.c.b16 %v125, %v123
  %v158 = vpack.c.b16 %v128, %v126
  %v159 = vpack.c.b16 %v129, %v127
  %v160 = vpack.c.b16 %v132, %v130
  %v161 = vpack.c.b16 %v133, %v131
  %v162 = vpack.c.b16 %v134, %v134
  %v163 = vpack.c.b16 %v135, %v135
  %vm190 = vcmask 719872
  %v192 = vsel %vm190, %v53, 0
  %vm194 = vcmask 1043456
  %v196 = vsel %vm194, %v162, 0
  %v199 = vsel %vm194, %v163, 0
  %201 = vmatprep.subr.bf16.mxu0 %v137
  %202 = vmatpush1.bf16.msra.mxu0 %v136
  %203 = vmatprep.subr.bf16.mxu0 %v139
  %204 = vmatpush1.bf16.msra.mxu0 %v138
  %205 = vmatprep.subr.bf16.mxu0 %v141
  %206 = vmatpush1.bf16.msra.mxu0 %v140
  %207 = vmatprep.subr.bf16.mxu0 %v143
  %208 = vmatpush1.bf16.msra.mxu0 %v142
  %209 = vmatprep.subr.bf16.mxu0 %v145
  %210 = vmatpush1.bf16.msra.mxu0 %v144
  %211 = vmatprep.subr.bf16.mxu0 %v147
  %212 = vmatpush1.bf16.msra.mxu0 %v146
  %213 = vmatprep.subr.bf16.mxu0 %v149
  %214 = vmatpush1.bf16.msra.mxu0 %v148
  %215 = vmatprep.subr.bf16.mxu0 %v151
  %216 = vmatpush1.bf16.msra.mxu0 %v150
  %217 = vmatprep.subr.bf16.mxu0 %v153
  %218 = vmatpush1.bf16.msra.mxu0 %v152
  %219 = vmatprep.subr.bf16.mxu0 %v155
  %220 = vmatpush1.bf16.msra.mxu0 %v154
  %221 = vmatprep.subr.bf16.mxu0 %v157
  %222 = vmatpush1.bf16.msra.mxu0 %v156
  %223 = vmatprep.subr.bf16.mxu0 %v159
  %224 = vmatpush1.bf16.msra.mxu0 %v158
  %225 = vmatprep.subr.bf16.mxu0 %v161
  %226 = vmatpush1.bf16.msra.mxu0 %v160
  %227 = vmatprep.subr.bf16.mxu0 %v199
  %228 = vmatpush1.bf16.msra.mxu0 %v196
  %229 = vmatprep.subr.bf16.mxu0 0
  %230 = vmatpush1.bf16.msra.mxu0 0
  %231 = vmatprep.subr.bf16.mxu0 0
  %232 = vmatpush1.bf16.msra.mxu0 0
  %233 = vmatprep.mubr.bf16.mxu0 %v192
  %234 = vmatmul.mubr.bf16.gmra.mrb[0].mxu0 %v52
  %v235 = vpop.f32.mrb[0].mxu0
  %v236 = vadd.f32 %v47, %v235
  %v237 = vpop.f32.mrb[0].mxu0
  %v238 = vadd.f32 %v47, %v237
  %v239 = vpop.f32.mrb[0].mxu0
  %v240 = vpop.f32.mrb[0].mxu0
  %241 = vdwg.mxu0
  %vm242 = vcmp.ge.f32.partialorder %v236, 0.0
  %vm243 = vcmp.ge.f32.partialorder %v238, 0.0
  %v244 = vmul.f32 %v236, 0.2
  %v245 = vmul.f32 %v238, 0.2
  %v246 = vsel %vm242, %v236, %v244
  %v247 = vsel %vm243, %v238, %v245
  %248 = vst [vmem:[%s3] sm:$0xff] %v246
  %249 = vst [vmem:[%s3 + $0x8] sm:$0xff] %v247
  // Predicated region
  $region14: #{generator_forward.18} parent=0 // pred_check
    _
  $region15: #{generator_forward.18} parent=0 // pred_check_branch
    %251 = sbr.rel (0) target = $region17
  $region16: #{generator_forward.18} parent=0 // pred_region
    _
  $region17: #{generator_forward.18} parent=0 // pred_fallthru
    _
  // Predicated region
  $region18: #{generator_forward.18} parent=0 // pred_check
    _
  $region19: #{generator_forward.18} parent=0 // pred_check_branch
    %253 = sbr.rel (0) target = $region21
  $region20: #{generator_forward.18} parent=0 // pred_region
    _
  $region21: #{generator_forward.18} parent=0 // pred_fallthru
    _

// kernel: generator_forward.20
$region0: #{generator_forward.20}
  #allocation0 [shape = 'u32[]', space=smem, size = 0x4, offset = 0x4, fixed_abs, tag = 'smem constant byte address 0x4 - core index']
  #allocation1 [shape = 'u32[144,128]{1,0:T(1,128)}', space=vmem, size = 0x12000, scoped, tag = 'internal scratch']
  %s0 = inlined_call_operand.vmem [shape: bf16[8,24], index: 0, kind: input, shape index: {}]
  %s1 = inlined_call_operand.vmem [shape: bf16[24,256], index: 1, kind: input, shape index: {}]
  %s2 = inlined_call_operand.vmem [shape: f32[8,1], index: 2, kind: input, shape index: {}]
  %s3 = inlined_call_operand.vmem [shape: f32[8,256], index: 3, kind: output, shape index: {}]
  %s4 = sld [smem:[#allocation0]]
  $region22: #{generator_forward.20} parent=0
    _
  %s6 = ssub.s32 1, %s4
  %s7 = scalar_select 0, %s6, %s4
  // Predicated region
  $region2: #{generator_forward.20} parent=0 // pred_check
    _
  $region3: #{generator_forward.20} parent=0 // pred_check_branch
    %9 = sbr.rel (0) target = $region5
  $region4: #{generator_forward.20} parent=0 // pred_region
    _
  $region5: #{generator_forward.20} parent=0 // pred_fallthru
    _
  // Predicated region
  $region6: #{generator_forward.20} parent=0 // pred_check
    _
  $region7: #{generator_forward.20} parent=0 // pred_check_branch
    %11 = sbr.rel (0) target = $region9
  $region8: #{generator_forward.20} parent=0 // pred_region
    _
  $region9: #{generator_forward.20} parent=0 // pred_fallthru
    _
  // Predicated region
  $region10: #{generator_forward.20} parent=0 // pred_check
    _
  $region11: #{generator_forward.20} parent=0 // pred_check_branch
    %13 = sbr.rel (0) target = $region13
  $region12: #{generator_forward.20} parent=0 // pred_region
    _
  $region13: #{generator_forward.20} parent=0 // pred_fallthru
    _
  %v15 = vld [vmem:[%s0] sm:$0xf]
  %v16 = vld [vmem:[%s1] sm:$0xff]
  %v17 = vld [vmem:[%s1 + $0x8] sm:$0xff]
  %v18 = vld [vmem:[%s1 + $0x10] sm:$0xff]
  %v19 = vld [vmem:[%s2] sm:$0xff]
  %21 = vset.pattern.permute.xlu0 0
  %22 = vperm.xlu0 %21, %v19
  %v23 = vpop.permute.xlu0 %22
  %v28 = vunpack.c.l.b16 %v16
  %v29 = vunpack.c.h.b16 %v16
  %v30 = vunpack.c.l.b16 %v17
  %v31 = vunpack.c.h.b16 %v17
  %v32 = vunpack.c.l.b16 %v18
  %v33 = vunpack.c.h.b16 %v18
  %v34 = vpack.c.b16 %v30, %v28
  %v35 = vpack.c.b16 %v31, %v29
  %v36 = vpack.c.b16 %v32, %v32
  %v37 = vpack.c.b16 %v33, %v33
  %vm40 = vcmask 195584
  %v42 = vsel %vm40, %v15, 0
  %vm44 = vcmask 1043456
  %v46 = vsel %vm44, %v36, 0
  %v49 = vsel %vm44, %v37, 0
  %51 = vmatprep.subr.bf16.mxu0 %v35
  %52 = vmatpush1.bf16.msra.mxu0 %v34
  %53 = vmatprep.subr.bf16.mxu0 %v49
  %54 = vmatpush1.bf16.msra.mxu0 %v46
  %55 = vmatprep.subr.bf16.mxu0 0
  %56 = vmatpush1.bf16.msra.mxu0 0
  %57 = vmatprep.subr.bf16.mxu0 0
  %58 = vmatpush1.bf16.msra.mxu0 0
  %59 = vmatprep.subr.bf16.mxu0 0
  %60 = vmatpush1.bf16.msra.mxu0 0
  %61 = vmatprep.subr.bf16.mxu0 0
  %62 = vmatpush1.bf16.msra.mxu0 0
  %63 = vmatprep.subr.bf16.mxu0 0
  %64 = vmatpush1.bf16.msra.mxu0 0
  %65 = vmatprep.subr.bf16.mxu0 0
  %66 = vmatpush1.bf16.msra.mxu0 0
  %67 = vmatprep.subr.bf16.mxu0 0
  %68 = vmatpush1.bf16.msra.mxu0 0
  %69 = vmatprep.subr.bf16.mxu0 0
  %70 = vmatpush1.bf16.msra.mxu0 0
  %71 = vmatprep.subr.bf16.mxu0 0
  %72 = vmatpush1.bf16.msra.mxu0 0
  %73 = vmatprep.subr.bf16.mxu0 0
  %74 = vmatpush1.bf16.msra.mxu0 0
  %75 = vmatprep.subr.bf16.mxu0 0
  %76 = vmatpush1.bf16.msra.mxu0 0
  %77 = vmatprep.subr.bf16.mxu0 0
  %78 = vmatpush1.bf16.msra.mxu0 0
  %79 = vmatprep.subr.bf16.mxu0 0
  %80 = vmatpush1.bf16.msra.mxu0 0
  %81 = vmatprep.subr.bf16.mxu0 0
  %82 = vmatpush1.bf16.msra.mxu0 0
  %83 = vmatprep.mubr.bf16.mxu0 0
  %84 = vmatmul.mubr.bf16.gmra.mrb[0].mxu0 %v42
  %v85 = vpop.f32.mrb[0].mxu0
  %v86 = vadd.f32 %v23, %v85
  %v87 = vpop.f32.mrb[0].mxu0
  %v88 = vadd.f32 %v23, %v87
  %v89 = vpop.f32.mrb[0].mxu0
  %v90 = vpop.f32.mrb[0].mxu0
  %91 = vdwg.mxu0
  %92 = vst [vmem:[%s3] sm:$0xff] %v86
  %93 = vst [vmem:[%s3 + $0x8] sm:$0xff] %v88
  // Predicated region
  $region14: #{generator_forward.20} parent=0 // pred_check
    _
  $region15: #{generator_forward.20} parent=0 // pred_check_branch
    %95 = sbr.rel (0) target = $region17
  $region16: #{generator_forward.20} parent=0 // pred_region
    _
  $region17: #{generator_forward.20} parent=0 // pred_fallthru
    _
  // Predicated region
  $region18: #{generator_forward.20} parent=0 // pred_check
    _
  $region19: #{generator_forward.20} parent=0 // pred_check_branch
    %97 = sbr.rel (0) target = $region21
  $region20: #{generator_forward.20} parent=0 // pred_region
    _
  $region21: #{generator_forward.20} parent=0 // pred_fallthru
    _

// kernel: generator_forward.19
$region0: #{generator_forward.19}
  #allocation0 [shape = 'u32[]', space=smem, size = 0x4, offset = 0x4, fixed_abs, tag = 'smem constant byte address 0x4 - core index']
  #allocation1 [shape = 'u32[144,128]{1,0:T(1,128)}', space=vmem, size = 0x12000, scoped, tag = 'internal scratch']
  %s0 = inlined_call_operand.vmem [shape: bf16[8,432], index: 0, kind: input, shape index: {}]
  %s1 = inlined_call_operand.vmem [shape: bf16[432,256], index: 1, kind: input, shape index: {}]
  %s2 = inlined_call_operand.vmem [shape: f32[8,1], index: 2, kind: input, shape index: {}]
  %s3 = inlined_call_operand.vmem [shape: f32[8,256], index: 3, kind: output, shape index: {}]
  %s4 = sld [smem:[#allocation0]]
  $region22: #{generator_forward.19} parent=0
    _
  %s6 = ssub.s32 1, %s4
  %s7 = scalar_select 0, %s6, %s4
  // Predicated region
  $region2: #{generator_forward.19} parent=0 // pred_check
    _
  $region3: #{generator_forward.19} parent=0 // pred_check_branch
    %9 = sbr.rel (0) target = $region5
  $region4: #{generator_forward.19} parent=0 // pred_region
    _
  $region5: #{generator_forward.19} parent=0 // pred_fallthru
    _
  // Predicated region
  $region6: #{generator_forward.19} parent=0 // pred_check
    _
  $region7: #{generator_forward.19} parent=0 // pred_check_branch
    %11 = sbr.rel (0) target = $region9
  $region8: #{generator_forward.19} parent=0 // pred_region
    _
  $region9: #{generator_forward.19} parent=0 // pred_fallthru
    _
  // Predicated region
  $region10: #{generator_forward.19} parent=0 // pred_check
    _
  $region11: #{generator_forward.19} parent=0 // pred_check_branch
    %13 = sbr.rel (0) target = $region13
  $region12: #{generator_forward.19} parent=0 // pred_region
    _
  $region13: #{generator_forward.19} parent=0 // pred_fallthru
    _
  %v15 = vld [vmem:[%s0] sm:$0xff]
  %v16 = vld [vmem:[%s0 + $0x8] sm:$0xff]
  %v17 = vld [vmem:[%s1] sm:$0xff]
  %v18 = vld [vmem:[%s1 + $0x8] sm:$0xff]
  %v19 = vld [vmem:[%s1 + $0x10] sm:$0xff]
  %v20 = vld [vmem:[%s1 + $0x18] sm:$0xff]
  %v21 = vld [vmem:[%s1 + $0x20] sm:$0xff]
  %v22 = vld [vmem:[%s1 + $0x28] sm:$0xff]
  %v23 = vld [vmem:[%s1 + $0x30] sm:$0xff]
  %v24 = vld [vmem:[%s1 + $0x38] sm:$0xff]
  %v25 = vld [vmem:[%s1 + $0x40] sm:$0xff]
  %v26 = vld [vmem:[%s1 + $0x48] sm:$0xff]
  %v27 = vld [vmem:[%s1 + $0x50] sm:$0xff]
  %v28 = vld [vmem:[%s1 + $0x58] sm:$0xff]
  %v29 = vld [vmem:[%s1 + $0x60] sm:$0xff]
  %v30 = vld [vmem:[%s1 + $0x68] sm:$0xff]
  %v31 = vld [vmem:[%s1 + $0x70] sm:$0xff]
  %v32 = vld [vmem:[%s1 + $0x78] sm:$0xff]
  %v33 = vld [vmem:[%s1 + $0x80] sm:$0xff]
  %v34 = vld [vmem:[%s1 + $0x88] sm:$0xff]
  %v35 = vld [vmem:[%s1 + $0x90] sm:$0xff]
  %v36 = vld [vmem:[%s1 + $0x98] sm:$0xff]
  %v37 = vld [vmem:[%s1 + $0xa0] sm:$0xff]
  %v38 = vld [vmem:[%s1 + $0xa8] sm:$0xff]
  %v39 = vld [vmem:[%s1 + $0xb0] sm:$0xff]
  %v40 = vld [vmem:[%s1 + $0xb8] sm:$0xff]
  %v41 = vld [vmem:[%s1 + $0xc0] sm:$0xff]
  %v42 = vld [vmem:[%s1 + $0xc8] sm:$0xff]
  %v43 = vld [vmem:[%s1 + $0xd0] sm:$0xff]
  %v44 = vld [vmem:[%s1 + $0xd8] sm:$0xff]
  %v45 = vld [vmem:[%s1 + $0xe0] sm:$0xff]
  %v46 = vld [vmem:[%s1 + $0xe8] sm:$0xff]
  %v47 = vld [vmem:[%s1 + $0xf0] sm:$0xff]
  %v48 = vld [vmem:[%s1 + $0xf8] sm:$0xff]
  %v49 = vld [vmem:[%s1 + $0x100] sm:$0xff]
  %v50 = vld [vmem:[%s1 + $0x108] sm:$0xff]
  %v51 = vld [vmem:[%s1 + $0x110] sm:$0xff]
  %v52 = vld [vmem:[%s1 + $0x118] sm:$0xff]
  %v53 = vld [vmem:[%s1 + $0x120] sm:$0xff]
  %v54 = vld [vmem:[%s1 + $0x128] sm:$0xff]
  %v55 = vld [vmem:[%s1 + $0x130] sm:$0xff]
  %v56 = vld [vmem:[%s1 + $0x138] sm:$0xff]
  %v57 = vld [vmem:[%s1 + $0x140] sm:$0xff]
  %v58 = vld [vmem:[%s1 + $0x148] sm:$0xff]
  %v59 = vld [vmem:[%s1 + $0x150] sm:$0xff]
  %v60 = vld [vmem:[%s1 + $0x158] sm:$0xff]
  %v61 = vld [vmem:[%s1 + $0x160] sm:$0xff]
  %v62 = vld [vmem:[%s1 + $0x168] sm:$0xff]
  %v63 = vld [vmem:[%s1 + $0x170] sm:$0xff]
  %v64 = vld [vmem:[%s1 + $0x178] sm:$0xff]
  %v65 = vld [vmem:[%s1 + $0x180] sm:$0xff]
  %v66 = vld [vmem:[%s1 + $0x188] sm:$0xff]
  %v67 = vld [vmem:[%s1 + $0x190] sm:$0xff]
  %v68 = vld [vmem:[%s1 + $0x198] sm:$0xff]
  %v69 = vld [vmem:[%s1 + $0x1a0] sm:$0xff]
  %v70 = vld [vmem:[%s1 + $0x1a8] sm:$0xff]
  %v71 = vld [vmem:[%s2] sm:$0xff]
  %73 = vset.pattern.permute.xlu0 0
  %74 = vperm.xlu0 %73, %v71
  %v75 = vpop.permute.xlu0 %74
  %v79 = vunpack.c.l.b16 %v15
  %v80 = vunpack.c.h.b16 %v15
  %v81 = vunpack.c.l.b16 %v16
  %v82 = vunpack.c.h.b16 %v16
  %v83 = vpack.c.b16 %v79, %v79
  %v84 = vpack.c.b16 %v80, %v80
  %v85 = vpack.c.b16 %v81, %v81
  %v86 = vpack.c.b16 %v82, %v82
  %v144 = vunpack.c.l.b16 %v17
  %v145 = vunpack.c.h.b16 %v17
  %v146 = vunpack.c.l.b16 %v18
  %v147 = vunpack.c.h.b16 %v18
  %v148 = vunpack.c.l.b16 %v19
  %v149 = vunpack.c.h.b16 %v19
  %v150 = vunpack.c.l.b16 %v20
  %v151 = vunpack.c.h.b16 %v20
  %v152 = vunpack.c.l.b16 %v21
  %v153 = vunpack.c.h.b16 %v21
  %v154 = vunpack.c.l.b16 %v22
  %v155 = vunpack.c.h.b16 %v22
  %v156 = vunpack.c.l.b16 %v23
  %v157 = vunpack.c.h.b16 %v23
  %v158 = vunpack.c.l.b16 %v24
  %v159 = vunpack.c.h.b16 %v24
  %v160 = vunpack.c.l.b16 %v25
  %v161 = vunpack.c.h.b16 %v25
  %v162 = vunpack.c.l.b16 %v26
  %v163 = vunpack.c.h.b16 %v26
  %v164 = vunpack.c.l.b16 %v27
  %v165 = vunpack.c.h.b16 %v27
  %v166 = vunpack.c.l.b16 %v28
  %v167 = vunpack.c.h.b16 %v28
  %v168 = vunpack.c.l.b16 %v29
  %v169 = vunpack.c.h.b16 %v29
  %v170 = vunpack.c.l.b16 %v30
  %v171 = vunpack.c.h.b16 %v30
  %v172 = vunpack.c.l.b16 %v31
  %v173 = vunpack.c.h.b16 %v31
  %v174 = vunpack.c.l.b16 %v32
  %v175 = vunpack.c.h.b16 %v32
  %v176 = vunpack.c.l.b16 %v33
  %v177 = vunpack.c.h.b16 %v33
  %v178 = vunpack.c.l.b16 %v34
  %v179 = vunpack.c.h.b16 %v34
  %v180 = vunpack.c.l.b16 %v35
  %v181 = vunpack.c.h.b16 %v35
  %v182 = vunpack.c.l.b16 %v36
  %v183 = vunpack.c.h.b16 %v36
  %v184 = vunpack.c.l.b16 %v37
  %v185 = vunpack.c.h.b16 %v37
  %v186 = vunpack.c.l.b16 %v38
  %v187 = vunpack.c.h.b16 %v38
  %v188 = vunpack.c.l.b16 %v39
  %v189 = vunpack.c.h.b16 %v39
  %v190 = vunpack.c.l.b16 %v40
  %v191 = vunpack.c.h.b16 %v40
  %v192 = vunpack.c.l.b16 %v41
  %v193 = vunpack.c.h.b16 %v41
  %v194 = vunpack.c.l.b16 %v42
  %v195 = vunpack.c.h.b16 %v42
  %v196 = vunpack.c.l.b16 %v43
  %v197 = vunpack.c.h.b16 %v43
  %v198 = vunpack.c.l.b16 %v44
  %v199 = vunpack.c.h.b16 %v44
  %v200 = vunpack.c.l.b16 %v45
  %v201 = vunpack.c.h.b16 %v45
  %v202 = vunpack.c.l.b16 %v46
  %v203 = vunpack.c.h.b16 %v46
  %v204 = vunpack.c.l.b16 %v47
  %v205 = vunpack.c.h.b16 %v47
  %v206 = vunpack.c.l.b16 %v48
  %v207 = vunpack.c.h.b16 %v48
  %v208 = vunpack.c.l.b16 %v49
  %v209 = vunpack.c.h.b16 %v49
  %v210 = vunpack.c.l.b16 %v50
  %v211 = vunpack.c.h.b16 %v50
  %v212 = vunpack.c.l.b16 %v51
  %v213 = vunpack.c.h.b16 %v51
  %v214 = vunpack.c.l.b16 %v52
  %v215 = vunpack.c.h.b16 %v52
  %v216 = vunpack.c.l.b16 %v53
  %v217 = vunpack.c.h.b16 %v53
  %v218 = vunpack.c.l.b16 %v54
  %v219 = vunpack.c.h.b16 %v54
  %v220 = vunpack.c.l.b16 %v55
  %v221 = vunpack.c.h.b16 %v55
  %v222 = vunpack.c.l.b16 %v56
  %v223 = vunpack.c.h.b16 %v56
  %v224 = vunpack.c.l.b16 %v57
  %v225 = vunpack.c.h.b16 %v57
  %v226 = vunpack.c.l.b16 %v58
  %v227 = vunpack.c.h.b16 %v58
  %v228 = vunpack.c.l.b16 %v59
  %v229 = vunpack.c.h.b16 %v59
  %v230 = vunpack.c.l.b16 %v60
  %v231 = vunpack.c.h.b16 %v60
  %v232 = vunpack.c.l.b16 %v61
  %v233 = vunpack.c.h.b16 %v61
  %v234 = vunpack.c.l.b16 %v62
  %v235 = vunpack.c.h.b16 %v62
  %v236 = vunpack.c.l.b16 %v63
  %v237 = vunpack.c.h.b16 %v63
  %v238 = vunpack.c.l.b16 %v64
  %v239 = vunpack.c.h.b16 %v64
  %v240 = vunpack.c.l.b16 %v65
  %v241 = vunpack.c.h.b16 %v65
  %v242 = vunpack.c.l.b16 %v66
  %v243 = vunpack.c.h.b16 %v66
  %v244 = vunpack.c.l.b16 %v67
  %v245 = vunpack.c.h.b16 %v67
  %v246 = vunpack.c.l.b16 %v68
  %v247 = vunpack.c.h.b16 %v68
  %v248 = vunpack.c.l.b16 %v69
  %v249 = vunpack.c.h.b16 %v69
  %v250 = vunpack.c.l.b16 %v70
  %v251 = vunpack.c.h.b16 %v70
  %v252 = vpack.c.b16 %v146, %v144
  %v253 = vpack.c.b16 %v147, %v145
  %v254 = vpack.c.b16 %v150, %v148
  %v255 = vpack.c.b16 %v151, %v149
  %v256 = vpack.c.b16 %v154, %v152
  %v257 = vpack.c.b16 %v155, %v153
  %v258 = vpack.c.b16 %v158, %v156
  %v259 = vpack.c.b16 %v159, %v157
  %v260 = vpack.c.b16 %v162, %v160
  %v261 = vpack.c.b16 %v163, %v161
  %v262 = vpack.c.b16 %v166, %v164
  %v263 = vpack.c.b16 %v167, %v165
  %v264 = vpack.c.b16 %v170, %v168
  %v265 = vpack.c.b16 %v171, %v169
  %v266 = vpack.c.b16 %v174, %v172
  %v267 = vpack.c.b16 %v175, %v173
  %v268 = vpack.c.b16 %v178, %v176
  %v269 = vpack.c.b16 %v179, %v177
  %v270 = vpack.c.b16 %v182, %v180
  %v271 = vpack.c.b16 %v183, %v181
  %v272 = vpack.c.b16 %v186, %v184
  %v273 = vpack.c.b16 %v187, %v185
  %v274 = vpack.c.b16 %v190, %v188
  %v275 = vpack.c.b16 %v191, %v189
  %v276 = vpack.c.b16 %v194, %v192
  %v277 = vpack.c.b16 %v195, %v193
  %v278 = vpack.c.b16 %v198, %v196
  %v279 = vpack.c.b16 %v199, %v197
  %v280 = vpack.c.b16 %v202, %v200
  %v281 = vpack.c.b16 %v203, %v201
  %v282 = vpack.c.b16 %v206, %v204
  %v283 = vpack.c.b16 %v207, %v205
  %v284 = vpack.c.b16 %v210, %v208
  %v285 = vpack.c.b16 %v211, %v209
  %v286 = vpack.c.b16 %v214, %v212
  %v287 = vpack.c.b16 %v215, %v213
  %v288 = vpack.c.b16 %v218, %v216
  %v289 = vpack.c.b16 %v219, %v217
  %v290 = vpack.c.b16 %v222, %v220
  %v291 = vpack.c.b16 %v223, %v221
  %v292 = vpack.c.b16 %v226, %v224
  %v293 = vpack.c.b16 %v227, %v225
  %v294 = vpack.c.b16 %v230, %v228
  %v295 = vpack.c.b16 %v231, %v229
  %v296 = vpack.c.b16 %v234, %v232
  %v297 = vpack.c.b16 %v235, %v233
  %v298 = vpack.c.b16 %v238, %v236
  %v299 = vpack.c.b16 %v239, %v237
  %v300 = vpack.c.b16 %v242, %v240
  %v301 = vpack.c.b16 %v243, %v241
  %v302 = vpack.c.b16 %v246, %v244
  %v303 = vpack.c.b16 %v247, %v245
  %v304 = vpack.c.b16 %v250, %v248
  %v305 = vpack.c.b16 %v251, %v249
  %vm360 = vcmask 392192
  %v362 = vsel %vm360, %v86, 0
  %364 = vmatprep.subr.bf16.mxu0 %v253
  %365 = vmatpush1.bf16.msra.mxu0 %v252
  %366 = vmatprep.subr.bf16.mxu0 %v255
  %367 = vmatpush1.bf16.msra.mxu0 %v254
  %368 = vmatprep.subr.bf16.mxu0 %v257
  %369 = vmatpush1.bf16.msra.mxu0 %v256
  %370 = vmatprep.subr.bf16.mxu0 %v259
  %371 = vmatpush1.bf16.msra.mxu0 %v258
  %372 = vmatprep.subr.bf16.mxu0 %v261
  %373 = vmatpush1.bf16.msra.mxu0 %v260
  %374 = vmatprep.subr.bf16.mxu0 %v263
  %375 = vmatpush1.bf16.msra.mxu0 %v262
  %376 = vmatprep.subr.bf16.mxu0 %v265
  %377 = vmatpush1.bf16.msra.mxu0 %v264
  %378 = vmatprep.subr.bf16.mxu0 %v267
  %379 = vmatpush1.bf16.msra.mxu0 %v266
  %380 = vmatprep.subr.bf16.mxu0 %v269
  %381 = vmatpush1.bf16.msra.mxu0 %v268
  %382 = vmatprep.subr.bf16.mxu0 %v271
  %383 = vmatpush1.bf16.msra.mxu0 %v270
  %384 = vmatprep.subr.bf16.mxu0 %v273
  %385 = vmatpush1.bf16.msra.mxu0 %v272
  %386 = vmatprep.subr.bf16.mxu0 %v275
  %387 = vmatpush1.bf16.msra.mxu0 %v274
  %388 = vmatprep.subr.bf16.mxu0 %v277
  %389 = vmatpush1.bf16.msra.mxu0 %v276
  %390 = vmatprep.subr.bf16.mxu0 %v279
  %391 = vmatpush1.bf16.msra.mxu0 %v278
  %392 = vmatprep.subr.bf16.mxu0 %v281
  %393 = vmatpush1.bf16.msra.mxu0 %v280
  %394 = vmatprep.subr.bf16.mxu0 %v283
  %395 = vmatpush1.bf16.msra.mxu0 %v282
  %396 = vmatprep.mubr.bf16.mxu0 %v84
  %397 = vmatmul.mubr.bf16.gmra.mrb[0].mxu0 %v83
  %v398 = vpop.f32.mrb[0].mxu0
  %v399 = vadd.f32 %v75, %v398
  %v400 = vpop.f32.mrb[0].mxu0
  %v401 = vadd.f32 %v75, %v400
  %v402 = vpop.f32.mrb[0].mxu0
  %v403 = vpop.f32.mrb[0].mxu0
  %404 = vdwg.mxu0
  %405 = vmatprep.subr.bf16.mxu0 %v285
  %406 = vmatpush1.bf16.msra.mxu0 %v284
  %407 = vmatprep.subr.bf16.mxu0 %v287
  %408 = vmatpush1.bf16.msra.mxu0 %v286
  %409 = vmatprep.subr.bf16.mxu0 %v289
  %410 = vmatpush1.bf16.msra.mxu0 %v288
  %411 = vmatprep.subr.bf16.mxu0 %v291
  %412 = vmatpush1.bf16.msra.mxu0 %v290
  %413 = vmatprep.subr.bf16.mxu0 %v293
  %414 = vmatpush1.bf16.msra.mxu0 %v292
  %415 = vmatprep.subr.bf16.mxu0 %v295
  %416 = vmatpush1.bf16.msra.mxu0 %v294
  %417 = vmatprep.subr.bf16.mxu0 %v297
  %418 = vmatpush1.bf16.msra.mxu0 %v296
  %419 = vmatprep.subr.bf16.mxu0 %v299
  %420 = vmatpush1.bf16.msra.mxu0 %v298
  %421 = vmatprep.subr.bf16.mxu0 %v301
  %422 = vmatpush1.bf16.msra.mxu0 %v300
  %423 = vmatprep.subr.bf16.mxu0 %v303
  %424 = vmatpush1.bf16.msra.mxu0 %v302
  %425 = vmatprep.subr.bf16.mxu0 %v305
  %426 = vmatpush1.bf16.msra.mxu0 %v304
  %427 = vmatprep.subr.bf16.mxu0 0
  %428 = vmatpush1.bf16.msra.mxu0 0
  %429 = vmatprep.subr.bf16.mxu0 0
  %430 = vmatpush1.bf16.msra.mxu0 0
  %431 = vmatprep.subr.bf16.mxu0 0
  %432 = vmatpush1.bf16.msra.mxu0 0
  %433 = vmatprep.subr.bf16.mxu0 0
  %434 = vmatpush1.bf16.msra.mxu0 0
  %435 = vmatprep.subr.bf16.mxu0 0
  %436 = vmatpush1.bf16.msra.mxu0 0
  %437 = vmatprep.mubr.bf16.mxu0 %v362
  %438 = vmatmul.mubr.bf16.gmra.mrb[0].mxu0 %v85
  %v439 = vpop.f32.mrb[0].mxu0
  %v440 = vadd.f32 %v399, %v439
  %v441 = vpop.f32.mrb[0].mxu0
  %v442 = vadd.f32 %v401, %v441
  %v443 = vpop.f32.mrb[0].mxu0
  %v444 = vpop.f32.mrb[0].mxu0
  %445 = vdwg.mxu0
  %vm446 = vcmp.ge.f32.partialorder %v440, 0.0
  %vm447 = vcmp.ge.f32.partialorder %v442, 0.0
  %v448 = vmul.f32 %v440, 0.2
  %v449 = vmul.f32 %v442, 0.2
  %v450 = vsel %vm446, %v440, %v448
  %v451 = vsel %vm447, %v442, %v449
  %452 = vst [vmem:[%s3] sm:$0xff] %v450
  %453 = vst [vmem:[%s3 + $0x8] sm:$0xff] %v451
  // Predicated region
  $region14: #{generator_forward.19} parent=0 // pred_check
    _
  $region15: #{generator_forward.19} parent=0 // pred_check_branch
    %455 = sbr.rel (0) target = $region17
  $region16: #{generator_forward.19} parent=0 // pred_region
    _
  $region17: #{generator_forward.19} parent=0 // pred_fallthru
    _
  // Predicated region
  $region18: #{generator_forward.19} parent=0 // pred_check
    _
  $region19: #{generator_forward.19} parent=0 // pred_check_branch
    %457 = sbr.rel (0) target = $region21
  $region20: #{generator_forward.19} parent=0 // pred_region
    _
  $region21: #{generator_forward.19} parent=0 // pred_fallthru
    _

// kernel: generator_forward.27
$region0: #{generator_forward.27}
  #allocation0 [shape = 'u32[]', space=smem, size = 0x4, offset = 0x4, fixed_abs, tag = 'smem constant byte address 0x4 - core index']
  #allocation1 [shape = 'u32[144,128]{1,0:T(1,128)}', space=vmem, size = 0x12000, scoped, tag = 'internal scratch']
  %s0 = inlined_call_operand.vmem [shape: bf16[8,216], index: 0, kind: input, shape index: {}]
  %s1 = inlined_call_operand.vmem [shape: bf16[216,256], index: 1, kind: input, shape index: {}]
  %s2 = inlined_call_operand.vmem [shape: f32[8,1], index: 2, kind: input, shape index: {}]
  %s3 = inlined_call_operand.vmem [shape: f32[8,256], index: 3, kind: output, shape index: {}]
  %s4 = sld [smem:[#allocation0]]
  $region22: #{generator_forward.27} parent=0
    _
  %s6 = ssub.s32 1, %s4
  %s7 = scalar_select 0, %s6, %s4
  // Predicated region
  $region2: #{generator_forward.27} parent=0 // pred_check
    _
  $region3: #{generator_forward.27} parent=0 // pred_check_branch
    %9 = sbr.rel (0) target = $region5
  $region4: #{generator_forward.27} parent=0 // pred_region
    _
  $region5: #{generator_forward.27} parent=0 // pred_fallthru
    _
  // Predicated region
  $region6: #{generator_forward.27} parent=0 // pred_check
    _
  $region7: #{generator_forward.27} parent=0 // pred_check_branch
    %11 = sbr.rel (0) target = $region9
  $region8: #{generator_forward.27} parent=0 // pred_region
    _
  $region9: #{generator_forward.27} parent=0 // pred_fallthru
    _
  // Predicated region
  $region10: #{generator_forward.27} parent=0 // pred_check
    _
  $region11: #{generator_forward.27} parent=0 // pred_check_branch
    %13 = sbr.rel (0) target = $region13
  $region12: #{generator_forward.27} parent=0 // pred_region
    _
  $region13: #{generator_forward.27} parent=0 // pred_fallthru
    _
  %v15 = vld [vmem:[%s0] sm:$0xff]
  %v16 = vld [vmem:[%s1] sm:$0xff]
  %v17 = vld [vmem:[%s1 + $0x8] sm:$0xff]
  %v18 = vld [vmem:[%s1 + $0x10] sm:$0xff]
  %v19 = vld [vmem:[%s1 + $0x18] sm:$0xff]
  %v20 = vld [vmem:[%s1 + $0x20] sm:$0xff]
  %v21 = vld [vmem:[%s1 + $0x28] sm:$0xff]
  %v22 = vld [vmem:[%s1 + $0x30] sm:$0xff]
  %v23 = vld [vmem:[%s1 + $0x38] sm:$0xff]
  %v24 = vld [vmem:[%s1 + $0x40] sm:$0xff]
  %v25 = vld [vmem:[%s1 + $0x48] sm:$0xff]
  %v26 = vld [vmem:[%s1 + $0x50] sm:$0xff]
  %v27 = vld [vmem:[%s1 + $0x58] sm:$0xff]
  %v28 = vld [vmem:[%s1 + $0x60] sm:$0xff]
  %v29 = vld [vmem:[%s1 + $0x68] sm:$0xff]
  %v30 = vld [vmem:[%s1 + $0x70] sm:$0xff]
  %v31 = vld [vmem:[%s1 + $0x78] sm:$0xff]
  %v32 = vld [vmem:[%s1 + $0x80] sm:$0xff]
  %v33 = vld [vmem:[%s1 + $0x88] sm:$0xff]
  %v34 = vld [vmem:[%s1 + $0x90] sm:$0xff]
  %v35 = vld [vmem:[%s1 + $0x98] sm:$0xff]
  %v36 = vld [vmem:[%s1 + $0xa0] sm:$0xff]
  %v37 = vld [vmem:[%s1 + $0xa8] sm:$0xff]
  %v38 = vld [vmem:[%s1 + $0xb0] sm:$0xff]
  %v39 = vld [vmem:[%s1 + $0xb8] sm:$0xff]
  %v40 = vld [vmem:[%s1 + $0xc0] sm:$0xff]
  %v41 = vld [vmem:[%s1 + $0xc8] sm:$0xff]
  %v42 = vld [vmem:[%s1 + $0xd0] sm:$0xff]
  %v43 = vld [vmem:[%s2] sm:$0xff]
  %45 = vset.pattern.permute.xlu0 0
  %46 = vperm.xlu0 %45, %v43
  %v47 = vpop.permute.xlu0 %46
  %v50 = vunpack.c.l.b16 %v15
  %v51 = vunpack.c.h.b16 %v15
  %v52 = vpack.c.b16 %v50, %v50
  %v53 = vpack.c.b16 %v51, %v51
  %v82 = vunpack.c.l.b16 %v16
  %v83 = vunpack.c.h.b16 %v16
  %v84 = vunpack.c.l.b16 %v17
  %v85 = vunpack.c.h.b16 %v17
  %v86 = vunpack.c.l.b16 %v18
  %v87 = vunpack.c.h.b16 %v18
  %v88 = vunpack.c.l.b16 %v19
  %v89 = vunpack.c.h.b16 %v19
  %v90 = vunpack.c.l.b16 %v20
  %v91 = vunpack.c.h.b16 %v20
  %v92 = vunpack.c.l.b16 %v21
  %v93 = vunpack.c.h.b16 %v21
  %v94 = vunpack.c.l.b16 %v22
  %v95 = vunpack.c.h.b16 %v22
  %v96 = vunpack.c.l.b16 %v23
  %v97 = vunpack.c.h.b16 %v23
  %v98 = vunpack.c.l.b16 %v24
  %v99 = vunpack.c.h.b16 %v24
  %v100 = vunpack.c.l.b16 %v25
  %v101 = vunpack.c.h.b16 %v25
  %v102 = vunpack.c.l.b16 %v26
  %v103 = vunpack.c.h.b16 %v26
  %v104 = vunpack.c.l.b16 %v27
  %v105 = vunpack.c.h.b16 %v27
  %v106 = vunpack.c.l.b16 %v28
  %v107 = vunpack.c.h.b16 %v28
  %v108 = vunpack.c.l.b16 %v29
  %v109 = vunpack.c.h.b16 %v29
  %v110 = vunpack.c.l.b16 %v30
  %v111 = vunpack.c.h.b16 %v30
  %v112 = vunpack.c.l.b16 %v31
  %v113 = vunpack.c.h.b16 %v31
  %v114 = vunpack.c.l.b16 %v32
  %v115 = vunpack.c.h.b16 %v32
  %v116 = vunpack.c.l.b16 %v33
  %v117 = vunpack.c.h.b16 %v33
  %v118 = vunpack.c.l.b16 %v34
  %v119 = vunpack.c.h.b16 %v34
  %v120 = vunpack.c.l.b16 %v35
  %v121 = vunpack.c.h.b16 %v35
  %v122 = vunpack.c.l.b16 %v36
  %v123 = vunpack.c.h.b16 %v36
  %v124 = vunpack.c.l.b16 %v37
  %v125 = vunpack.c.h.b16 %v37
  %v126 = vunpack.c.l.b16 %v38
  %v127 = vunpack.c.h.b16 %v38
  %v128 = vunpack.c.l.b16 %v39
  %v129 = vunpack.c.h.b16 %v39
  %v130 = vunpack.c.l.b16 %v40
  %v131 = vunpack.c.h.b16 %v40
  %v132 = vunpack.c.l.b16 %v41
  %v133 = vunpack.c.h.b16 %v41
  %v134 = vunpack.c.l.b16 %v42
  %v135 = vunpack.c.h.b16 %v42
  %v136 = vpack.c.b16 %v84, %v82
  %v137 = vpack.c.b16 %v85, %v83
  %v138 = vpack.c.b16 %v88, %v86
  %v139 = vpack.c.b16 %v89, %v87
  %v140 = vpack.c.b16 %v92, %v90
  %v141 = vpack.c.b16 %v93, %v91
  %v142 = vpack.c.b16 %v96, %v94
  %v143 = vpack.c.b16 %v97, %v95
  %v144 = vpack.c.b16 %v100, %v98
  %v145 = vpack.c.b16 %v101, %v99
  %v146 = vpack.c.b16 %v104, %v102
  %v147 = vpack.c.b16 %v105, %v103
  %v148 = vpack.c.b16 %v108, %v106
  %v149 = vpack.c.b16 %v109, %v107
  %v150 = vpack.c.b16 %v112, %v110
  %v151 = vpack.c.b16 %v113, %v111
  %v152 = vpack.c.b16 %v116, %v114
  %v153 = vpack.c.b16 %v117, %v115
  %v154 = vpack.c.b16 %v120, %v118
  %v155 = vpack.c.b16 %v121, %v119
  %v156 = vpack.c.b16 %v124, %v122
  %v157 = vpack.c.b16 %v125, %v123
  %v158 = vpack.c.b16 %v128, %v126
  %v159 = vpack.c.b16 %v129, %v127
  %v160 = vpack.c.b16 %v132, %v130
  %v161 = vpack.c.b16 %v133, %v131
  %v162 = vpack.c.b16 %v134, %v134
  %v163 = vpack.c.b16 %v135, %v135
  %vm190 = vcmask 719872
  %v192 = vsel %vm190, %v53, 0
  %vm194 = vcmask 1043456
  %v196 = vsel %vm194, %v162, 0
  %v199 = vsel %vm194, %v163, 0
  %201 = vmatprep.subr.bf16.mxu0 %v137
  %202 = vmatpush1.bf16.msra.mxu0 %v136
  %203 = vmatprep.subr.bf16.mxu0 %v139
  %204 = vmatpush1.bf16.msra.mxu0 %v138
  %205 = vmatprep.subr.bf16.mxu0 %v141
  %206 = vmatpush1.bf16.msra.mxu0 %v140
  %207 = vmatprep.subr.bf16.mxu0 %v143
  %208 = vmatpush1.bf16.msra.mxu0 %v142
  %209 = vmatprep.subr.bf16.mxu0 %v145
  %210 = vmatpush1.bf16.msra.mxu0 %v144
  %211 = vmatprep.subr.bf16.mxu0 %v147
  %212 = vmatpush1.bf16.msra.mxu0 %v146
  %213 = vmatprep.subr.bf16.mxu0 %v149
  %214 = vmatpush1.bf16.msra.mxu0 %v148
  %215 = vmatprep.subr.bf16.mxu0 %v151
  %216 = vmatpush1.bf16.msra.mxu0 %v150
  %217 = vmatprep.subr.bf16.mxu0 %v153
  %218 = vmatpush1.bf16.msra.mxu0 %v152
  %219 = vmatprep.subr.bf16.mxu0 %v155
  %220 = vmatpush1.bf16.msra.mxu0 %v154
  %221 = vmatprep.subr.bf16.mxu0 %v157
  %222 = vmatpush1.bf16.msra.mxu0 %v156
  %223 = vmatprep.subr.bf16.mxu0 %v159
  %224 = vmatpush1.bf16.msra.mxu0 %v158
  %225 = vmatprep.subr.bf16.mxu0 %v161
  %226 = vmatpush1.bf16.msra.mxu0 %v160
  %227 = vmatprep.subr.bf16.mxu0 %v199
  %228 = vmatpush1.bf16.msra.mxu0 %v196
  %229 = vmatprep.subr.bf16.mxu0 0
  %230 = vmatpush1.bf16.msra.mxu0 0
  %231 = vmatprep.subr.bf16.mxu0 0
  %232 = vmatpush1.bf16.msra.mxu0 0
  %233 = vmatprep.mubr.bf16.mxu0 %v192
  %234 = vmatmul.mubr.bf16.gmra.mrb[0].mxu0 %v52
  %v235 = vpop.f32.mrb[0].mxu0
  %v236 = vadd.f32 %v47, %v235
  %v237 = vpop.f32.mrb[0].mxu0
  %v238 = vadd.f32 %v47, %v237
  %v239 = vpop.f32.mrb[0].mxu0
  %v240 = vpop.f32.mrb[0].mxu0
  %241 = vdwg.mxu0
  %242 = vst [vmem:[%s3] sm:$0xff] %v236
  %243 = vst [vmem:[%s3 + $0x8] sm:$0xff] %v238
  // Predicated region
  $region14: #{generator_forward.27} parent=0 // pred_check
    _
  $region15: #{generator_forward.27} parent=0 // pred_check_branch
    %245 = sbr.rel (0) target = $region17
  $region16: #{generator_forward.27} parent=0 // pred_region
    _
  $region17: #{generator_forward.27} parent=0 // pred_fallthru
    _
  // Predicated region
  $region18: #{generator_forward.27} parent=0 // pred_check
    _
  $region19: #{generator_forward.27} parent=0 // pred_check_branch
    %247 = sbr.rel (0) target = $region21
  $region20: #{generator_forward.27} parent=0 // pred_region
    _
  $region21: #{generator_forward.27} parent=0 // pred_fallthru
    _

// kernel: generator_forward.30
$region0: #{generator_forward.30}
  #allocation0 [shape = 'u32[]', space=smem, size = 0x4, offset = 0x4, fixed_abs, tag = 'smem constant byte address 0x4 - core index']
  #allocation1 [shape = 'u32[144,128]{1,0:T(1,128)}', space=vmem, size = 0x12000, scoped, tag = 'internal scratch']
  %s0 = inlined_call_operand.vmem [shape: bf16[4,27], index: 0, kind: input, shape index: {}]
  %s1 = inlined_call_operand.vmem [shape: bf16[27,16384], index: 1, kind: input, shape index: {}]
  %s2 = inlined_call_operand.vmem [shape: f32[4,1], index: 2, kind: input, shape index: {}]
  %s3 = inlined_call_operand.vmem [shape: f32[4,16384], index: 3, kind: output, shape index: {}]
  %s4 = sld [smem:[#allocation0]]
  $region68: #{generator_forward.30} parent=0
    _
  %s6 = ssub.s32 1, %s4
  %s7 = scalar_select 0, %s6, %s4
  $region1: #{generator_forward.30} parent=0
    #allocation2 [shape = 'u8[65536]{0}', space=vmem, size = 0x10000, scoped, tag = 'input window, operand 1']
    loop: start=0, step=1, limit=34
    $region2: #{generator_forward.30} parent=1 // loop_pre_header
      _
    $region3: #{generator_forward.30} parent=1 // loop_header
      %s9 = sphi 0, %s13
      %p10 = scmp.ge.s32.totalorder %s9, 34
      %s17 = sphi 0, %s17
      %s19 = sphi 0, %s17
      %s20 = sphi 0, %s19
      %s34 = sphi 0, %s20
      %s40 = sphi 0, %s42
      %s43 = sphi 0, %s40
      %s44 = sphi 0, %s43
      %s60 = sphi 0, %s44
      %s64 = sphi 0, %s64
      %s66 = sphi 0, %s64
      %s67 = sphi 0, %s66
      %s81 = sphi 0, %s67
      %s87 = sphi 0, %s89
      %s90 = sphi 0, %s87
      %s91 = sphi 0, %s90
      %s107 = sphi 0, %s91
    $region4: #{generator_forward.30} parent=1 // loop_header_branch
      %12 = sbr.rel (%p10) target = $region8
    $region5: #{generator_forward.30} parent=1 // loop_body
      %s14 = ssub.s32 %s9, 1
      %s15 = ssub.s32 %s9, 2
      %s16 = sadd.s32 %s9, 1
      %s18 = sadd.s32 %s17, 1
      %p21 = scmp.eq.s32.totalorder %s9, 31
      %p22 = scmp.ne.s32.totalorder %s17, %s19
      %p23 = scmp.eq.s32.totalorder %s9, 0
      %p24 = por %p22, %p23
      %p25 = scmp.ne.s32.totalorder %s17, %s19
      %p26 = scmp.eq.s32.totalorder %s14, 31
      %p27 = por %p25, %p26
      %p28 = scmp.ne.s32.totalorder %s19, %s20
      %p29 = scmp.eq.s32.totalorder %s14, 0
      %p30 = por %p28, %p29
      %p31 = scmp.ne.s32.totalorder %s19, %s20
      %p32 = scmp.eq.s32.totalorder %s15, 31
      %p33 = por %p31, %p32
      %p35 = scmp.ne.s32.totalorder %s20, %s34
      %p36 = scmp.eq.s32.totalorder %s15, 0
      %p37 = por %p35, %p36
      %s38 = ssub.s32 %s9, %s16
      %p39 = scmp.eq.s32.totalorder %s38, 0
      %s41 = sadd.s32 %s40, 1
      %s42 = scalar_select %p39, %s40, %s41
      %p45 = pneg %p39
      %p46 = scmp.eq.s32.totalorder %s9, 31
      %p47 = por %p45, %p46
      %p48 = scmp.ne.s32.totalorder %s40, %s43
      %p49 = scmp.eq.s32.totalorder %s9, 0
      %p50 = por %p48, %p49
      %p51 = scmp.ne.s32.totalorder %s40, %s43
      %p52 = scmp.eq.s32.totalorder %s14, 31
      %p53 = por %p51, %p52
      %p54 = scmp.ne.s32.totalorder %s43, %s44
      %p55 = scmp.eq.s32.totalorder %s14, 0
      %p56 = por %p54, %p55
      %p57 = scmp.ne.s32.totalorder %s43, %s44
      %p58 = scmp.eq.s32.totalorder %s15, 31
      %p59 = por %p57, %p58
      %p61 = scmp.ne.s32.totalorder %s44, %s60
      %p62 = scmp.eq.s32.totalorder %s15, 0
      %p63 = por %p61, %p62
      %s65 = sadd.s32 %s64, 1
      %p68 = scmp.eq.s32.totalorder %s9, 31
      %p69 = scmp.ne.s32.totalorder %s64, %s66
      %p70 = scmp.eq.s32.totalorder %s9, 0
      %p71 = por %p69, %p70
      %p72 = scmp.ne.s32.totalorder %s64, %s66
      %p73 = scmp.eq.s32.totalorder %s14, 31
      %p74 = por %p72, %p73
      %p75 = scmp.ne.s32.totalorder %s66, %s67
      %p76 = scmp.eq.s32.totalorder %s14, 0
      %p77 = por %p75, %p76
      %p78 = scmp.ne.s32.totalorder %s66, %s67
      %p79 = scmp.eq.s32.totalorder %s15, 31
      %p80 = por %p78, %p79
      %p82 = scmp.ne.s32.totalorder %s67, %s81
      %p83 = scmp.eq.s32.totalorder %s15, 0
      %p84 = por %p82, %p83
      %s85 = ssub.s32 %s9, %s16
      %p86 = scmp.eq.s32.totalorder %s85, 0
      %s88 = sadd.s32 %s87, 1
      %s89 = scalar_select %p86, %s87, %s88
      %p92 = pneg %p86
      %p93 = scmp.eq.s32.totalorder %s9, 31
      %p94 = por %p92, %p93
      %p95 = scmp.ne.s32.totalorder %s87, %s90
      %p96 = scmp.eq.s32.totalorder %s9, 0
      %p97 = por %p95, %p96
      %p98 = scmp.ne.s32.totalorder %s87, %s90
      %p99 = scmp.eq.s32.totalorder %s14, 31
      %p100 = por %p98, %p99
      %p101 = scmp.ne.s32.totalorder %s90, %s91
      %p102 = scmp.eq.s32.totalorder %s14, 0
      %p103 = por %p101, %p102
      %p104 = scmp.ne.s32.totalorder %s90, %s91
      %p105 = scmp.eq.s32.totalorder %s15, 31
      %p106 = por %p104, %p105
      %p108 = scmp.ne.s32.totalorder %s91, %s107
      %p109 = scmp.eq.s32.totalorder %s15, 0
      %p110 = por %p108, %p109
      %p111 = scmp.le.s32.totalorder 1, %s9
      %p112 = scmp.lt.s32.totalorder %s9, 33
      %p113 = pnand %p111, %p112
      %p114 = pneg %p113
      // Predicated region
      $region9: #{generator_forward.30} parent=5 // pred_check
        _
      $region10: #{generator_forward.30} parent=5 // pred_check_branch
        %116 = sbr.rel (%p113) target = $region12
      $region11: #{generator_forward.30} parent=5 // pred_region
        %s117 = ssub.s32 %s9, 1
        // Predicated region
        $region13: #{generator_forward.30} parent=11 // pred_check
          %p118 = pneg %p30
        $region14: #{generator_forward.30} parent=11 // pred_check_branch
          %120 = sbr.rel (%p118) target = $region16
        $region15: #{generator_forward.30} parent=11 // pred_region
          _
        $region16: #{generator_forward.30} parent=11 // pred_fallthru
          _
        // Predicated region
        $region17: #{generator_forward.30} parent=11 // pred_check
          %p121 = pneg %p77
        $region18: #{generator_forward.30} parent=11 // pred_check_branch
          %123 = sbr.rel (%p121) target = $region20
        $region19: #{generator_forward.30} parent=11 // pred_region
          _
        $region20: #{generator_forward.30} parent=11 // pred_fallthru
          _
      $region12: #{generator_forward.30} parent=5 // pred_fallthru
        _
      %p124 = scmp.lt.s32.totalorder %s9, 32
      // Predicated region
      $region21: #{generator_forward.30} parent=5 // pred_check
        %p125 = pneg %p124
      $region22: #{generator_forward.30} parent=5 // pred_check_branch
        %127 = sbr.rel (%p125) target = $region24
      $region23: #{generator_forward.30} parent=5 // pred_region
        // Predicated region
        $region25: #{generator_forward.30} parent=23 // pred_check
          %p128 = pneg %p50
        $region26: #{generator_forward.30} parent=23 // pred_check_branch
          %130 = sbr.rel (%p128) target = $region28
        $region27: #{generator_forward.30} parent=23 // pred_region
          %s131 = sand.u32 %s40, 1
          %s132 = sand.u32 %s40, 1
          %s133 = smul.addr %s132, 64
          %s134 = scalar_lea.vmem [#allocation2], %s133
          %s135 = smul.u32 4, %s9
          %s136 = smul.addr %s135, 4
          %s137 = scalar_lea.vmem %s1, %s136
          // Predicated region
          $region29: #{generator_forward.30} parent=27 // pred_check
            _
          $region30: #{generator_forward.30} parent=27 // pred_check_branch
            %139 = sbr.rel (0) target = $region32
          $region31: #{generator_forward.30} parent=27 // pred_region
            // Predicated region
            $region33: #{generator_forward.30} parent=31 // pred_check
              _
            $region34: #{generator_forward.30} parent=31 // pred_check_branch
              %141 = sbr.rel (0) target = $region36
            $region35: #{generator_forward.30} parent=31 // pred_region
              loop: start=0, step=1, limit=1
              $region37: #{generator_forward.30} parent=35 // loop_pre_header
                _
              $region38: #{generator_forward.30} parent=35 // loop_header
                %s143 = sphi 0, %s147
                %p144 = scmp.ge.s32.totalorder %s143, 1
                %s148 = sphi %s137, %s137
                %s149 = sphi %s134, %s134
              $region39: #{generator_forward.30} parent=35 // loop_header_branch
                %146 = sbr.rel (%p144) target = $region43
              $region40: #{generator_forward.30} parent=35 // loop_body
                %v150 = vld [vmem:[%s148] sm:$0xff]
                %151 = vst [vmem:[%s149] sm:$0xff] %v150
                %v152 = vld [vmem:[%s148 + $0x8] sm:$0xff]
                %153 = vst [vmem:[%s149 + $0x8] sm:$0xff] %v152
                %v154 = vld [vmem:[%s148 + $0x200] sm:$0xff]
                %155 = vst [vmem:[%s149 + $0x10] sm:$0xff] %v154
                %v156 = vld [vmem:[%s148 + $0x208] sm:$0xff]
                %157 = vst [vmem:[%s149 + $0x18] sm:$0xff] %v156
                %v158 = vld [vmem:[%s148 + $0x400] sm:$0xff]
                %159 = vst [vmem:[%s149 + $0x20] sm:$0xff] %v158
                %v160 = vld [vmem:[%s148 + $0x408] sm:$0xff]
                %161 = vst [vmem:[%s149 + $0x28] sm:$0xff] %v160
                %v162 = vld [vmem:[%s148 + $0x600] sm:$0xff]
                %163 = vst [vmem:[%s149 + $0x30] sm:$0xff] %v162
                %v164 = vld [vmem:[%s148 + $0x608] sm:$0xff]
                %165 = vst [vmem:[%s149 + $0x38] sm:$0xff] %v164
              $region41: #{generator_forward.30} parent=35 // loop_footer
                %s147 = sadd.s32 1, %s143
              $region42: #{generator_forward.30} parent=35 // loop_footer_branch
                %142 = sbr.rel target = $region38
              $region43: #{generator_forward.30} parent=35 // loop_exit
                _
            $region36: #{generator_forward.30} parent=31 // pred_fallthru
              _
            // Predicated region
            $region44: #{generator_forward.30} parent=31 // pred_check
              _
            $region45: #{generator_forward.30} parent=31 // pred_check_branch
              %167 = sbr.rel target = $region47
            $region46: #{generator_forward.30} parent=31 // pred_region
              _
            $region47: #{generator_forward.30} parent=31 // pred_fallthru
              _
          $region32: #{generator_forward.30} parent=27 // pred_fallthru
            _
          %168 = vnop
        $region28: #{generator_forward.30} parent=23 // pred_fallthru
          _
      $region24: #{generator_forward.30} parent=5 // pred_fallthru
        _
      %p169 = scmp.le.s32.totalorder 1, %s9
      %p170 = scmp.lt.s32.totalorder %s9, 33
      %p171 = pnand %p169, %p170
      %p172 = pneg %p171
      // Predicated region
      $region48: #{generator_forward.30} parent=5 // pred_check
        _
      $region49: #{generator_forward.30} parent=5 // pred_check_branch
        %174 = sbr.rel (%p171) target = $region51
      $region50: #{generator_forward.30} parent=5 // pred_region
        %s175 = ssub.s32 %s9, 1
        %s176 = sand.u32 %s43, 1
        %s177 = sand.u32 %s43, 1
        %s178 = smul.addr %s177, 64
        %s179 = scalar_lea.vmem [#allocation2], %s178
        // Predicated region
        $region52: #{generator_forward.30} parent=50 // pred_check
          %p180 = pneg %p56
        $region53: #{generator_forward.30} parent=50 // pred_check_branch
          %182 = sbr.rel (%p180) target = $region55
        $region54: #{generator_forward.30} parent=50 // pred_region
          _
        $region55: #{generator_forward.30} parent=50 // pred_fallthru
          _
        %p183 = pneg %p30
        %p184 = pneg %p27
        %s185 = sand.u32 %s43, 1
        %s186 = sand.u32 %s43, 1
        %s187 = smul.addr %s186, 64
        %s188 = scalar_lea.vmem [#allocation2], %s187
        %p189 = pneg %p56
        %p190 = pneg %p53
        %p191 = pneg %p77
        %p192 = pneg %p74
        %p193 = pneg %p103
        %p194 = pneg %p100
        %s195 = smul.u32 4, %s14
        %p196 = scmp.lt.s32.totalorder %s195, 127
        %s197 = scalar_select %p196, %s195, 127
        %s198 = smul.addr %s197, 4
        %s199 = scalar_lea.vmem %s3, %s198
        %s200 = smul.u32 4, %s14
        %s201 = smul.u32 4, %s14
        %p202 = scmp.lt.s32.totalorder %s201, 127
        %s203 = scalar_select %p202, %s201, 127
        %s204 = smul.addr %s203, 4
        %s205 = scalar_lea.vmem %s3, %s204
        %s206 = smul.u32 4, %s14
        %v208 = vld [vmem:[%s0] sm:$0x3]
        %v209 = vld [vmem:[%s179] sm:$0xff]
        %v210 = vld [vmem:[%s179 + $0x8] sm:$0xff]
        %v211 = vld [vmem:[%s179 + $0x10] sm:$0xff]
        %v212 = vld [vmem:[%s179 + $0x18] sm:$0xff]
        %v213 = vld [vmem:[%s179 + $0x20] sm:$0xff]
        %v214 = vld [vmem:[%s179 + $0x28] sm:$0xff]
        %v215 = vld [vmem:[%s179 + $0x30] sm:$0x33]
        %v216 = vld [vmem:[%s179 + $0x38] sm:$0x33]
        %v217 = vld [vmem:[%s2] sm:$0xf]
        %219 = vset.pattern.permute.xlu0 0
        %220 = vperm.xlu0 %219, %v217
        %v221 = vpop.permute.xlu0 %220
        %v231 = vunpack.c.l.b16 %v209
        %v232 = vunpack.c.h.b16 %v209
        %v233 = vunpack.c.l.b16 %v210
        %v234 = vunpack.c.h.b16 %v210
        %v235 = vunpack.c.l.b16 %v211
        %v236 = vunpack.c.h.b16 %v211
        %v237 = vunpack.c.l.b16 %v212
        %v238 = vunpack.c.h.b16 %v212
        %v239 = vunpack.c.l.b16 %v213
        %v240 = vunpack.c.h.b16 %v213
        %v241 = vunpack.c.l.b16 %v214
        %v242 = vunpack.c.h.b16 %v214
        %v243 = vunpack.c.l.b16 %v215
        %v244 = vunpack.c.h.b16 %v215
        %v245 = vunpack.c.l.b16 %v216
        %v246 = vunpack.c.h.b16 %v216
        %v247 = vpack.c.b16 %v235, %v231
        %v248 = vpack.c.b16 %v236, %v232
        %v249 = vpack.c.b16 %v237, %v233
        %v250 = vpack.c.b16 %v238, %v234
        %v251 = vpack.c.b16 %v243, %v239
        %v252 = vpack.c.b16 %v244, %v240
        %v253 = vpack.c.b16 %v245, %v241
        %v254 = vpack.c.b16 %v246, %v242
        %vm259 = vcmask 220160
        %v261 = vsel %vm259, %v208, 0
        %vm263 = vcmask 1044480
        %vm264 = vcmask 1045504
        %v265 = vsel %vm263, 4294967295, 65535
        %v266 = vsel %vm264, %v265, 0
        %v268 = vand.u32 %v251, %v266
        %v271 = vand.u32 %v252, %v266
        %v274 = vand.u32 %v253, %v266
        %v277 = vand.u32 %v254, %v266
        %279 = vmatprep.subr.bf16.mxu0 %v248
        %280 = vmatpush1.bf16.msra.mxu0 %v247
        %281 = vmatprep.subr.bf16.mxu0 %v271
        %282 = vmatpush1.bf16.msra.mxu0 %v268
        %283 = vmatprep.subr.bf16.mxu0 0
        %284 = vmatpush1.bf16.msra.mxu0 0
        %285 = vmatprep.subr.bf16.mxu0 0
        %286 = vmatpush1.bf16.msra.mxu0 0
        %287 = vmatprep.subr.bf16.mxu0 0
        %288 = vmatpush1.bf16.msra.mxu0 0
        %289 = vmatprep.subr.bf16.mxu0 0
        %290 = vmatpush1.bf16.msra.mxu0 0
        %291 = vmatprep.subr.bf16.mxu0 0
        %292 = vmatpush1.bf16.msra.mxu0 0
        %293 = vmatprep.subr.bf16.mxu0 0
        %294 = vmatpush1.bf16.msra.mxu0 0
        %295 = vmatprep.subr.bf16.mxu0 0
        %296 = vmatpush1.bf16.msra.mxu0 0
        %297 = vmatprep.subr.bf16.mxu0 0
        %298 = vmatpush1.bf16.msra.mxu0 0
        %299 = vmatprep.subr.bf16.mxu0 0
        %300 = vmatpush1.bf16.msra.mxu0 0
        %301 = vmatprep.subr.bf16.mxu0 0
        %302 = vmatpush1.bf16.msra.mxu0 0
        %303 = vmatprep.subr.bf16.mxu0 0
        %304 = vmatpush1.bf16.msra.mxu0 0
        %305 = vmatprep.subr.bf16.mxu0 0
        %306 = vmatpush1.bf16.msra.mxu0 0
        %307 = vmatprep.subr.bf16.mxu0 0
        %308 = vmatpush1.bf16.msra.mxu0 0
        %309 = vmatprep.subr.bf16.mxu0 0
        %310 = vmatpush1.bf16.msra.mxu0 0
        %311 = vmatprep.mubr.bf16.mxu0 0
        %312 = vmatmul.mubr.bf16.gmra.mrb[0].mxu0 %v261
        %v313 = vpop.f32.mrb[0].mxu0
        %v314 = vadd.f32 %v221, %v313
        %v315 = vpop.f32.mrb[0].mxu0
        %v316 = vadd.f32 %v221, %v315
        %v317 = vpop.f32.mrb[0].mxu0
        %v318 = vpop.f32.mrb[0].mxu0
        %319 = vdwg.mxu0
        %320 = vmatprep.subr.bf16.mxu0 %v250
        %321 = vmatpush1.bf16.msra.mxu0 %v249
        %322 = vmatprep.subr.bf16.mxu0 %v277
        %323 = vmatpush1.bf16.msra.mxu0 %v274
        %324 = vmatprep.subr.bf16.mxu0 0
        %325 = vmatpush1.bf16.msra.mxu0 0
        %326 = vmatprep.subr.bf16.mxu0 0
        %327 = vmatpush1.bf16.msra.mxu0 0
        %328 = vmatprep.subr.bf16.mxu0 0
        %329 = vmatpush1.bf16.msra.mxu0 0
        %330 = vmatprep.subr.bf16.mxu0 0
        %331 = vmatpush1.bf16.msra.mxu0 0
        %332 = vmatprep.subr.bf16.mxu0 0
        %333 = vmatpush1.bf16.msra.mxu0 0
        %334 = vmatprep.subr.bf16.mxu0 0
        %335 = vmatpush1.bf16.msra.mxu0 0
        %336 = vmatprep.subr.bf16.mxu0 0
        %337 = vmatpush1.bf16.msra.mxu0 0
        %338 = vmatprep.subr.bf16.mxu0 0
        %339 = vmatpush1.bf16.msra.mxu0 0
        %340 = vmatprep.subr.bf16.mxu0 0
        %341 = vmatpush1.bf16.msra.mxu0 0
        %342 = vmatprep.subr.bf16.mxu0 0
        %343 = vmatpush1.bf16.msra.mxu0 0
        %344 = vmatprep.subr.bf16.mxu0 0
        %345 = vmatpush1.bf16.msra.mxu0 0
        %346 = vmatprep.subr.bf16.mxu0 0
        %347 = vmatpush1.bf16.msra.mxu0 0
        %348 = vmatprep.subr.bf16.mxu0 0
        %349 = vmatpush1.bf16.msra.mxu0 0
        %350 = vmatprep.subr.bf16.mxu0 0
        %351 = vmatpush1.bf16.msra.mxu0 0
        %352 = vmatprep.mubr.bf16.mxu0 0
        %353 = vmatmul.mubr.bf16.gmra.mrb[0].mxu0 %v261
        %v354 = vpop.f32.mrb[0].mxu0
        %v355 = vadd.f32 %v221, %v354
        %v356 = vpop.f32.mrb[0].mxu0
        %v357 = vadd.f32 %v221, %v356
        %v358 = vpop.f32.mrb[0].mxu0
        %v359 = vpop.f32.mrb[0].mxu0
        %360 = vdwg.mxu0
        %vm361 = vcmp.ge.f32.partialorder %v314, 0.0
        %vm362 = vcmp.ge.f32.partialorder %v316, 0.0
        %vm363 = vcmp.ge.f32.partialorder %v355, 0.0
        %vm364 = vcmp.ge.f32.partialorder %v357, 0.0
        %v365 = vmul.f32 %v314, 0.2
        %v366 = vmul.f32 %v316, 0.2
        %v367 = vmul.f32 %v355, 0.2
        %v368 = vmul.f32 %v357, 0.2
        %v369 = vsel %vm361, %v314, %v365
        %v370 = vsel %vm362, %v316, %v366
        %v371 = vsel %vm363, %v355, %v367
        %v372 = vsel %vm364, %v357, %v368
        %v377 = vcombine.low %v369, %v370
        %v378 = vcombine.low %v371, %v372
        %381 = vst [vmem:[%s205] sm:$0xff] %v377
        %382 = vst [vmem:[%s205 + $0x8] sm:$0xff] %v378
        %s383 = smul.u32 4, %s14
        %p384 = scmp.lt.s32.totalorder %s383, 127
        %s385 = scalar_select %p384, %s383, 127
        %s386 = smul.addr %s385, 4
        %s387 = scalar_lea.vmem %s3, %s386
        // Predicated region
        $region56: #{generator_forward.30} parent=50 // pred_check
          %p388 = pneg %p100
        $region57: #{generator_forward.30} parent=50 // pred_check_branch
          %390 = sbr.rel (%p388) target = $region59
        $region58: #{generator_forward.30} parent=50 // pred_region
          %s391 = smul.u32 4, %s14
        $region59: #{generator_forward.30} parent=50 // pred_fallthru
          _
      $region51: #{generator_forward.30} parent=5 // pred_fallthru
        _
      %p392 = scmp.le.s32.totalorder 2, %s9
      // Predicated region
      $region60: #{generator_forward.30} parent=5 // pred_check
        %p393 = pneg %p392
      $region61: #{generator_forward.30} parent=5 // pred_check_branch
        %395 = sbr.rel (%p393) target = $region63
      $region62: #{generator_forward.30} parent=5 // pred_region
        %s396 = ssub.s32 %s9, 2
        // Predicated region
        $region64: #{generator_forward.30} parent=62 // pred_check
          %p397 = pneg %p106
        $region65: #{generator_forward.30} parent=62 // pred_check_branch
          %399 = sbr.rel (%p397) target = $region67
        $region66: #{generator_forward.30} parent=62 // pred_region
          %s400 = smul.u32 4, %s15
          %p401 = scmp.lt.s32.totalorder %s400, 127
          %s402 = scalar_select %p401, %s400, 127
          %s403 = smul.addr %s402, 4
          %s404 = scalar_lea.vmem %s3, %s403
        $region67: #{generator_forward.30} parent=62 // pred_fallthru
          _
      $region63: #{generator_forward.30} parent=5 // pred_fallthru
        _
    $region6: #{generator_forward.30} parent=1 // loop_footer
      %s13 = sadd.s32 1, %s9
    $region7: #{generator_forward.30} parent=1 // loop_footer_branch
      %8 = sbr.rel target = $region3
    $region8: #{generator_forward.30} parent=1 // loop_exit
      _

// kernel: generator_forward.28
$region0: #{generator_forward.28}
  #allocation0 [shape = 'u32[]', space=smem, size = 0x4, offset = 0x4, fixed_abs, tag = 'smem constant byte address 0x4 - core index']
  #allocation1 [shape = 'u32[144,128]{1,0:T(1,128)}', space=vmem, size = 0x12000, scoped, tag = 'internal scratch']
  %s0 = inlined_call_operand.vmem [shape: bf16[8,216], index: 0, kind: input, shape index: {}]
  %s1 = inlined_call_operand.vmem [shape: bf16[216,2048], index: 1, kind: input, shape index: {}]
  %s2 = inlined_call_operand.vmem [shape: f32[8,1], index: 2, kind: input, shape index: {}]
  %s3 = inlined_call_operand.vmem [shape: f32[8,2048], index: 3, kind: output, shape index: {}]
  %s4 = sld [smem:[#allocation0]]
  $region68: #{generator_forward.28} parent=0
    _
  %s6 = ssub.s32 1, %s4
  %s7 = scalar_select 0, %s6, %s4
  $region1: #{generator_forward.28} parent=0
    #allocation2 [shape = 'u8[442368]{0}', space=vmem, size = 0x6c000, scoped, tag = 'input window, operand 1']
    loop: start=0, step=1, limit=6
    $region2: #{generator_forward.28} parent=1 // loop_pre_header
      _
    $region3: #{generator_forward.28} parent=1 // loop_header
      %s9 = sphi 0, %s13
      %p10 = scmp.ge.s32.totalorder %s9, 6
      %s17 = sphi 0, %s17
      %s19 = sphi 0, %s17
      %s20 = sphi 0, %s19
      %s34 = sphi 0, %s20
      %s40 = sphi 0, %s42
      %s43 = sphi 0, %s40
      %s44 = sphi 0, %s43
      %s60 = sphi 0, %s44
      %s64 = sphi 0, %s64
      %s66 = sphi 0, %s64
      %s67 = sphi 0, %s66
      %s81 = sphi 0, %s67
      %s87 = sphi 0, %s89
      %s90 = sphi 0, %s87
      %s91 = sphi 0, %s90
      %s107 = sphi 0, %s91
    $region4: #{generator_forward.28} parent=1 // loop_header_branch
      %12 = sbr.rel (%p10) target = $region8
    $region5: #{generator_forward.28} parent=1 // loop_body
      %s14 = ssub.s32 %s9, 1
      %s15 = ssub.s32 %s9, 2
      %s16 = sadd.s32 %s9, 1
      %s18 = sadd.s32 %s17, 1
      %p21 = scmp.eq.s32.totalorder %s9, 3
      %p22 = scmp.ne.s32.totalorder %s17, %s19
      %p23 = scmp.eq.s32.totalorder %s9, 0
      %p24 = por %p22, %p23
      %p25 = scmp.ne.s32.totalorder %s17, %s19
      %p26 = scmp.eq.s32.totalorder %s14, 3
      %p27 = por %p25, %p26
      %p28 = scmp.ne.s32.totalorder %s19, %s20
      %p29 = scmp.eq.s32.totalorder %s14, 0
      %p30 = por %p28, %p29
      %p31 = scmp.ne.s32.totalorder %s19, %s20
      %p32 = scmp.eq.s32.totalorder %s15, 3
      %p33 = por %p31, %p32
      %p35 = scmp.ne.s32.totalorder %s20, %s34
      %p36 = scmp.eq.s32.totalorder %s15, 0
      %p37 = por %p35, %p36
      %s38 = ssub.s32 %s9, %s16
      %p39 = scmp.eq.s32.totalorder %s38, 0
      %s41 = sadd.s32 %s40, 1
      %s42 = scalar_select %p39, %s40, %s41
      %p45 = pneg %p39
      %p46 = scmp.eq.s32.totalorder %s9, 3
      %p47 = por %p45, %p46
      %p48 = scmp.ne.s32.totalorder %s40, %s43
      %p49 = scmp.eq.s32.totalorder %s9, 0
      %p50 = por %p48, %p49
      %p51 = scmp.ne.s32.totalorder %s40, %s43
      %p52 = scmp.eq.s32.totalorder %s14, 3
      %p53 = por %p51, %p52
      %p54 = scmp.ne.s32.totalorder %s43, %s44
      %p55 = scmp.eq.s32.totalorder %s14, 0
      %p56 = por %p54, %p55
      %p57 = scmp.ne.s32.totalorder %s43, %s44
      %p58 = scmp.eq.s32.totalorder %s15, 3
      %p59 = por %p57, %p58
      %p61 = scmp.ne.s32.totalorder %s44, %s60
      %p62 = scmp.eq.s32.totalorder %s15, 0
      %p63 = por %p61, %p62
      %s65 = sadd.s32 %s64, 1
      %p68 = scmp.eq.s32.totalorder %s9, 3
      %p69 = scmp.ne.s32.totalorder %s64, %s66
      %p70 = scmp.eq.s32.totalorder %s9, 0
      %p71 = por %p69, %p70
      %p72 = scmp.ne.s32.totalorder %s64, %s66
      %p73 = scmp.eq.s32.totalorder %s14, 3
      %p74 = por %p72, %p73
      %p75 = scmp.ne.s32.totalorder %s66, %s67
      %p76 = scmp.eq.s32.totalorder %s14, 0
      %p77 = por %p75, %p76
      %p78 = scmp.ne.s32.totalorder %s66, %s67
      %p79 = scmp.eq.s32.totalorder %s15, 3
      %p80 = por %p78, %p79
      %p82 = scmp.ne.s32.totalorder %s67, %s81
      %p83 = scmp.eq.s32.totalorder %s15, 0
      %p84 = por %p82, %p83
      %s85 = ssub.s32 %s9, %s16
      %p86 = scmp.eq.s32.totalorder %s85, 0
      %s88 = sadd.s32 %s87, 1
      %s89 = scalar_select %p86, %s87, %s88
      %p92 = pneg %p86
      %p93 = scmp.eq.s32.totalorder %s9, 3
      %p94 = por %p92, %p93
      %p95 = scmp.ne.s32.totalorder %s87, %s90
      %p96 = scmp.eq.s32.totalorder %s9, 0
      %p97 = por %p95, %p96
      %p98 = scmp.ne.s32.totalorder %s87, %s90
      %p99 = scmp.eq.s32.totalorder %s14, 3
      %p100 = por %p98, %p99
      %p101 = scmp.ne.s32.totalorder %s90, %s91
      %p102 = scmp.eq.s32.totalorder %s14, 0
      %p103 = por %p101, %p102
      %p104 = scmp.ne.s32.totalorder %s90, %s91
      %p105 = scmp.eq.s32.totalorder %s15, 3
      %p106 = por %p104, %p105
      %p108 = scmp.ne.s32.totalorder %s91, %s107
      %p109 = scmp.eq.s32.totalorder %s15, 0
      %p110 = por %p108, %p109
      %p111 = scmp.le.s32.totalorder 1, %s9
      %p112 = scmp.lt.s32.totalorder %s9, 5
      %p113 = pnand %p111, %p112
      %p114 = pneg %p113
      // Predicated region
      $region9: #{generator_forward.28} parent=5 // pred_check
        _
      $region10: #{generator_forward.28} parent=5 // pred_check_branch
        %116 = sbr.rel (%p113) target = $region12
      $region11: #{generator_forward.28} parent=5 // pred_region
        %s117 = ssub.s32 %s9, 1
        // Predicated region
        $region13: #{generator_forward.28} parent=11 // pred_check
          %p118 = pneg %p30
        $region14: #{generator_forward.28} parent=11 // pred_check_branch
          %120 = sbr.rel (%p118) target = $region16
        $region15: #{generator_forward.28} parent=11 // pred_region
          _
        $region16: #{generator_forward.28} parent=11 // pred_fallthru
          _
        // Predicated region
        $region17: #{generator_forward.28} parent=11 // pred_check
          %p121 = pneg %p77
        $region18: #{generator_forward.28} parent=11 // pred_check_branch
          %123 = sbr.rel (%p121) target = $region20
        $region19: #{generator_forward.28} parent=11 // pred_region
          _
        $region20: #{generator_forward.28} parent=11 // pred_fallthru
          _
      $region12: #{generator_forward.28} parent=5 // pred_fallthru
        _
      %p124 = scmp.lt.s32.totalorder %s9, 4
      // Predicated region
      $region21: #{generator_forward.28} parent=5 // pred_check
        %p125 = pneg %p124
      $region22: #{generator_forward.28} parent=5 // pred_check_branch
        %127 = sbr.rel (%p125) target = $region24
      $region23: #{generator_forward.28} parent=5 // pred_region
        // Predicated region
        $region25: #{generator_forward.28} parent=23 // pred_check
          %p128 = pneg %p50
        $region26: #{generator_forward.28} parent=23 // pred_check_branch
          %130 = sbr.rel (%p128) target = $region28
        $region27: #{generator_forward.28} parent=23 // pred_region
          %s131 = sand.u32 %s40, 1
          %s132 = sand.u32 %s40, 1
          %s133 = smul.addr %s132, 432
          %s134 = scalar_lea.vmem [#allocation2], %s133
          %s135 = smul.u32 4, %s9
          %s136 = smul.addr %s135, 4
          %s137 = scalar_lea.vmem %s1, %s136
          // Predicated region
          $region29: #{generator_forward.28} parent=27 // pred_check
            _
          $region30: #{generator_forward.28} parent=27 // pred_check_branch
            %139 = sbr.rel (0) target = $region32
          $region31: #{generator_forward.28} parent=27 // pred_region
            // Predicated region
            $region33: #{generator_forward.28} parent=31 // pred_check
              _
            $region34: #{generator_forward.28} parent=31 // pred_check_branch
              %141 = sbr.rel (0) target = $region36
            $region35: #{generator_forward.28} parent=31 // pred_region
              loop: start=0, step=1, limit=1
              $region37: #{generator_forward.28} parent=35 // loop_pre_header
                _
              $region38: #{generator_forward.28} parent=35 // loop_header
                %s143 = sphi 0, %s147
                %p144 = scmp.ge.s32.totalorder %s143, 1
                %s148 = sphi %s137, %s137
                %s149 = sphi %s134, %s134
              $region39: #{generator_forward.28} parent=35 // loop_header_branch
                %146 = sbr.rel (%p144) target = $region43
              $region40: #{generator_forward.28} parent=35 // loop_body
                %v150 = vld [vmem:[%s148] sm:$0xff]
                %151 = vst [vmem:[%s149] sm:$0xff] %v150
                %v152 = vld [vmem:[%s148 + $0x8] sm:$0xff]
                %153 = vst [vmem:[%s149 + $0x8] sm:$0xff] %v152
                %v154 = vld [vmem:[%s148 + $0x40] sm:$0xff]
                %155 = vst [vmem:[%s149 + $0x10] sm:$0xff] %v154
                %v156 = vld [vmem:[%s148 + $0x48] sm:$0xff]
                %157 = vst [vmem:[%s149 + $0x18] sm:$0xff] %v156
                %v158 = vld [vmem:[%s148 + $0x80] sm:$0xff]
                %159 = vst [vmem:[%s149 + $0x20] sm:$0xff] %v158
                %v160 = vld [vmem:[%s148 + $0x88] sm:$0xff]
                %161 = vst [vmem:[%s149 + $0x28] sm:$0xff] %v160
                %v162 = vld [vmem:[%s148 + $0xc0] sm:$0xff]
                %163 = vst [vmem:[%s149 + $0x30] sm:$0xff] %v162
                %v164 = vld [vmem:[%s148 + $0xc8] sm:$0xff]
                %165 = vst [vmem:[%s149 + $0x38] sm:$0xff] %v164
                %v166 = vld [vmem:[%s148 + $0x100] sm:$0xff]
                %167 = vst [vmem:[%s149 + $0x40] sm:$0xff] %v166
                %v168 = vld [vmem:[%s148 + $0x108] sm:$0xff]
                %169 = vst [vmem:[%s149 + $0x48] sm:$0xff] %v168
                %v170 = vld [vmem:[%s148 + $0x140] sm:$0xff]
                %171 = vst [vmem:[%s149 + $0x50] sm:$0xff] %v170
                %v172 = vld [vmem:[%s148 + $0x148] sm:$0xff]
                %173 = vst [vmem:[%s149 + $0x58] sm:$0xff] %v172
                %v174 = vld [vmem:[%s148 + $0x180] sm:$0xff]
                %175 = vst [vmem:[%s149 + $0x60] sm:$0xff] %v174
                %v176 = vld [vmem:[%s148 + $0x188] sm:$0xff]
                %177 = vst [vmem:[%s149 + $0x68] sm:$0xff] %v176
                %v178 = vld [vmem:[%s148 + $0x1c0] sm:$0xff]
                %179 = vst [vmem:[%s149 + $0x70] sm:$0xff] %v178
                %v180 = vld [vmem:[%s148 + $0x1c8] sm:$0xff]
                %181 = vst [vmem:[%s149 + $0x78] sm:$0xff] %v180
                %v182 = vld [vmem:[%s148 + $0x200] sm:$0xff]
                %183 = vst [vmem:[%s149 + $0x80] sm:$0xff] %v182
                %v184 = vld [vmem:[%s148 + $0x208] sm:$0xff]
                %185 = vst [vmem:[%s149 + $0x88] sm:$0xff] %v184
                %v186 = vld [vmem:[%s148 + $0x240] sm:$0xff]
                %187 = vst [vmem:[%s149 + $0x90] sm:$0xff] %v186
                %v188 = vld [vmem:[%s148 + $0x248] sm:$0xff]
                %189 = vst [vmem:[%s149 + $0x98] sm:$0xff] %v188
                %v190 = vld [vmem:[%s148 + $0x280] sm:$0xff]
                %191 = vst [vmem:[%s149 + $0xa0] sm:$0xff] %v190
                %v192 = vld [vmem:[%s148 + $0x288] sm:$0xff]
                %193 = vst [vmem:[%s149 + $0xa8] sm:$0xff] %v192
                %v194 = vld [vmem:[%s148 + $0x2c0] sm:$0xff]
                %195 = vst [vmem:[%s149 + $0xb0] sm:$0xff] %v194
                %v196 = vld [vmem:[%s148 + $0x2c8] sm:$0xff]
                %197 = vst [vmem:[%s149 + $0xb8] sm:$0xff] %v196
                %v198 = vld [vmem:[%s148 + $0x300] sm:$0xff]
                %199 = vst [vmem:[%s149 + $0xc0] sm:$0xff] %v198
                %v200 = vld [vmem:[%s148 + $0x308] sm:$0xff]
                %201 = vst [vmem:[%s149 + $0xc8] sm:$0xff] %v200
                %v202 = vld [vmem:[%s148 + $0x340] sm:$0xff]
                %203 = vst [vmem:[%s149 + $0xd0] sm:$0xff] %v202
                %v204 = vld [vmem:[%s148 + $0x348] sm:$0xff]
                %205 = vst [vmem:[%s149 + $0xd8] sm:$0xff] %v204
                %v206 = vld [vmem:[%s148 + $0x380] sm:$0xff]
                %207 = vst [vmem:[%s149 + $0xe0] sm:$0xff] %v206
                %v208 = vld [vmem:[%s148 + $0x388] sm:$0xff]
                %209 = vst [vmem:[%s149 + $0xe8] sm:$0xff] %v208
                %v210 = vld [vmem:[%s148 + $0x3c0] sm:$0xff]
                %211 = vst [vmem:[%s149 + $0xf0] sm:$0xff] %v210
                %v212 = vld [vmem:[%s148 + $0x3c8] sm:$0xff]
                %213 = vst [vmem:[%s149 + $0xf8] sm:$0xff] %v212
                %v214 = vld [vmem:[%s148 + $0x400] sm:$0xff]
                %215 = vst [vmem:[%s149 + $0x100] sm:$0xff] %v214
                %v216 = vld [vmem:[%s148 + $0x408] sm:$0xff]
                %217 = vst [vmem:[%s149 + $0x108] sm:$0xff] %v216
                %v218 = vld [vmem:[%s148 + $0x440] sm:$0xff]
                %219 = vst [vmem:[%s149 + $0x110] sm:$0xff] %v218
                %v220 = vld [vmem:[%s148 + $0x448] sm:$0xff]
                %221 = vst [vmem:[%s149 + $0x118] sm:$0xff] %v220
                %v222 = vld [vmem:[%s148 + $0x480] sm:$0xff]
                %223 = vst [vmem:[%s149 + $0x120] sm:$0xff] %v222
                %v224 = vld [vmem:[%s148 + $0x488] sm:$0xff]
                %225 = vst [vmem:[%s149 + $0x128] sm:$0xff] %v224
                %v226 = vld [vmem:[%s148 + $0x4c0] sm:$0xff]
                %227 = vst [vmem:[%s149 + $0x130] sm:$0xff] %v226
                %v228 = vld [vmem:[%s148 + $0x4c8] sm:$0xff]
                %229 = vst [vmem:[%s149 + $0x138] sm:$0xff] %v228
                %v230 = vld [vmem:[%s148 + $0x500] sm:$0xff]
                %231 = vst [vmem:[%s149 + $0x140] sm:$0xff] %v230
                %v232 = vld [vmem:[%s148 + $0x508] sm:$0xff]
                %233 = vst [vmem:[%s149 + $0x148] sm:$0xff] %v232
                %v234 = vld [vmem:[%s148 + $0x540] sm:$0xff]
                %235 = vst [vmem:[%s149 + $0x150] sm:$0xff] %v234
                %v236 = vld [vmem:[%s148 + $0x548] sm:$0xff]
                %237 = vst [vmem:[%s149 + $0x158] sm:$0xff] %v236
                %v238 = vld [vmem:[%s148 + $0x580] sm:$0xff]
                %239 = vst [vmem:[%s149 + $0x160] sm:$0xff] %v238
                %v240 = vld [vmem:[%s148 + $0x588] sm:$0xff]
                %241 = vst [vmem:[%s149 + $0x168] sm:$0xff] %v240
                %v242 = vld [vmem:[%s148 + $0x5c0] sm:$0xff]
                %243 = vst [vmem:[%s149 + $0x170] sm:$0xff] %v242
                %v244 = vld [vmem:[%s148 + $0x5c8] sm:$0xff]
                %245 = vst [vmem:[%s149 + $0x178] sm:$0xff] %v244
                %v246 = vld [vmem:[%s148 + $0x600] sm:$0xff]
                %247 = vst [vmem:[%s149 + $0x180] sm:$0xff] %v246
                %v248 = vld [vmem:[%s148 + $0x608] sm:$0xff]
                %249 = vst [vmem:[%s149 + $0x188] sm:$0xff] %v248
                %v250 = vld [vmem:[%s148 + $0x640] sm:$0xff]
                %251 = vst [vmem:[%s149 + $0x190] sm:$0xff] %v250
                %v252 = vld [vmem:[%s148 + $0x648] sm:$0xff]
                %253 = vst [vmem:[%s149 + $0x198] sm:$0xff] %v252
                %v254 = vld [vmem:[%s148 + $0x680] sm:$0xff]
                %255 = vst [vmem:[%s149 + $0x1a0] sm:$0xff] %v254
                %v256 = vld [vmem:[%s148 + $0x688] sm:$0xff]
                %257 = vst [vmem:[%s149 + $0x1a8] sm:$0xff] %v256
              $region41: #{generator_forward.28} parent=35 // loop_footer
                %s147 = sadd.s32 1, %s143
              $region42: #{generator_forward.28} parent=35 // loop_footer_branch
                %142 = sbr.rel target = $region38
              $region43: #{generator_forward.28} parent=35 // loop_exit
                _
            $region36: #{generator_forward.28} parent=31 // pred_fallthru
              _
            // Predicated region
            $region44: #{generator_forward.28} parent=31 // pred_check
              _
            $region45: #{generator_forward.28} parent=31 // pred_check_branch
              %259 = sbr.rel target = $region47
            $region46: #{generator_forward.28} parent=31 // pred_region
              _
            $region47: #{generator_forward.28} parent=31 // pred_fallthru
              _
          $region32: #{generator_forward.28} parent=27 // pred_fallthru
            _
          %260 = vnop
        $region28: #{generator_forward.28} parent=23 // pred_fallthru
          _
      $region24: #{generator_forward.28} parent=5 // pred_fallthru
        _
      %p261 = scmp.le.s32.totalorder 1, %s9
      %p262 = scmp.lt.s32.totalorder %s9, 5
      %p263 = pnand %p261, %p262
      %p264 = pneg %p263
      // Predicated region
      $region48: #{generator_forward.28} parent=5 // pred_check
        _
      $region49: #{generator_forward.28} parent=5 // pred_check_branch
        %266 = sbr.rel (%p263) target = $region51
      $region50: #{generator_forward.28} parent=5 // pred_region
        %s267 = ssub.s32 %s9, 1
        %s268 = sand.u32 %s43, 1
        %s269 = sand.u32 %s43, 1
        %s270 = smul.addr %s269, 432
        %s271 = scalar_lea.vmem [#allocation2], %s270
        // Predicated region
        $region52: #{generator_forward.28} parent=50 // pred_check
          %p272 = pneg %p56
        $region53: #{generator_forward.28} parent=50 // pred_check_branch
          %274 = sbr.rel (%p272) target = $region55
        $region54: #{generator_forward.28} parent=50 // pred_region
          _
        $region55: #{generator_forward.28} parent=50 // pred_fallthru
          _
        %p275 = pneg %p30
        %p276 = pneg %p27
        %s277 = sand.u32 %s43, 1
        %s278 = sand.u32 %s43, 1
        %s279 = smul.addr %s278, 432
        %s280 = scalar_lea.vmem [#allocation2], %s279
        %p281 = pneg %p56
        %p282 = pneg %p53
        %p283 = pneg %p77
        %p284 = pneg %p74
        %p285 = pneg %p103
        %p286 = pneg %p100
        %s287 = smul.u32 4, %s14
        %p288 = scmp.lt.s32.totalorder %s287, 15
        %s289 = scalar_select %p288, %s287, 15
        %s290 = smul.addr %s289, 8
        %s291 = scalar_lea.vmem %s3, %s290
        %s292 = smul.u32 4, %s14
        %s293 = smul.u32 4, %s14
        %p294 = scmp.lt.s32.totalorder %s293, 15
        %s295 = scalar_select %p294, %s293, 15
        %s296 = smul.addr %s295, 8
        %s297 = scalar_lea.vmem %s3, %s296
        %s298 = smul.u32 4, %s14
        %v300 = vld [vmem:[%s0] sm:$0xff]
        %v301 = vld [vmem:[%s271] sm:$0xff]
        %v302 = vld [vmem:[%s271 + $0x8] sm:$0xff]
        %v303 = vld [vmem:[%s271 + $0x10] sm:$0xff]
        %v304 = vld [vmem:[%s271 + $0x18] sm:$0xff]
        %v305 = vld [vmem:[%s271 + $0x20] sm:$0xff]
        %v306 = vld [vmem:[%s271 + $0x28] sm:$0xff]
        %v307 = vld [vmem:[%s271 + $0x30] sm:$0xff]
        %v308 = vld [vmem:[%s271 + $0x38] sm:$0xff]
        %v309 = vld [vmem:[%s271 + $0x40] sm:$0xff]
        %v310 = vld [vmem:[%s271 + $0x48] sm:$0xff]
        %v311 = vld [vmem:[%s271 + $0x50] sm:$0xff]
        %v312 = vld [vmem:[%s271 + $0x58] sm:$0xff]
        %v313 = vld [vmem:[%s271 + $0x60] sm:$0xff]
        %v314 = vld [vmem:[%s271 + $0x68] sm:$0xff]
        %v315 = vld [vmem:[%s271 + $0x70] sm:$0xff]
        %v316 = vld [vmem:[%s271 + $0x78] sm:$0xff]
        %v317 = vld [vmem:[%s271 + $0x80] sm:$0xff]
        %v318 = vld [vmem:[%s271 + $0x88] sm:$0xff]
        %v319 = vld [vmem:[%s271 + $0x90] sm:$0xff]
        %v320 = vld [vmem:[%s271 + $0x98] sm:$0xff]
        %v321 = vld [vmem:[%s271 + $0xa0] sm:$0xff]
        %v322 = vld [vmem:[%s271 + $0xa8] sm:$0xff]
        %v323 = vld [vmem:[%s271 + $0xb0] sm:$0xff]
        %v324 = vld [vmem:[%s271 + $0xb8] sm:$0xff]
        %v325 = vld [vmem:[%s271 + $0xc0] sm:$0xff]
        %v326 = vld [vmem:[%s271 + $0xc8] sm:$0xff]
        %v327 = vld [vmem:[%s271 + $0xd0] sm:$0xff]
        %v328 = vld [vmem:[%s271 + $0xd8] sm:$0xff]
        %v329 = vld [vmem:[%s271 + $0xe0] sm:$0xff]
        %v330 = vld [vmem:[%s271 + $0xe8] sm:$0xff]
        %v331 = vld [vmem:[%s271 + $0xf0] sm:$0xff]
        %v332 = vld [vmem:[%s271 + $0xf8] sm:$0xff]
        %v333 = vld [vmem:[%s271 + $0x100] sm:$0xff]
        %v334 = vld [vmem:[%s271 + $0x108] sm:$0xff]
        %v335 = vld [vmem:[%s271 + $0x110] sm:$0xff]
        %v336 = vld [vmem:[%s271 + $0x118] sm:$0xff]
        %v337 = vld [vmem:[%s271 + $0x120] sm:$0xff]
        %v338 = vld [vmem:[%s271 + $0x128] sm:$0xff]
        %v339 = vld [vmem:[%s271 + $0x130] sm:$0xff]
        %v340 = vld [vmem:[%s271 + $0x138] sm:$0xff]
        %v341 = vld [vmem:[%s271 + $0x140] sm:$0xff]
        %v342 = vld [vmem:[%s271 + $0x148] sm:$0xff]
        %v343 = vld [vmem:[%s271 + $0x150] sm:$0xff]
        %v344 = vld [vmem:[%s271 + $0x158] sm:$0xff]
        %v345 = vld [vmem:[%s271 + $0x160] sm:$0xff]
        %v346 = vld [vmem:[%s271 + $0x168] sm:$0xff]
        %v347 = vld [vmem:[%s271 + $0x170] sm:$0xff]
        %v348 = vld [vmem:[%s271 + $0x178] sm:$0xff]
        %v349 = vld [vmem:[%s271 + $0x180] sm:$0xff]
        %v350 = vld [vmem:[%s271 + $0x188] sm:$0xff]
        %v351 = vld [vmem:[%s271 + $0x190] sm:$0xff]
        %v352 = vld [vmem:[%s271 + $0x198] sm:$0xff]
        %v353 = vld [vmem:[%s271 + $0x1a0] sm:$0xff]
        %v354 = vld [vmem:[%s271 + $0x1a8] sm:$0xff]
        %v355 = vld [vmem:[%s2] sm:$0xff]
        %357 = vset.pattern.permute.xlu0 0
        %358 = vperm.xlu0 %357, %v355
        %v359 = vpop.permute.xlu0 %358
        %v362 = vunpack.c.l.b16 %v300
        %v363 = vunpack.c.h.b16 %v300
        %v364 = vpack.c.b16 %v362, %v362
        %v365 = vpack.c.b16 %v363, %v363
        %v421 = vunpack.c.l.b16 %v301
        %v422 = vunpack.c.h.b16 %v301
        %v423 = vunpack.c.l.b16 %v302
        %v424 = vunpack.c.h.b16 %v302
        %v425 = vunpack.c.l.b16 %v303
        %v426 = vunpack.c.h.b16 %v303
        %v427 = vunpack.c.l.b16 %v304
        %v428 = vunpack.c.h.b16 %v304
        %v429 = vunpack.c.l.b16 %v305
        %v430 = vunpack.c.h.b16 %v305
        %v431 = vunpack.c.l.b16 %v306
        %v432 = vunpack.c.h.b16 %v306
        %v433 = vunpack.c.l.b16 %v307
        %v434 = vunpack.c.h.b16 %v307
        %v435 = vunpack.c.l.b16 %v308
        %v436 = vunpack.c.h.b16 %v308
        %v437 = vunpack.c.l.b16 %v309
        %v438 = vunpack.c.h.b16 %v309
        %v439 = vunpack.c.l.b16 %v310
        %v440 = vunpack.c.h.b16 %v310
        %v441 = vunpack.c.l.b16 %v311
        %v442 = vunpack.c.h.b16 %v311
        %v443 = vunpack.c.l.b16 %v312
        %v444 = vunpack.c.h.b16 %v312
        %v445 = vunpack.c.l.b16 %v313
        %v446 = vunpack.c.h.b16 %v313
        %v447 = vunpack.c.l.b16 %v314
        %v448 = vunpack.c.h.b16 %v314
        %v449 = vunpack.c.l.b16 %v315
        %v450 = vunpack.c.h.b16 %v315
        %v451 = vunpack.c.l.b16 %v316
        %v452 = vunpack.c.h.b16 %v316
        %v453 = vunpack.c.l.b16 %v317
        %v454 = vunpack.c.h.b16 %v317
        %v455 = vunpack.c.l.b16 %v318
        %v456 = vunpack.c.h.b16 %v318
        %v457 = vunpack.c.l.b16 %v319
        %v458 = vunpack.c.h.b16 %v319
        %v459 = vunpack.c.l.b16 %v320
        %v460 = vunpack.c.h.b16 %v320
        %v461 = vunpack.c.l.b16 %v321
        %v462 = vunpack.c.h.b16 %v321
        %v463 = vunpack.c.l.b16 %v322
        %v464 = vunpack.c.h.b16 %v322
        %v465 = vunpack.c.l.b16 %v323
        %v466 = vunpack.c.h.b16 %v323
        %v467 = vunpack.c.l.b16 %v324
        %v468 = vunpack.c.h.b16 %v324
        %v469 = vunpack.c.l.b16 %v325
        %v470 = vunpack.c.h.b16 %v325
        %v471 = vunpack.c.l.b16 %v326
        %v472 = vunpack.c.h.b16 %v326
        %v473 = vunpack.c.l.b16 %v327
        %v474 = vunpack.c.h.b16 %v327
        %v475 = vunpack.c.l.b16 %v328
        %v476 = vunpack.c.h.b16 %v328
        %v477 = vunpack.c.l.b16 %v329
        %v478 = vunpack.c.h.b16 %v329
        %v479 = vunpack.c.l.b16 %v330
        %v480 = vunpack.c.h.b16 %v330
        %v481 = vunpack.c.l.b16 %v331
        %v482 = vunpack.c.h.b16 %v331
        %v483 = vunpack.c.l.b16 %v332
        %v484 = vunpack.c.h.b16 %v332
        %v485 = vunpack.c.l.b16 %v333
        %v486 = vunpack.c.h.b16 %v333
        %v487 = vunpack.c.l.b16 %v334
        %v488 = vunpack.c.h.b16 %v334
        %v489 = vunpack.c.l.b16 %v335
        %v490 = vunpack.c.h.b16 %v335
        %v491 = vunpack.c.l.b16 %v336
        %v492 = vunpack.c.h.b16 %v336
        %v493 = vunpack.c.l.b16 %v337
        %v494 = vunpack.c.h.b16 %v337
        %v495 = vunpack.c.l.b16 %v338
        %v496 = vunpack.c.h.b16 %v338
        %v497 = vunpack.c.l.b16 %v339
        %v498 = vunpack.c.h.b16 %v339
        %v499 = vunpack.c.l.b16 %v340
        %v500 = vunpack.c.h.b16 %v340
        %v501 = vunpack.c.l.b16 %v341
        %v502 = vunpack.c.h.b16 %v341
        %v503 = vunpack.c.l.b16 %v342
        %v504 = vunpack.c.h.b16 %v342
        %v505 = vunpack.c.l.b16 %v343
        %v506 = vunpack.c.h.b16 %v343
        %v507 = vunpack.c.l.b16 %v344
        %v508 = vunpack.c.h.b16 %v344
        %v509 = vunpack.c.l.b16 %v345
        %v510 = vunpack.c.h.b16 %v345
        %v511 = vunpack.c.l.b16 %v346
        %v512 = vunpack.c.h.b16 %v346
        %v513 = vunpack.c.l.b16 %v347
        %v514 = vunpack.c.h.b16 %v347
        %v515 = vunpack.c.l.b16 %v348
        %v516 = vunpack.c.h.b16 %v348
        %v517 = vunpack.c.l.b16 %v349
        %v518 = vunpack.c.h.b16 %v349
        %v519 = vunpack.c.l.b16 %v350
        %v520 = vunpack.c.h.b16 %v350
        %v521 = vunpack.c.l.b16 %v351
        %v522 = vunpack.c.h.b16 %v351
        %v523 = vunpack.c.l.b16 %v352
        %v524 = vunpack.c.h.b16 %v352
        %v525 = vunpack.c.l.b16 %v353
        %v526 = vunpack.c.h.b16 %v353
        %v527 = vunpack.c.l.b16 %v354
        %v528 = vunpack.c.h.b16 %v354
        %v529 = vpack.c.b16 %v425, %v421
        %v530 = vpack.c.b16 %v426, %v422
        %v531 = vpack.c.b16 %v427, %v423
        %v532 = vpack.c.b16 %v428, %v424
        %v533 = vpack.c.b16 %v433, %v429
        %v534 = vpack.c.b16 %v434, %v430
        %v535 = vpack.c.b16 %v435, %v431
        %v536 = vpack.c.b16 %v436, %v432
        %v537 = vpack.c.b16 %v441, %v437
        %v538 = vpack.c.b16 %v442, %v438
        %v539 = vpack.c.b16 %v443, %v439
        %v540 = vpack.c.b16 %v444, %v440
        %v541 = vpack.c.b16 %v449, %v445
        %v542 = vpack.c.b16 %v450, %v446
        %v543 = vpack.c.b16 %v451, %v447
        %v544 = vpack.c.b16 %v452, %v448
        %v545 = vpack.c.b16 %v457, %v453
        %v546 = vpack.c.b16 %v458, %v454
        %v547 = vpack.c.b16 %v459, %v455
        %v548 = vpack.c.b16 %v460, %v456
        %v549 = vpack.c.b16 %v465, %v461
        %v550 = vpack.c.b16 %v466, %v462
        %v551 = vpack.c.b16 %v467, %v463
        %v552 = vpack.c.b16 %v468, %v464
        %v553 = vpack.c.b16 %v473, %v469
        %v554 = vpack.c.b16 %v474, %v470
        %v555 = vpack.c.b16 %v475, %v471
        %v556 = vpack.c.b16 %v476, %v472
        %v557 = vpack.c.b16 %v481, %v477
        %v558 = vpack.c.b16 %v482, %v478
        %v559 = vpack.c.b16 %v483, %v479
        %v560 = vpack.c.b16 %v484, %v480
        %v561 = vpack.c.b16 %v489, %v485
        %v562 = vpack.c.b16 %v490, %v486
        %v563 = vpack.c.b16 %v491, %v487
        %v564 = vpack.c.b16 %v492, %v488
        %v565 = vpack.c.b16 %v497, %v493
        %v566 = vpack.c.b16 %v498, %v494
        %v567 = vpack.c.b16 %v499, %v495
        %v568 = vpack.c.b16 %v500, %v496
        %v569 = vpack.c.b16 %v505, %v501
        %v570 = vpack.c.b16 %v506, %v502
        %v571 = vpack.c.b16 %v507, %v503
        %v572 = vpack.c.b16 %v508, %v504
        %v573 = vpack.c.b16 %v513, %v509
        %v574 = vpack.c.b16 %v514, %v510
        %v575 = vpack.c.b16 %v515, %v511
        %v576 = vpack.c.b16 %v516, %v512
        %v577 = vpack.c.b16 %v521, %v517
        %v578 = vpack.c.b16 %v522, %v518
        %v579 = vpack.c.b16 %v523, %v519
        %v580 = vpack.c.b16 %v524, %v520
        %v581 = vpack.c.b16 %v525, %v525
        %v582 = vpack.c.b16 %v526, %v526
        %v583 = vpack.c.b16 %v527, %v527
        %v584 = vpack.c.b16 %v528, %v528
        %vm637 = vcmask 719872
        %v639 = vsel %vm637, %v365, 0
        %vm641 = vcmask 1043456
        %v643 = vsel %vm641, %v581, 0
        %v646 = vsel %vm641, %v582, 0
        %v649 = vsel %vm641, %v583, 0
        %v652 = vsel %vm641, %v584, 0
        %654 = vmatprep.subr.bf16.mxu0 %v530
        %655 = vmatpush1.bf16.msra.mxu0 %v529
        %656 = vmatprep.subr.bf16.mxu0 %v534
        %657 = vmatpush1.bf16.msra.mxu0 %v533
        %658 = vmatprep.subr.bf16.mxu0 %v538
        %659 = vmatpush1.bf16.msra.mxu0 %v537
        %660 = vmatprep.subr.bf16.mxu0 %v542
        %661 = vmatpush1.bf16.msra.mxu0 %v541
        %662 = vmatprep.subr.bf16.mxu0 %v546
        %663 = vmatpush1.bf16.msra.mxu0 %v545
        %664 = vmatprep.subr.bf16.mxu0 %v550
        %665 = vmatpush1.bf16.msra.mxu0 %v549
        %666 = vmatprep.subr.bf16.mxu0 %v554
        %667 = vmatpush1.bf16.msra.mxu0 %v553
        %668 = vmatprep.subr.bf16.mxu0 %v558
        %669 = vmatpush1.bf16.msra.mxu0 %v557
        %670 = vmatprep.subr.bf16.mxu0 %v562
        %671 = vmatpush1.bf16.msra.mxu0 %v561
        %672 = vmatprep.subr.bf16.mxu0 %v566
        %673 = vmatpush1.bf16.msra.mxu0 %v565
        %674 = vmatprep.subr.bf16.mxu0 %v570
        %675 = vmatpush1.bf16.msra.mxu0 %v569
        %676 = vmatprep.subr.bf16.mxu0 %v574
        %677 = vmatpush1.bf16.msra.mxu0 %v573
        %678 = vmatprep.subr.bf16.mxu0 %v578
        %679 = vmatpush1.bf16.msra.mxu0 %v577
        %680 = vmatprep.subr.bf16.mxu0 %v646
        %681 = vmatpush1.bf16.msra.mxu0 %v643
        %682 = vmatprep.subr.bf16.mxu0 0
        %683 = vmatpush1.bf16.msra.mxu0 0
        %684 = vmatprep.subr.bf16.mxu0 0
        %685 = vmatpush1.bf16.msra.mxu0 0
        %686 = vmatprep.mubr.bf16.mxu0 %v639
        %687 = vmatmul.mubr.bf16.gmra.mrb[0].mxu0 %v364
        %v688 = vpop.f32.mrb[0].mxu0
        %v689 = vadd.f32 %v359, %v688
        %v690 = vpop.f32.mrb[0].mxu0
        %v691 = vadd.f32 %v359, %v690
        %v692 = vpop.f32.mrb[0].mxu0
        %v693 = vpop.f32.mrb[0].mxu0
        %694 = vdwg.mxu0
        %695 = vmatprep.subr.bf16.mxu0 %v532
        %696 = vmatpush1.bf16.msra.mxu0 %v531
        %697 = vmatprep.subr.bf16.mxu0 %v536
        %698 = vmatpush1.bf16.msra.mxu0 %v535
        %699 = vmatprep.subr.bf16.mxu0 %v540
        %700 = vmatpush1.bf16.msra.mxu0 %v539
        %701 = vmatprep.subr.bf16.mxu0 %v544
        %702 = vmatpush1.bf16.msra.mxu0 %v543
        %703 = vmatprep.subr.bf16.mxu0 %v548
        %704 = vmatpush1.bf16.msra.mxu0 %v547
        %705 = vmatprep.subr.bf16.mxu0 %v552
        %706 = vmatpush1.bf16.msra.mxu0 %v551
        %707 = vmatprep.subr.bf16.mxu0 %v556
        %708 = vmatpush1.bf16.msra.mxu0 %v555
        %709 = vmatprep.subr.bf16.mxu0 %v560
        %710 = vmatpush1.bf16.msra.mxu0 %v559
        %711 = vmatprep.subr.bf16.mxu0 %v564
        %712 = vmatpush1.bf16.msra.mxu0 %v563
        %713 = vmatprep.subr.bf16.mxu0 %v568
        %714 = vmatpush1.bf16.msra.mxu0 %v567
        %715 = vmatprep.subr.bf16.mxu0 %v572
        %716 = vmatpush1.bf16.msra.mxu0 %v571
        %717 = vmatprep.subr.bf16.mxu0 %v576
        %718 = vmatpush1.bf16.msra.mxu0 %v575
        %719 = vmatprep.subr.bf16.mxu0 %v580
        %720 = vmatpush1.bf16.msra.mxu0 %v579
        %721 = vmatprep.subr.bf16.mxu0 %v652
        %722 = vmatpush1.bf16.msra.mxu0 %v649
        %723 = vmatprep.subr.bf16.mxu0 0
        %724 = vmatpush1.bf16.msra.mxu0 0
        %725 = vmatprep.subr.bf16.mxu0 0
        %726 = vmatpush1.bf16.msra.mxu0 0
        %727 = vmatprep.mubr.bf16.mxu0 %v639
        %728 = vmatmul.mubr.bf16.gmra.mrb[0].mxu0 %v364
        %v729 = vpop.f32.mrb[0].mxu0
        %v730 = vadd.f32 %v359, %v729
        %v731 = vpop.f32.mrb[0].mxu0
        %v732 = vadd.f32 %v359, %v731
        %v733 = vpop.f32.mrb[0].mxu0
        %v734 = vpop.f32.mrb[0].mxu0
        %735 = vdwg.mxu0
        %vm736 = vcmp.ge.f32.partialorder %v689, 0.0
        %vm737 = vcmp.ge.f32.partialorder %v691, 0.0
        %vm738 = vcmp.ge.f32.partialorder %v730, 0.0
        %vm739 = vcmp.ge.f32.partialorder %v732, 0.0
        %v740 = vmul.f32 %v689, 0.2
        %v741 = vmul.f32 %v691, 0.2
        %v742 = vmul.f32 %v730, 0.2
        %v743 = vmul.f32 %v732, 0.2
        %v744 = vsel %vm736, %v689, %v740
        %v745 = vsel %vm737, %v691, %v741
        %v746 = vsel %vm738, %v730, %v742
        %v747 = vsel %vm739, %v732, %v743
        %748 = vst [vmem:[%s297] sm:$0xff] %v744
        %749 = vst [vmem:[%s297 + $0x8] sm:$0xff] %v745
        %750 = vst [vmem:[%s297 + $0x10] sm:$0xff] %v746
        %751 = vst [vmem:[%s297 + $0x18] sm:$0xff] %v747
        %s752 = smul.u32 4, %s14
        %p753 = scmp.lt.s32.totalorder %s752, 15
        %s754 = scalar_select %p753, %s752, 15
        %s755 = smul.addr %s754, 8
        %s756 = scalar_lea.vmem %s3, %s755
        // Predicated region
        $region56: #{generator_forward.28} parent=50 // pred_check
          %p757 = pneg %p100
        $region57: #{generator_forward.28} parent=50 // pred_check_branch
          %759 = sbr.rel (%p757) target = $region59
        $region58: #{generator_forward.28} parent=50 // pred_region
          %s760 = smul.u32 4, %s14
        $region59: #{generator_forward.28} parent=50 // pred_fallthru
          _
      $region51: #{generator_forward.28} parent=5 // pred_fallthru
        _
      %p761 = scmp.le.s32.totalorder 2, %s9
      // Predicated region
      $region60: #{generator_forward.28} parent=5 // pred_check
        %p762 = pneg %p761
      $region61: #{generator_forward.28} parent=5 // pred_check_branch
        %764 = sbr.rel (%p762) target = $region63
      $region62: #{generator_forward.28} parent=5 // pred_region
        %s765 = ssub.s32 %s9, 2
        // Predicated region
        $region64: #{generator_forward.28} parent=62 // pred_check
          %p766 = pneg %p106
        $region65: #{generator_forward.28} parent=62 // pred_check_branch
          %768 = sbr.rel (%p766) target = $region67
        $region66: #{generator_forward.28} parent=62 // pred_region
          %s769 = smul.u32 4, %s15
          %p770 = scmp.lt.s32.totalorder %s769, 15
          %s771 = scalar_select %p770, %s769, 15
          %s772 = smul.addr %s771, 8
          %s773 = scalar_lea.vmem %s3, %s772
        $region67: #{generator_forward.28} parent=62 // pred_fallthru
          _
      $region63: #{generator_forward.28} parent=5 // pred_fallthru
        _
    $region6: #{generator_forward.28} parent=1 // loop_footer
      %s13 = sadd.s32 1, %s9
    $region7: #{generator_forward.28} parent=1 // loop_footer_branch
      %8 = sbr.rel target = $region3
    $region8: #{generator_forward.28} parent=1 // loop_exit
      _

// kernel: generator_forward.31
$region0: #{generator_forward.31}
  #allocation0 [shape = 'u32[]', space=smem, size = 0x4, offset = 0x4, fixed_abs, tag = 'smem constant byte address 0x4 - core index']
  #allocation1 [shape = 'u32[144,128]{1,0:T(1,128)}', space=vmem, size = 0x12000, scoped, tag = 'internal scratch']
  %s0 = inlined_call_operand.vmem [shape: bf16[4,108], index: 0, kind: input, shape index: {}]
  %s1 = inlined_call_operand.vmem [shape: bf16[108,16384], index: 1, kind: input, shape index: {}]
  %s2 = inlined_call_operand.vmem [shape: f32[4,1], index: 2, kind: input, shape index: {}]
  %s3 = inlined_call_operand.vmem [shape: f32[4,16384], index: 3, kind: output, shape index: {}]
  %s4 = sld [smem:[#allocation0]]
  $region68: #{generator_forward.31} parent=0
    _
  %s6 = ssub.s32 1, %s4
  %s7 = scalar_select 0, %s6, %s4
  $region1: #{generator_forward.31} parent=0
    #allocation2 [shape = 'u8[229376]{0}', space=vmem, size = 0x38000, scoped, tag = 'input window, operand 1']
    loop: start=0, step=1, limit=34
    $region2: #{generator_forward.31} parent=1 // loop_pre_header
      _
    $region3: #{generator_forward.31} parent=1 // loop_header
      %s9 = sphi 0, %s13
      %p10 = scmp.ge.s32.totalorder %s9, 34
      %s17 = sphi 0, %s17
      %s19 = sphi 0, %s17
      %s20 = sphi 0, %s19
      %s34 = sphi 0, %s20
      %s40 = sphi 0, %s42
      %s43 = sphi 0, %s40
      %s44 = sphi 0, %s43
      %s60 = sphi 0, %s44
      %s64 = sphi 0, %s64
      %s66 = sphi 0, %s64
      %s67 = sphi 0, %s66
      %s81 = sphi 0, %s67
      %s87 = sphi 0, %s89
      %s90 = sphi 0, %s87
      %s91 = sphi 0, %s90
      %s107 = sphi 0, %s91
    $region4: #{generator_forward.31} parent=1 // loop_header_branch
      %12 = sbr.rel (%p10) target = $region8
    $region5: #{generator_forward.31} parent=1 // loop_body
      %s14 = ssub.s32 %s9, 1
      %s15 = ssub.s32 %s9, 2
      %s16 = sadd.s32 %s9, 1
      %s18 = sadd.s32 %s17, 1
      %p21 = scmp.eq.s32.totalorder %s9, 31
      %p22 = scmp.ne.s32.totalorder %s17, %s19
      %p23 = scmp.eq.s32.totalorder %s9, 0
      %p24 = por %p22, %p23
      %p25 = scmp.ne.s32.totalorder %s17, %s19
      %p26 = scmp.eq.s32.totalorder %s14, 31
      %p27 = por %p25, %p26
      %p28 = scmp.ne.s32.totalorder %s19, %s20
      %p29 = scmp.eq.s32.totalorder %s14, 0
      %p30 = por %p28, %p29
      %p31 = scmp.ne.s32.totalorder %s19, %s20
      %p32 = scmp.eq.s32.totalorder %s15, 31
      %p33 = por %p31, %p32
      %p35 = scmp.ne.s32.totalorder %s20, %s34
      %p36 = scmp.eq.s32.totalorder %s15, 0
      %p37 = por %p35, %p36
      %s38 = ssub.s32 %s9, %s16
      %p39 = scmp.eq.s32.totalorder %s38, 0
      %s41 = sadd.s32 %s40, 1
      %s42 = scalar_select %p39, %s40, %s41
      %p45 = pneg %p39
      %p46 = scmp.eq.s32.totalorder %s9, 31
      %p47 = por %p45, %p46
      %p48 = scmp.ne.s32.totalorder %s40, %s43
      %p49 = scmp.eq.s32.totalorder %s9, 0
      %p50 = por %p48, %p49
      %p51 = scmp.ne.s32.totalorder %s40, %s43
      %p52 = scmp.eq.s32.totalorder %s14, 31
      %p53 = por %p51, %p52
      %p54 = scmp.ne.s32.totalorder %s43, %s44
      %p55 = scmp.eq.s32.totalorder %s14, 0
      %p56 = por %p54, %p55
      %p57 = scmp.ne.s32.totalorder %s43, %s44
      %p58 = scmp.eq.s32.totalorder %s15, 31
      %p59 = por %p57, %p58
      %p61 = scmp.ne.s32.totalorder %s44, %s60
      %p62 = scmp.eq.s32.totalorder %s15, 0
      %p63 = por %p61, %p62
      %s65 = sadd.s32 %s64, 1
      %p68 = scmp.eq.s32.totalorder %s9, 31
      %p69 = scmp.ne.s32.totalorder %s64, %s66
      %p70 = scmp.eq.s32.totalorder %s9, 0
      %p71 = por %p69, %p70
      %p72 = scmp.ne.s32.totalorder %s64, %s66
      %p73 = scmp.eq.s32.totalorder %s14, 31
      %p74 = por %p72, %p73
      %p75 = scmp.ne.s32.totalorder %s66, %s67
      %p76 = scmp.eq.s32.totalorder %s14, 0
      %p77 = por %p75, %p76
      %p78 = scmp.ne.s32.totalorder %s66, %s67
      %p79 = scmp.eq.s32.totalorder %s15, 31
      %p80 = por %p78, %p79
      %p82 = scmp.ne.s32.totalorder %s67, %s81
      %p83 = scmp.eq.s32.totalorder %s15, 0
      %p84 = por %p82, %p83
      %s85 = ssub.s32 %s9, %s16
      %p86 = scmp.eq.s32.totalorder %s85, 0
      %s88 = sadd.s32 %s87, 1
      %s89 = scalar_select %p86, %s87, %s88
      %p92 = pneg %p86
      %p93 = scmp.eq.s32.totalorder %s9, 31
      %p94 = por %p92, %p93
      %p95 = scmp.ne.s32.totalorder %s87, %s90
      %p96 = scmp.eq.s32.totalorder %s9, 0
      %p97 = por %p95, %p96
      %p98 = scmp.ne.s32.totalorder %s87, %s90
      %p99 = scmp.eq.s32.totalorder %s14, 31
      %p100 = por %p98, %p99
      %p101 = scmp.ne.s32.totalorder %s90, %s91
      %p102 = scmp.eq.s32.totalorder %s14, 0
      %p103 = por %p101, %p102
      %p104 = scmp.ne.s32.totalorder %s90, %s91
      %p105 = scmp.eq.s32.totalorder %s15, 31
      %p106 = por %p104, %p105
      %p108 = scmp.ne.s32.totalorder %s91, %s107
      %p109 = scmp.eq.s32.totalorder %s15, 0
      %p110 = por %p108, %p109
      %p111 = scmp.le.s32.totalorder 1, %s9
      %p112 = scmp.lt.s32.totalorder %s9, 33
      %p113 = pnand %p111, %p112
      %p114 = pneg %p113
      // Predicated region
      $region9: #{generator_forward.31} parent=5 // pred_check
        _
      $region10: #{generator_forward.31} parent=5 // pred_check_branch
        %116 = sbr.rel (%p113) target = $region12
      $region11: #{generator_forward.31} parent=5 // pred_region
        %s117 = ssub.s32 %s9, 1
        // Predicated region
        $region13: #{generator_forward.31} parent=11 // pred_check
          %p118 = pneg %p30
        $region14: #{generator_forward.31} parent=11 // pred_check_branch
          %120 = sbr.rel (%p118) target = $region16
        $region15: #{generator_forward.31} parent=11 // pred_region
          _
        $region16: #{generator_forward.31} parent=11 // pred_fallthru
          _
        // Predicated region
        $region17: #{generator_forward.31} parent=11 // pred_check
          %p121 = pneg %p77
        $region18: #{generator_forward.31} parent=11 // pred_check_branch
          %123 = sbr.rel (%p121) target = $region20
        $region19: #{generator_forward.31} parent=11 // pred_region
          _
        $region20: #{generator_forward.31} parent=11 // pred_fallthru
          _
      $region12: #{generator_forward.31} parent=5 // pred_fallthru
        _
      %p124 = scmp.lt.s32.totalorder %s9, 32
      // Predicated region
      $region21: #{generator_forward.31} parent=5 // pred_check
        %p125 = pneg %p124
      $region22: #{generator_forward.31} parent=5 // pred_check_branch
        %127 = sbr.rel (%p125) target = $region24
      $region23: #{generator_forward.31} parent=5 // pred_region
        // Predicated region
        $region25: #{generator_forward.31} parent=23 // pred_check
          %p128 = pneg %p50
        $region26: #{generator_forward.31} parent=23 // pred_check_branch
          %130 = sbr.rel (%p128) target = $region28
        $region27: #{generator_forward.31} parent=23 // pred_region
          %s131 = sand.u32 %s40, 1
          %s132 = sand.u32 %s40, 1
          %s133 = smul.addr %s132, 224
          %s134 = scalar_lea.vmem [#allocation2], %s133
          %s135 = smul.u32 4, %s9
          %s136 = smul.addr %s135, 4
          %s137 = scalar_lea.vmem %s1, %s136
          // Predicated region
          $region29: #{generator_forward.31} parent=27 // pred_check
            _
          $region30: #{generator_forward.31} parent=27 // pred_check_branch
            %139 = sbr.rel (0) target = $region32
          $region31: #{generator_forward.31} parent=27 // pred_region
            // Predicated region
            $region33: #{generator_forward.31} parent=31 // pred_check
              _
            $region34: #{generator_forward.31} parent=31 // pred_check_branch
              %141 = sbr.rel (0) target = $region36
            $region35: #{generator_forward.31} parent=31 // pred_region
              loop: start=0, step=1, limit=1
              $region37: #{generator_forward.31} parent=35 // loop_pre_header
                _
              $region38: #{generator_forward.31} parent=35 // loop_header
                %s143 = sphi 0, %s147
                %p144 = scmp.ge.s32.totalorder %s143, 1
                %s148 = sphi %s137, %s137
                %s149 = sphi %s134, %s134
              $region39: #{generator_forward.31} parent=35 // loop_header_branch
                %146 = sbr.rel (%p144) target = $region43
              $region40: #{generator_forward.31} parent=35 // loop_body
                %v150 = vld [vmem:[%s148] sm:$0xff]
                %151 = vst [vmem:[%s149] sm:$0xff] %v150
                %v152 = vld [vmem:[%s148 + $0x8] sm:$0xff]
                %153 = vst [vmem:[%s149 + $0x8] sm:$0xff] %v152
                %v154 = vld [vmem:[%s148 + $0x200] sm:$0xff]
                %155 = vst [vmem:[%s149 + $0x10] sm:$0xff] %v154
                %v156 = vld [vmem:[%s148 + $0x208] sm:$0xff]
                %157 = vst [vmem:[%s149 + $0x18] sm:$0xff] %v156
                %v158 = vld [vmem:[%s148 + $0x400] sm:$0xff]
                %159 = vst [vmem:[%s149 + $0x20] sm:$0xff] %v158
                %v160 = vld [vmem:[%s148 + $0x408] sm:$0xff]
                %161 = vst [vmem:[%s149 + $0x28] sm:$0xff] %v160
                %v162 = vld [vmem:[%s148 + $0x600] sm:$0xff]
                %163 = vst [vmem:[%s149 + $0x30] sm:$0xff] %v162
                %v164 = vld [vmem:[%s148 + $0x608] sm:$0xff]
                %165 = vst [vmem:[%s149 + $0x38] sm:$0xff] %v164
                %v166 = vld [vmem:[%s148 + $0x800] sm:$0xff]
                %167 = vst [vmem:[%s149 + $0x40] sm:$0xff] %v166
                %v168 = vld [vmem:[%s148 + $0x808] sm:$0xff]
                %169 = vst [vmem:[%s149 + $0x48] sm:$0xff] %v168
                %v170 = vld [vmem:[%s148 + $0xa00] sm:$0xff]
                %171 = vst [vmem:[%s149 + $0x50] sm:$0xff] %v170
                %v172 = vld [vmem:[%s148 + $0xa08] sm:$0xff]
                %173 = vst [vmem:[%s149 + $0x58] sm:$0xff] %v172
                %v174 = vld [vmem:[%s148 + $0xc00] sm:$0xff]
                %175 = vst [vmem:[%s149 + $0x60] sm:$0xff] %v174
                %v176 = vld [vmem:[%s148 + $0xc08] sm:$0xff]
                %177 = vst [vmem:[%s149 + $0x68] sm:$0xff] %v176
                %v178 = vld [vmem:[%s148 + $0xe00] sm:$0xff]
                %179 = vst [vmem:[%s149 + $0x70] sm:$0xff] %v178
                %v180 = vld [vmem:[%s148 + $0xe08] sm:$0xff]
                %181 = vst [vmem:[%s149 + $0x78] sm:$0xff] %v180
                %v182 = vld [vmem:[%s148 + $0x1000] sm:$0xff]
                %183 = vst [vmem:[%s149 + $0x80] sm:$0xff] %v182
                %v184 = vld [vmem:[%s148 + $0x1008] sm:$0xff]
                %185 = vst [vmem:[%s149 + $0x88] sm:$0xff] %v184
                %v186 = vld [vmem:[%s148 + $0x1200] sm:$0xff]
                %187 = vst [vmem:[%s149 + $0x90] sm:$0xff] %v186
                %v188 = vld [vmem:[%s148 + $0x1208] sm:$0xff]
                %189 = vst [vmem:[%s149 + $0x98] sm:$0xff] %v188
                %v190 = vld [vmem:[%s148 + $0x1400] sm:$0xff]
                %191 = vst [vmem:[%s149 + $0xa0] sm:$0xff] %v190
                %v192 = vld [vmem:[%s148 + $0x1408] sm:$0xff]
                %193 = vst [vmem:[%s149 + $0xa8] sm:$0xff] %v192
                %v194 = vld [vmem:[%s148 + $0x1600] sm:$0xff]
                %195 = vst [vmem:[%s149 + $0xb0] sm:$0xff] %v194
                %v196 = vld [vmem:[%s148 + $0x1608] sm:$0xff]
                %197 = vst [vmem:[%s149 + $0xb8] sm:$0xff] %v196
                %v198 = vld [vmem:[%s148 + $0x1800] sm:$0xff]
                %199 = vst [vmem:[%s149 + $0xc0] sm:$0xff] %v198
                %v200 = vld [vmem:[%s148 + $0x1808] sm:$0xff]
                %201 = vst [vmem:[%s149 + $0xc8] sm:$0xff] %v200
                %v202 = vld [vmem:[%s148 + $0x1a00] sm:$0xff]
                %203 = vst [vmem:[%s149 + $0xd0] sm:$0xff] %v202
                %v204 = vld [vmem:[%s148 + $0x1a08] sm:$0xff]
                %205 = vst [vmem:[%s149 + $0xd8] sm:$0xff] %v204
              $region41: #{generator_forward.31} parent=35 // loop_footer
                %s147 = sadd.s32 1, %s143
              $region42: #{generator_forward.31} parent=35 // loop_footer_branch
                %142 = sbr.rel target = $region38
              $region43: #{generator_forward.31} parent=35 // loop_exit
                _
            $region36: #{generator_forward.31} parent=31 // pred_fallthru
              _
            // Predicated region
            $region44: #{generator_forward.31} parent=31 // pred_check
              _
            $region45: #{generator_forward.31} parent=31 // pred_check_branch
              %207 = sbr.rel target = $region47
            $region46: #{generator_forward.31} parent=31 // pred_region
              _
            $region47: #{generator_forward.31} parent=31 // pred_fallthru
              _
          $region32: #{generator_forward.31} parent=27 // pred_fallthru
            _
          %208 = vnop
        $region28: #{generator_forward.31} parent=23 // pred_fallthru
          _
      $region24: #{generator_forward.31} parent=5 // pred_fallthru
        _
      %p209 = scmp.le.s32.totalorder 1, %s9
      %p210 = scmp.lt.s32.totalorder %s9, 33
      %p211 = pnand %p209, %p210
      %p212 = pneg %p211
      // Predicated region
      $region48: #{generator_forward.31} parent=5 // pred_check
        _
      $region49: #{generator_forward.31} parent=5 // pred_check_branch
        %214 = sbr.rel (%p211) target = $region51
      $region50: #{generator_forward.31} parent=5 // pred_region
        %s215 = ssub.s32 %s9, 1
        %s216 = sand.u32 %s43, 1
        %s217 = sand.u32 %s43, 1
        %s218 = smul.addr %s217, 224
        %s219 = scalar_lea.vmem [#allocation2], %s218
        // Predicated region
        $region52: #{generator_forward.31} parent=50 // pred_check
          %p220 = pneg %p56
        $region53: #{generator_forward.31} parent=50 // pred_check_branch
          %222 = sbr.rel (%p220) target = $region55
        $region54: #{generator_forward.31} parent=50 // pred_region
          _
        $region55: #{generator_forward.31} parent=50 // pred_fallthru
          _
        %p223 = pneg %p30
        %p224 = pneg %p27
        %s225 = sand.u32 %s43, 1
        %s226 = sand.u32 %s43, 1
        %s227 = smul.addr %s226, 224
        %s228 = scalar_lea.vmem [#allocation2], %s227
        %p229 = pneg %p56
        %p230 = pneg %p53
        %p231 = pneg %p77
        %p232 = pneg %p74
        %p233 = pneg %p103
        %p234 = pneg %p100
        %s235 = smul.u32 4, %s14
        %p236 = scmp.lt.s32.totalorder %s235, 127
        %s237 = scalar_select %p236, %s235, 127
        %s238 = smul.addr %s237, 4
        %s239 = scalar_lea.vmem %s3, %s238
        %s240 = smul.u32 4, %s14
        %s241 = smul.u32 4, %s14
        %p242 = scmp.lt.s32.totalorder %s241, 127
        %s243 = scalar_select %p242, %s241, 127
        %s244 = smul.addr %s243, 4
        %s245 = scalar_lea.vmem %s3, %s244
        %s246 = smul.u32 4, %s14
        %v248 = vld [vmem:[%s0] sm:$0x3]
        %v249 = vld [vmem:[%s219] sm:$0xff]
        %v250 = vld [vmem:[%s219 + $0x8] sm:$0xff]
        %v251 = vld [vmem:[%s219 + $0x10] sm:$0xff]
        %v252 = vld [vmem:[%s219 + $0x18] sm:$0xff]
        %v253 = vld [vmem:[%s219 + $0x20] sm:$0xff]
        %v254 = vld [vmem:[%s219 + $0x28] sm:$0xff]
        %v255 = vld [vmem:[%s219 + $0x30] sm:$0xff]
        %v256 = vld [vmem:[%s219 + $0x38] sm:$0xff]
        %v257 = vld [vmem:[%s219 + $0x40] sm:$0xff]
        %v258 = vld [vmem:[%s219 + $0x48] sm:$0xff]
        %v259 = vld [vmem:[%s219 + $0x50] sm:$0xff]
        %v260 = vld [vmem:[%s219 + $0x58] sm:$0xff]
        %v261 = vld [vmem:[%s219 + $0x60] sm:$0xff]
        %v262 = vld [vmem:[%s219 + $0x68] sm:$0xff]
        %v263 = vld [vmem:[%s219 + $0x70] sm:$0xff]
        %v264 = vld [vmem:[%s219 + $0x78] sm:$0xff]
        %v265 = vld [vmem:[%s219 + $0x80] sm:$0xff]
        %v266 = vld [vmem:[%s219 + $0x88] sm:$0xff]
        %v267 = vld [vmem:[%s219 + $0x90] sm:$0xff]
        %v268 = vld [vmem:[%s219 + $0x98] sm:$0xff]
        %v269 = vld [vmem:[%s219 + $0xa0] sm:$0xff]
        %v270 = vld [vmem:[%s219 + $0xa8] sm:$0xff]
        %v271 = vld [vmem:[%s219 + $0xb0] sm:$0xff]
        %v272 = vld [vmem:[%s219 + $0xb8] sm:$0xff]
        %v273 = vld [vmem:[%s219 + $0xc0] sm:$0xff]
        %v274 = vld [vmem:[%s219 + $0xc8] sm:$0xff]
        %v275 = vld [vmem:[%s219 + $0xd0] sm:$0x33]
        %v276 = vld [vmem:[%s219 + $0xd8] sm:$0x33]
        %v277 = vld [vmem:[%s2] sm:$0xf]
        %279 = vset.pattern.permute.xlu0 0
        %280 = vperm.xlu0 %279, %v277
        %v281 = vpop.permute.xlu0 %280
        %v311 = vunpack.c.l.b16 %v249
        %v312 = vunpack.c.h.b16 %v249
        %v313 = vunpack.c.l.b16 %v250
        %v314 = vunpack.c.h.b16 %v250
        %v315 = vunpack.c.l.b16 %v251
        %v316 = vunpack.c.h.b16 %v251
        %v317 = vunpack.c.l.b16 %v252
        %v318 = vunpack.c.h.b16 %v252
        %v319 = vunpack.c.l.b16 %v253
        %v320 = vunpack.c.h.b16 %v253
        %v321 = vunpack.c.l.b16 %v254
        %v322 = vunpack.c.h.b16 %v254
        %v323 = vunpack.c.l.b16 %v255
        %v324 = vunpack.c.h.b16 %v255
        %v325 = vunpack.c.l.b16 %v256
        %v326 = vunpack.c.h.b16 %v256
        %v327 = vunpack.c.l.b16 %v257
        %v328 = vunpack.c.h.b16 %v257
        %v329 = vunpack.c.l.b16 %v258
        %v330 = vunpack.c.h.b16 %v258
        %v331 = vunpack.c.l.b16 %v259
        %v332 = vunpack.c.h.b16 %v259
        %v333 = vunpack.c.l.b16 %v260
        %v334 = vunpack.c.h.b16 %v260
        %v335 = vunpack.c.l.b16 %v261
        %v336 = vunpack.c.h.b16 %v261
        %v337 = vunpack.c.l.b16 %v262
        %v338 = vunpack.c.h.b16 %v262
        %v339 = vunpack.c.l.b16 %v263
        %v340 = vunpack.c.h.b16 %v263
        %v341 = vunpack.c.l.b16 %v264
        %v342 = vunpack.c.h.b16 %v264
        %v343 = vunpack.c.l.b16 %v265
        %v344 = vunpack.c.h.b16 %v265
        %v345 = vunpack.c.l.b16 %v266
        %v346 = vunpack.c.h.b16 %v266
        %v347 = vunpack.c.l.b16 %v267
        %v348 = vunpack.c.h.b16 %v267
        %v349 = vunpack.c.l.b16 %v268
        %v350 = vunpack.c.h.b16 %v268
        %v351 = vunpack.c.l.b16 %v269
        %v352 = vunpack.c.h.b16 %v269
        %v353 = vunpack.c.l.b16 %v270
        %v354 = vunpack.c.h.b16 %v270
        %v355 = vunpack.c.l.b16 %v271
        %v356 = vunpack.c.h.b16 %v271
        %v357 = vunpack.c.l.b16 %v272
        %v358 = vunpack.c.h.b16 %v272
        %v359 = vunpack.c.l.b16 %v273
        %v360 = vunpack.c.h.b16 %v273
        %v361 = vunpack.c.l.b16 %v274
        %v362 = vunpack.c.h.b16 %v274
        %v363 = vunpack.c.l.b16 %v275
        %v364 = vunpack.c.h.b16 %v275
        %v365 = vunpack.c.l.b16 %v276
        %v366 = vunpack.c.h.b16 %v276
        %v367 = vpack.c.b16 %v315, %v311
        %v368 = vpack.c.b16 %v316, %v312
        %v369 = vpack.c.b16 %v317, %v313
        %v370 = vpack.c.b16 %v318, %v314
        %v371 = vpack.c.b16 %v323, %v319
        %v372 = vpack.c.b16 %v324, %v320
        %v373 = vpack.c.b16 %v325, %v321
        %v374 = vpack.c.b16 %v326, %v322
        %v375 = vpack.c.b16 %v331, %v327
        %v376 = vpack.c.b16 %v332, %v328
        %v377 = vpack.c.b16 %v333, %v329
        %v378 = vpack.c.b16 %v334, %v330
        %v379 = vpack.c.b16 %v339, %v335
        %v380 = vpack.c.b16 %v340, %v336
        %v381 = vpack.c.b16 %v341, %v337
        %v382 = vpack.c.b16 %v342, %v338
        %v383 = vpack.c.b16 %v347, %v343
        %v384 = vpack.c.b16 %v348, %v344
        %v385 = vpack.c.b16 %v349, %v345
        %v386 = vpack.c.b16 %v350, %v346
        %v387 = vpack.c.b16 %v355, %v351
        %v388 = vpack.c.b16 %v356, %v352
        %v389 = vpack.c.b16 %v357, %v353
        %v390 = vpack.c.b16 %v358, %v354
        %v391 = vpack.c.b16 %v363, %v359
        %v392 = vpack.c.b16 %v364, %v360
        %v393 = vpack.c.b16 %v365, %v361
        %v394 = vpack.c.b16 %v366, %v362
        %vm419 = vcmask 883712
        %v421 = vsel %vm419, %v248, 0
        %vm423 = vcmask 1045504
        %v425 = vsel %vm423, %v391, 0
        %v428 = vsel %vm423, %v392, 0
        %v431 = vsel %vm423, %v393, 0
        %v434 = vsel %vm423, %v394, 0
        %436 = vmatprep.subr.bf16.mxu0 %v368
        %437 = vmatpush1.bf16.msra.mxu0 %v367
        %438 = vmatprep.subr.bf16.mxu0 %v372
        %439 = vmatpush1.bf16.msra.mxu0 %v371
        %440 = vmatprep.subr.bf16.mxu0 %v376
        %441 = vmatpush1.bf16.msra.mxu0 %v375
        %442 = vmatprep.subr.bf16.mxu0 %v380
        %443 = vmatpush1.bf16.msra.mxu0 %v379
        %444 = vmatprep.subr.bf16.mxu0 %v384
        %445 = vmatpush1.bf16.msra.mxu0 %v383
        %446 = vmatprep.subr.bf16.mxu0 %v388
        %447 = vmatpush1.bf16.msra.mxu0 %v387
        %448 = vmatprep.subr.bf16.mxu0 %v428
        %449 = vmatpush1.bf16.msra.mxu0 %v425
        %450 = vmatprep.subr.bf16.mxu0 0
        %451 = vmatpush1.bf16.msra.mxu0 0
        %452 = vmatprep.subr.bf16.mxu0 0
        %453 = vmatpush1.bf16.msra.mxu0 0
        %454 = vmatprep.subr.bf16.mxu0 0
        %455 = vmatpush1.bf16.msra.mxu0 0
        %456 = vmatprep.subr.bf16.mxu0 0
        %457 = vmatpush1.bf16.msra.mxu0 0
        %458 = vmatprep.subr.bf16.mxu0 0
        %459 = vmatpush1.bf16.msra.mxu0 0
        %460 = vmatprep.subr.bf16.mxu0 0
        %461 = vmatpush1.bf16.msra.mxu0 0
        %462 = vmatprep.subr.bf16.mxu0 0
        %463 = vmatpush1.bf16.msra.mxu0 0
        %464 = vmatprep.subr.bf16.mxu0 0
        %465 = vmatpush1.bf16.msra.mxu0 0
        %466 = vmatprep.subr.bf16.mxu0 0
        %467 = vmatpush1.bf16.msra.mxu0 0
        %468 = vmatprep.mubr.bf16.mxu0 0
        %469 = vmatmul.mubr.bf16.gmra.mrb[0].mxu0 %v421
        %v470 = vpop.f32.mrb[0].mxu0
        %v471 = vadd.f32 %v281, %v470
        %v472 = vpop.f32.mrb[0].mxu0
        %v473 = vadd.f32 %v281, %v472
        %v474 = vpop.f32.mrb[0].mxu0
        %v475 = vpop.f32.mrb[0].mxu0
        %476 = vdwg.mxu0
        %477 = vmatprep.subr.bf16.mxu0 %v370
        %478 = vmatpush1.bf16.msra.mxu0 %v369
        %479 = vmatprep.subr.bf16.mxu0 %v374
        %480 = vmatpush1.bf16.msra.mxu0 %v373
        %481 = vmatprep.subr.bf16.mxu0 %v378
        %482 = vmatpush1.bf16.msra.mxu0 %v377
        %483 = vmatprep.subr.bf16.mxu0 %v382
        %484 = vmatpush1.bf16.msra.mxu0 %v381
        %485 = vmatprep.subr.bf16.mxu0 %v386
        %486 = vmatpush1.bf16.msra.mxu0 %v385
        %487 = vmatprep.subr.bf16.mxu0 %v390
        %488 = vmatpush1.bf16.msra.mxu0 %v389
        %489 = vmatprep.subr.bf16.mxu0 %v434
        %490 = vmatpush1.bf16.msra.mxu0 %v431
        %491 = vmatprep.subr.bf16.mxu0 0
        %492 = vmatpush1.bf16.msra.mxu0 0
        %493 = vmatprep.subr.bf16.mxu0 0
        %494 = vmatpush1.bf16.msra.mxu0 0
        %495 = vmatprep.subr.bf16.mxu0 0
        %496 = vmatpush1.bf16.msra.mxu0 0
        %497 = vmatprep.subr.bf16.mxu0 0
        %498 = vmatpush1.bf16.msra.mxu0 0
        %499 = vmatprep.subr.bf16.mxu0 0
        %500 = vmatpush1.bf16.msra.mxu0 0
        %501 = vmatprep.subr.bf16.mxu0 0
        %502 = vmatpush1.bf16.msra.mxu0 0
        %503 = vmatprep.subr.bf16.mxu0 0
        %504 = vmatpush1.bf16.msra.mxu0 0
        %505 = vmatprep.subr.bf16.mxu0 0
        %506 = vmatpush1.bf16.msra.mxu0 0
        %507 = vmatprep.subr.bf16.mxu0 0
        %508 = vmatpush1.bf16.msra.mxu0 0
        %509 = vmatprep.mubr.bf16.mxu0 0
        %510 = vmatmul.mubr.bf16.gmra.mrb[0].mxu0 %v421
        %v511 = vpop.f32.mrb[0].mxu0
        %v512 = vadd.f32 %v281, %v511
        %v513 = vpop.f32.mrb[0].mxu0
        %v514 = vadd.f32 %v281, %v513
        %v515 = vpop.f32.mrb[0].mxu0
        %v516 = vpop.f32.mrb[0].mxu0
        %517 = vdwg.mxu0
        %v522 = vcombine.low %v471, %v473
        %v523 = vcombine.low %v512, %v514
        %526 = vst [vmem:[%s245] sm:$0xff] %v522
        %527 = vst [vmem:[%s245 + $0x8] sm:$0xff] %v523
        %s528 = smul.u32 4, %s14
        %p529 = scmp.lt.s32.totalorder %s528, 127
        %s530 = scalar_select %p529, %s528, 127
        %s531 = smul.addr %s530, 4
        %s532 = scalar_lea.vmem %s3, %s531
        // Predicated region
        $region56: #{generator_forward.31} parent=50 // pred_check
          %p533 = pneg %p100
        $region57: #{generator_forward.31} parent=50 // pred_check_branch
          %535 = sbr.rel (%p533) target = $region59
        $region58: #{generator_forward.31} parent=50 // pred_region
          %s536 = smul.u32 4, %s14
        $region59: #{generator_forward.31} parent=50 // pred_fallthru
          _
      $region51: #{generator_forward.31} parent=5 // pred_fallthru
        _
      %p537 = scmp.le.s32.totalorder 2, %s9
      // Predicated region
      $region60: #{generator_forward.31} parent=5 // pred_check
        %p538 = pneg %p537
      $region61: #{generator_forward.31} parent=5 // pred_check_branch
        %540 = sbr.rel (%p538) target = $region63
      $region62: #{generator_forward.31} parent=5 // pred_region
        %s541 = ssub.s32 %s9, 2
        // Predicated region
        $region64: #{generator_forward.31} parent=62 // pred_check
          %p542 = pneg %p106
        $region65: #{generator_forward.31} parent=62 // pred_check_branch
          %544 = sbr.rel (%p542) target = $region67
        $region66: #{generator_forward.31} parent=62 // pred_region
          %s545 = smul.u32 4, %s15
          %p546 = scmp.lt.s32.totalorder %s545, 127
          %s547 = scalar_select %p546, %s545, 127
          %s548 = smul.addr %s547, 4
          %s549 = scalar_lea.vmem %s3, %s548
        $region67: #{generator_forward.31} parent=62 // pred_fallthru
          _
      $region63: #{generator_forward.31} parent=5 // pred_fallthru
        _
    $region6: #{generator_forward.31} parent=1 // loop_footer
      %s13 = sadd.s32 1, %s9
    $region7: #{generator_forward.31} parent=1 // loop_footer_branch
      %8 = sbr.rel target = $region3
    $region8: #{generator_forward.31} parent=1 // loop_exit
      _

// kernel: generator_forward.29
$region0: #{generator_forward.29}
  #allocation0 [shape = 'u32[]', space=smem, size = 0x4, offset = 0x4, fixed_abs, tag = 'smem constant byte address 0x4 - core index']
  #allocation1 [shape = 'u32[144,128]{1,0:T(1,128)}', space=vmem, size = 0x12000, scoped, tag = 'internal scratch']
  %s0 = inlined_call_operand.vmem [shape: bf16[8,216], index: 0, kind: input, shape index: {}]
  %s1 = inlined_call_operand.vmem [shape: bf16[216,16384], index: 1, kind: input, shape index: {}]
  %s2 = inlined_call_operand.vmem [shape: f32[8,1], index: 2, kind: input, shape index: {}]
  %s3 = inlined_call_operand.vmem [shape: f32[8,16384], index: 3, kind: output, shape index: {}]
  %s4 = sld [smem:[#allocation0]]
  $region68: #{generator_forward.29} parent=0
    _
  %s6 = ssub.s32 1, %s4
  %s7 = scalar_select 0, %s6, %s4
  $region1: #{generator_forward.29} parent=0
    #allocation2 [shape = 'u8[442368]{0}', space=vmem, size = 0x6c000, scoped, tag = 'input window, operand 1']
    loop: start=0, step=1, limit=34
    $region2: #{generator_forward.29} parent=1 // loop_pre_header
      _
    $region3: #{generator_forward.29} parent=1 // loop_header
      %s9 = sphi 0, %s13
      %p10 = scmp.ge.s32.totalorder %s9, 34
      %s17 = sphi 0, %s17
      %s19 = sphi 0, %s17
      %s20 = sphi 0, %s19
      %s34 = sphi 0, %s20
      %s40 = sphi 0, %s42
      %s43 = sphi 0, %s40
      %s44 = sphi 0, %s43
      %s60 = sphi 0, %s44
      %s64 = sphi 0, %s64
      %s66 = sphi 0, %s64
      %s67 = sphi 0, %s66
      %s81 = sphi 0, %s67
      %s87 = sphi 0, %s89
      %s90 = sphi 0, %s87
      %s91 = sphi 0, %s90
      %s107 = sphi 0, %s91
    $region4: #{generator_forward.29} parent=1 // loop_header_branch
      %12 = sbr.rel (%p10) target = $region8
    $region5: #{generator_forward.29} parent=1 // loop_body
      %s14 = ssub.s32 %s9, 1
      %s15 = ssub.s32 %s9, 2
      %s16 = sadd.s32 %s9, 1
      %s18 = sadd.s32 %s17, 1
      %p21 = scmp.eq.s32.totalorder %s9, 31
      %p22 = scmp.ne.s32.totalorder %s17, %s19
      %p23 = scmp.eq.s32.totalorder %s9, 0
      %p24 = por %p22, %p23
      %p25 = scmp.ne.s32.totalorder %s17, %s19
      %p26 = scmp.eq.s32.totalorder %s14, 31
      %p27 = por %p25, %p26
      %p28 = scmp.ne.s32.totalorder %s19, %s20
      %p29 = scmp.eq.s32.totalorder %s14, 0
      %p30 = por %p28, %p29
      %p31 = scmp.ne.s32.totalorder %s19, %s20
      %p32 = scmp.eq.s32.totalorder %s15, 31
      %p33 = por %p31, %p32
      %p35 = scmp.ne.s32.totalorder %s20, %s34
      %p36 = scmp.eq.s32.totalorder %s15, 0
      %p37 = por %p35, %p36
      %s38 = ssub.s32 %s9, %s16
      %p39 = scmp.eq.s32.totalorder %s38, 0
      %s41 = sadd.s32 %s40, 1
      %s42 = scalar_select %p39, %s40, %s41
      %p45 = pneg %p39
      %p46 = scmp.eq.s32.totalorder %s9, 31
      %p47 = por %p45, %p46
      %p48 = scmp.ne.s32.totalorder %s40, %s43
      %p49 = scmp.eq.s32.totalorder %s9, 0
      %p50 = por %p48, %p49
      %p51 = scmp.ne.s32.totalorder %s40, %s43
      %p52 = scmp.eq.s32.totalorder %s14, 31
      %p53 = por %p51, %p52
      %p54 = scmp.ne.s32.totalorder %s43, %s44
      %p55 = scmp.eq.s32.totalorder %s14, 0
      %p56 = por %p54, %p55
      %p57 = scmp.ne.s32.totalorder %s43, %s44
      %p58 = scmp.eq.s32.totalorder %s15, 31
      %p59 = por %p57, %p58
      %p61 = scmp.ne.s32.totalorder %s44, %s60
      %p62 = scmp.eq.s32.totalorder %s15, 0
      %p63 = por %p61, %p62
      %s65 = sadd.s32 %s64, 1
      %p68 = scmp.eq.s32.totalorder %s9, 31
      %p69 = scmp.ne.s32.totalorder %s64, %s66
      %p70 = scmp.eq.s32.totalorder %s9, 0
      %p71 = por %p69, %p70
      %p72 = scmp.ne.s32.totalorder %s64, %s66
      %p73 = scmp.eq.s32.totalorder %s14, 31
      %p74 = por %p72, %p73
      %p75 = scmp.ne.s32.totalorder %s66, %s67
      %p76 = scmp.eq.s32.totalorder %s14, 0
      %p77 = por %p75, %p76
      %p78 = scmp.ne.s32.totalorder %s66, %s67
      %p79 = scmp.eq.s32.totalorder %s15, 31
      %p80 = por %p78, %p79
      %p82 = scmp.ne.s32.totalorder %s67, %s81
      %p83 = scmp.eq.s32.totalorder %s15, 0
      %p84 = por %p82, %p83
      %s85 = ssub.s32 %s9, %s16
      %p86 = scmp.eq.s32.totalorder %s85, 0
      %s88 = sadd.s32 %s87, 1
      %s89 = scalar_select %p86, %s87, %s88
      %p92 = pneg %p86
      %p93 = scmp.eq.s32.totalorder %s9, 31
      %p94 = por %p92, %p93
      %p95 = scmp.ne.s32.totalorder %s87, %s90
      %p96 = scmp.eq.s32.totalorder %s9, 0
      %p97 = por %p95, %p96
      %p98 = scmp.ne.s32.totalorder %s87, %s90
      %p99 = scmp.eq.s32.totalorder %s14, 31
      %p100 = por %p98, %p99
      %p101 = scmp.ne.s32.totalorder %s90, %s91
      %p102 = scmp.eq.s32.totalorder %s14, 0
      %p103 = por %p101, %p102
      %p104 = scmp.ne.s32.totalorder %s90, %s91
      %p105 = scmp.eq.s32.totalorder %s15, 31
      %p106 = por %p104, %p105
      %p108 = scmp.ne.s32.totalorder %s91, %s107
      %p109 = scmp.eq.s32.totalorder %s15, 0
      %p110 = por %p108, %p109
      %p111 = scmp.le.s32.totalorder 1, %s9
      %p112 = scmp.lt.s32.totalorder %s9, 33
      %p113 = pnand %p111, %p112
      %p114 = pneg %p113
      // Predicated region
      $region9: #{generator_forward.29} parent=5 // pred_check
        _
      $region10: #{generator_forward.29} parent=5 // pred_check_branch
        %116 = sbr.rel (%p113) target = $region12
      $region11: #{generator_forward.29} parent=5 // pred_region
        %s117 = ssub.s32 %s9, 1
        // Predicated region
        $region13: #{generator_forward.29} parent=11 // pred_check
          %p118 = pneg %p30
        $region14: #{generator_forward.29} parent=11 // pred_check_branch
          %120 = sbr.rel (%p118) target = $region16
        $region15: #{generator_forward.29} parent=11 // pred_region
          _
        $region16: #{generator_forward.29} parent=11 // pred_fallthru
          _
        // Predicated region
        $region17: #{generator_forward.29} parent=11 // pred_check
          %p121 = pneg %p77
        $region18: #{generator_forward.29} parent=11 // pred_check_branch
          %123 = sbr.rel (%p121) target = $region20
        $region19: #{generator_forward.29} parent=11 // pred_region
          _
        $region20: #{generator_forward.29} parent=11 // pred_fallthru
          _
      $region12: #{generator_forward.29} parent=5 // pred_fallthru
        _
      %p124 = scmp.lt.s32.totalorder %s9, 32
      // Predicated region
      $region21: #{generator_forward.29} parent=5 // pred_check
        %p125 = pneg %p124
      $region22: #{generator_forward.29} parent=5 // pred_check_branch
        %127 = sbr.rel (%p125) target = $region24
      $region23: #{generator_forward.29} parent=5 // pred_region
        // Predicated region
        $region25: #{generator_forward.29} parent=23 // pred_check
          %p128 = pneg %p50
        $region26: #{generator_forward.29} parent=23 // pred_check_branch
          %130 = sbr.rel (%p128) target = $region28
        $region27: #{generator_forward.29} parent=23 // pred_region
          %s131 = sand.u32 %s40, 1
          %s132 = sand.u32 %s40, 1
          %s133 = smul.addr %s132, 432
          %s134 = scalar_lea.vmem [#allocation2], %s133
          %s135 = smul.u32 4, %s9
          %s136 = smul.addr %s135, 4
          %s137 = scalar_lea.vmem %s1, %s136
          // Predicated region
          $region29: #{generator_forward.29} parent=27 // pred_check
            _
          $region30: #{generator_forward.29} parent=27 // pred_check_branch
            %139 = sbr.rel (0) target = $region32
          $region31: #{generator_forward.29} parent=27 // pred_region
            // Predicated region
            $region33: #{generator_forward.29} parent=31 // pred_check
              _
            $region34: #{generator_forward.29} parent=31 // pred_check_branch
              %141 = sbr.rel (0) target = $region36
            $region35: #{generator_forward.29} parent=31 // pred_region
              loop: start=0, step=1, limit=1
              $region37: #{generator_forward.29} parent=35 // loop_pre_header
                _
              $region38: #{generator_forward.29} parent=35 // loop_header
                %s143 = sphi 0, %s147
                %p144 = scmp.ge.s32.totalorder %s143, 1
                %s148 = sphi %s137, %s137
                %s149 = sphi %s134, %s134
              $region39: #{generator_forward.29} parent=35 // loop_header_branch
                %146 = sbr.rel (%p144) target = $region43
              $region40: #{generator_forward.29} parent=35 // loop_body
                %v150 = vld [vmem:[%s148] sm:$0xff]
                %151 = vst [vmem:[%s149] sm:$0xff] %v150
                %v152 = vld [vmem:[%s148 + $0x8] sm:$0xff]
                %153 = vst [vmem:[%s149 + $0x8] sm:$0xff] %v152
                %v154 = vld [vmem:[%s148 + $0x200] sm:$0xff]
                %155 = vst [vmem:[%s149 + $0x10] sm:$0xff] %v154
                %v156 = vld [vmem:[%s148 + $0x208] sm:$0xff]
                %157 = vst [vmem:[%s149 + $0x18] sm:$0xff] %v156
                %v158 = vld [vmem:[%s148 + $0x400] sm:$0xff]
                %159 = vst [vmem:[%s149 + $0x20] sm:$0xff] %v158
                %v160 = vld [vmem:[%s148 + $0x408] sm:$0xff]
                %161 = vst [vmem:[%s149 + $0x28] sm:$0xff] %v160
                %v162 = vld [vmem:[%s148 + $0x600] sm:$0xff]
                %163 = vst [vmem:[%s149 + $0x30] sm:$0xff] %v162
                %v164 = vld [vmem:[%s148 + $0x608] sm:$0xff]
                %165 = vst [vmem:[%s149 + $0x38] sm:$0xff] %v164
                %v166 = vld [vmem:[%s148 + $0x800] sm:$0xff]
                %167 = vst [vmem:[%s149 + $0x40] sm:$0xff] %v166
                %v168 = vld [vmem:[%s148 + $0x808] sm:$0xff]
                %169 = vst [vmem:[%s149 + $0x48] sm:$0xff] %v168
                %v170 = vld [vmem:[%s148 + $0xa00] sm:$0xff]
                %171 = vst [vmem:[%s149 + $0x50] sm:$0xff] %v170
                %v172 = vld [vmem:[%s148 + $0xa08] sm:$0xff]
                %173 = vst [vmem:[%s149 + $0x58] sm:$0xff] %v172
                %v174 = vld [vmem:[%s148 + $0xc00] sm:$0xff]
                %175 = vst [vmem:[%s149 + $0x60] sm:$0xff] %v174
                %v176 = vld [vmem:[%s148 + $0xc08] sm:$0xff]
                %177 = vst [vmem:[%s149 + $0x68] sm:$0xff] %v176
                %v178 = vld [vmem:[%s148 + $0xe00] sm:$0xff]
                %179 = vst [vmem:[%s149 + $0x70] sm:$0xff] %v178
                %v180 = vld [vmem:[%s148 + $0xe08] sm:$0xff]
                %181 = vst [vmem:[%s149 + $0x78] sm:$0xff] %v180
                %v182 = vld [vmem:[%s148 + $0x1000] sm:$0xff]
                %183 = vst [vmem:[%s149 + $0x80] sm:$0xff] %v182
                %v184 = vld [vmem:[%s148 + $0x1008] sm:$0xff]
                %185 = vst [vmem:[%s149 + $0x88] sm:$0xff] %v184
                %v186 = vld [vmem:[%s148 + $0x1200] sm:$0xff]
                %187 = vst [vmem:[%s149 + $0x90] sm:$0xff] %v186
                %v188 = vld [vmem:[%s148 + $0x1208] sm:$0xff]
                %189 = vst [vmem:[%s149 + $0x98] sm:$0xff] %v188
                %v190 = vld [vmem:[%s148 + $0x1400] sm:$0xff]
                %191 = vst [vmem:[%s149 + $0xa0] sm:$0xff] %v190
                %v192 = vld [vmem:[%s148 + $0x1408] sm:$0xff]
                %193 = vst [vmem:[%s149 + $0xa8] sm:$0xff] %v192
                %v194 = vld [vmem:[%s148 + $0x1600] sm:$0xff]
                %195 = vst [vmem:[%s149 + $0xb0] sm:$0xff] %v194
                %v196 = vld [vmem:[%s148 + $0x1608] sm:$0xff]
                %197 = vst [vmem:[%s149 + $0xb8] sm:$0xff] %v196
                %v198 = vld [vmem:[%s148 + $0x1800] sm:$0xff]
                %199 = vst [vmem:[%s149 + $0xc0] sm:$0xff] %v198
                %v200 = vld [vmem:[%s148 + $0x1808] sm:$0xff]
                %201 = vst [vmem:[%s149 + $0xc8] sm:$0xff] %v200
                %v202 = vld [vmem:[%s148 + $0x1a00] sm:$0xff]
                %203 = vst [vmem:[%s149 + $0xd0] sm:$0xff] %v202
                %v204 = vld [vmem:[%s148 + $0x1a08] sm:$0xff]
                %205 = vst [vmem:[%s149 + $0xd8] sm:$0xff] %v204
                %v206 = vld [vmem:[%s148 + $0x1c00] sm:$0xff]
                %207 = vst [vmem:[%s149 + $0xe0] sm:$0xff] %v206
                %v208 = vld [vmem:[%s148 + $0x1c08] sm:$0xff]
                %209 = vst [vmem:[%s149 + $0xe8] sm:$0xff] %v208
                %v210 = vld [vmem:[%s148 + $0x1e00] sm:$0xff]
                %211 = vst [vmem:[%s149 + $0xf0] sm:$0xff] %v210
                %v212 = vld [vmem:[%s148 + $0x1e08] sm:$0xff]
                %213 = vst [vmem:[%s149 + $0xf8] sm:$0xff] %v212
                %v214 = vld [vmem:[%s148 + $0x2000] sm:$0xff]
                %215 = vst [vmem:[%s149 + $0x100] sm:$0xff] %v214
                %v216 = vld [vmem:[%s148 + $0x2008] sm:$0xff]
                %217 = vst [vmem:[%s149 + $0x108] sm:$0xff] %v216
                %v218 = vld [vmem:[%s148 + $0x2200] sm:$0xff]
                %219 = vst [vmem:[%s149 + $0x110] sm:$0xff] %v218
                %v220 = vld [vmem:[%s148 + $0x2208] sm:$0xff]
                %221 = vst [vmem:[%s149 + $0x118] sm:$0xff] %v220
                %v222 = vld [vmem:[%s148 + $0x2400] sm:$0xff]
                %223 = vst [vmem:[%s149 + $0x120] sm:$0xff] %v222
                %v224 = vld [vmem:[%s148 + $0x2408] sm:$0xff]
                %225 = vst [vmem:[%s149 + $0x128] sm:$0xff] %v224
                %v226 = vld [vmem:[%s148 + $0x2600] sm:$0xff]
                %227 = vst [vmem:[%s149 + $0x130] sm:$0xff] %v226
                %v228 = vld [vmem:[%s148 + $0x2608] sm:$0xff]
                %229 = vst [vmem:[%s149 + $0x138] sm:$0xff] %v228
                %v230 = vld [vmem:[%s148 + $0x2800] sm:$0xff]
                %231 = vst [vmem:[%s149 + $0x140] sm:$0xff] %v230
                %v232 = vld [vmem:[%s148 + $0x2808] sm:$0xff]
                %233 = vst [vmem:[%s149 + $0x148] sm:$0xff] %v232
                %v234 = vld [vmem:[%s148 + $0x2a00] sm:$0xff]
                %235 = vst [vmem:[%s149 + $0x150] sm:$0xff] %v234
                %v236 = vld [vmem:[%s148 + $0x2a08] sm:$0xff]
                %237 = vst [vmem:[%s149 + $0x158] sm:$0xff] %v236
                %v238 = vld [vmem:[%s148 + $0x2c00] sm:$0xff]
                %239 = vst [vmem:[%s149 + $0x160] sm:$0xff] %v238
                %v240 = vld [vmem:[%s148 + $0x2c08] sm:$0xff]
                %241 = vst [vmem:[%s149 + $0x168] sm:$0xff] %v240
                %v242 = vld [vmem:[%s148 + $0x2e00] sm:$0xff]
                %243 = vst [vmem:[%s149 + $0x170] sm:$0xff] %v242
                %v244 = vld [vmem:[%s148 + $0x2e08] sm:$0xff]
                %245 = vst [vmem:[%s149 + $0x178] sm:$0xff] %v244
                %v246 = vld [vmem:[%s148 + $0x3000] sm:$0xff]
                %247 = vst [vmem:[%s149 + $0x180] sm:$0xff] %v246
                %v248 = vld [vmem:[%s148 + $0x3008] sm:$0xff]
                %249 = vst [vmem:[%s149 + $0x188] sm:$0xff] %v248
                %v250 = vld [vmem:[%s148 + $0x3200] sm:$0xff]
                %251 = vst [vmem:[%s149 + $0x190] sm:$0xff] %v250
                %v252 = vld [vmem:[%s148 + $0x3208] sm:$0xff]
                %253 = vst [vmem:[%s149 + $0x198] sm:$0xff] %v252
                %v254 = vld [vmem:[%s148 + $0x3400] sm:$0xff]
                %255 = vst [vmem:[%s149 + $0x1a0] sm:$0xff] %v254
                %v256 = vld [vmem:[%s148 + $0x3408] sm:$0xff]
                %257 = vst [vmem:[%s149 + $0x1a8] sm:$0xff] %v256
              $region41: #{generator_forward.29} parent=35 // loop_footer
                %s147 = sadd.s32 1, %s143
              $region42: #{generator_forward.29} parent=35 // loop_footer_branch
                %142 = sbr.rel target = $region38
              $region43: #{generator_forward.29} parent=35 // loop_exit
                _
            $region36: #{generator_forward.29} parent=31 // pred_fallthru
              _
            // Predicated region
            $region44: #{generator_forward.29} parent=31 // pred_check
              _
            $region45: #{generator_forward.29} parent=31 // pred_check_branch
              %259 = sbr.rel target = $region47
            $region46: #{generator_forward.29} parent=31 // pred_region
              _
            $region47: #{generator_forward.29} parent=31 // pred_fallthru
              _
          $region32: #{generator_forward.29} parent=27 // pred_fallthru
            _
          %260 = vnop
        $region28: #{generator_forward.29} parent=23 // pred_fallthru
          _
      $region24: #{generator_forward.29} parent=5 // pred_fallthru
        _
      %p261 = scmp.le.s32.totalorder 1, %s9
      %p262 = scmp.lt.s32.totalorder %s9, 33
      %p263 = pnand %p261, %p262
      %p264 = pneg %p263
      // Predicated region
      $region48: #{generator_forward.29} parent=5 // pred_check
        _
      $region49: #{generator_forward.29} parent=5 // pred_check_branch
        %266 = sbr.rel (%p263) target = $region51
      $region50: #{generator_forward.29} parent=5 // pred_region
        %s267 = ssub.s32 %s9, 1
        %s268 = sand.u32 %s43, 1
        %s269 = sand.u32 %s43, 1
        %s270 = smul.addr %s269, 432
        %s271 = scalar_lea.vmem [#allocation2], %s270
        // Predicated region
        $region52: #{generator_forward.29} parent=50 // pred_check
          %p272 = pneg %p56
        $region53: #{generator_forward.29} parent=50 // pred_check_branch
          %274 = sbr.rel (%p272) target = $region55
        $region54: #{generator_forward.29} parent=50 // pred_region
          _
        $region55: #{generator_forward.29} parent=50 // pred_fallthru
          _
        %p275 = pneg %p30
        %p276 = pneg %p27
        %s277 = sand.u32 %s43, 1
        %s278 = sand.u32 %s43, 1
        %s279 = smul.addr %s278, 432
        %s280 = scalar_lea.vmem [#allocation2], %s279
        %p281 = pneg %p56
        %p282 = pneg %p53
        %p283 = pneg %p77
        %p284 = pneg %p74
        %p285 = pneg %p103
        %p286 = pneg %p100
        %s287 = smul.u32 4, %s14
        %p288 = scmp.lt.s32.totalorder %s287, 127
        %s289 = scalar_select %p288, %s287, 127
        %s290 = smul.addr %s289, 8
        %s291 = scalar_lea.vmem %s3, %s290
        %s292 = smul.u32 4, %s14
        %s293 = smul.u32 4, %s14
        %p294 = scmp.lt.s32.totalorder %s293, 127
        %s295 = scalar_select %p294, %s293, 127
        %s296 = smul.addr %s295, 8
        %s297 = scalar_lea.vmem %s3, %s296
        %s298 = smul.u32 4, %s14
        %v300 = vld [vmem:[%s0] sm:$0xff]
        %v301 = vld [vmem:[%s271] sm:$0xff]
        %v302 = vld [vmem:[%s271 + $0x8] sm:$0xff]
        %v303 = vld [vmem:[%s271 + $0x10] sm:$0xff]
        %v304 = vld [vmem:[%s271 + $0x18] sm:$0xff]
        %v305 = vld [vmem:[%s271 + $0x20] sm:$0xff]
        %v306 = vld [vmem:[%s271 + $0x28] sm:$0xff]
        %v307 = vld [vmem:[%s271 + $0x30] sm:$0xff]
        %v308 = vld [vmem:[%s271 + $0x38] sm:$0xff]
        %v309 = vld [vmem:[%s271 + $0x40] sm:$0xff]
        %v310 = vld [vmem:[%s271 + $0x48] sm:$0xff]
        %v311 = vld [vmem:[%s271 + $0x50] sm:$0xff]
        %v312 = vld [vmem:[%s271 + $0x58] sm:$0xff]
        %v313 = vld [vmem:[%s271 + $0x60] sm:$0xff]
        %v314 = vld [vmem:[%s271 + $0x68] sm:$0xff]
        %v315 = vld [vmem:[%s271 + $0x70] sm:$0xff]
        %v316 = vld [vmem:[%s271 + $0x78] sm:$0xff]
        %v317 = vld [vmem:[%s271 + $0x80] sm:$0xff]
        %v318 = vld [vmem:[%s271 + $0x88] sm:$0xff]
        %v319 = vld [vmem:[%s271 + $0x90] sm:$0xff]
        %v320 = vld [vmem:[%s271 + $0x98] sm:$0xff]
        %v321 = vld [vmem:[%s271 + $0xa0] sm:$0xff]
        %v322 = vld [vmem:[%s271 + $0xa8] sm:$0xff]
        %v323 = vld [vmem:[%s271 + $0xb0] sm:$0xff]
        %v324 = vld [vmem:[%s271 + $0xb8] sm:$0xff]
        %v325 = vld [vmem:[%s271 + $0xc0] sm:$0xff]
        %v326 = vld [vmem:[%s271 + $0xc8] sm:$0xff]
        %v327 = vld [vmem:[%s271 + $0xd0] sm:$0xff]
        %v328 = vld [vmem:[%s271 + $0xd8] sm:$0xff]
        %v329 = vld [vmem:[%s271 + $0xe0] sm:$0xff]
        %v330 = vld [vmem:[%s271 + $0xe8] sm:$0xff]
        %v331 = vld [vmem:[%s271 + $0xf0] sm:$0xff]
        %v332 = vld [vmem:[%s271 + $0xf8] sm:$0xff]
        %v333 = vld [vmem:[%s271 + $0x100] sm:$0xff]
        %v334 = vld [vmem:[%s271 + $0x108] sm:$0xff]
        %v335 = vld [vmem:[%s271 + $0x110] sm:$0xff]
        %v336 = vld [vmem:[%s271 + $0x118] sm:$0xff]
        %v337 = vld [vmem:[%s271 + $0x120] sm:$0xff]
        %v338 = vld [vmem:[%s271 + $0x128] sm:$0xff]
        %v339 = vld [vmem:[%s271 + $0x130] sm:$0xff]
        %v340 = vld [vmem:[%s271 + $0x138] sm:$0xff]
        %v341 = vld [vmem:[%s271 + $0x140] sm:$0xff]
        %v342 = vld [vmem:[%s271 + $0x148] sm:$0xff]
        %v343 = vld [vmem:[%s271 + $0x150] sm:$0xff]
        %v344 = vld [vmem:[%s271 + $0x158] sm:$0xff]
        %v345 = vld [vmem:[%s271 + $0x160] sm:$0xff]
        %v346 = vld [vmem:[%s271 + $0x168] sm:$0xff]
        %v347 = vld [vmem:[%s271 + $0x170] sm:$0xff]
        %v348 = vld [vmem:[%s271 + $0x178] sm:$0xff]
        %v349 = vld [vmem:[%s271 + $0x180] sm:$0xff]
        %v350 = vld [vmem:[%s271 + $0x188] sm:$0xff]
        %v351 = vld [vmem:[%s271 + $0x190] sm:$0xff]
        %v352 = vld [vmem:[%s271 + $0x198] sm:$0xff]
        %v353 = vld [vmem:[%s271 + $0x1a0] sm:$0xff]
        %v354 = vld [vmem:[%s271 + $0x1a8] sm:$0xff]
        %v355 = vld [vmem:[%s2] sm:$0xff]
        %357 = vset.pattern.permute.xlu0 0
        %358 = vperm.xlu0 %357, %v355
        %v359 = vpop.permute.xlu0 %358
        %v362 = vunpack.c.l.b16 %v300
        %v363 = vunpack.c.h.b16 %v300
        %v364 = vpack.c.b16 %v362, %v362
        %v365 = vpack.c.b16 %v363, %v363
        %v421 = vunpack.c.l.b16 %v301
        %v422 = vunpack.c.h.b16 %v301
        %v423 = vunpack.c.l.b16 %v302
        %v424 = vunpack.c.h.b16 %v302
        %v425 = vunpack.c.l.b16 %v303
        %v426 = vunpack.c.h.b16 %v303
        %v427 = vunpack.c.l.b16 %v304
        %v428 = vunpack.c.h.b16 %v304
        %v429 = vunpack.c.l.b16 %v305
        %v430 = vunpack.c.h.b16 %v305
        %v431 = vunpack.c.l.b16 %v306
        %v432 = vunpack.c.h.b16 %v306
        %v433 = vunpack.c.l.b16 %v307
        %v434 = vunpack.c.h.b16 %v307
        %v435 = vunpack.c.l.b16 %v308
        %v436 = vunpack.c.h.b16 %v308
        %v437 = vunpack.c.l.b16 %v309
        %v438 = vunpack.c.h.b16 %v309
        %v439 = vunpack.c.l.b16 %v310
        %v440 = vunpack.c.h.b16 %v310
        %v441 = vunpack.c.l.b16 %v311
        %v442 = vunpack.c.h.b16 %v311
        %v443 = vunpack.c.l.b16 %v312
        %v444 = vunpack.c.h.b16 %v312
        %v445 = vunpack.c.l.b16 %v313
        %v446 = vunpack.c.h.b16 %v313
        %v447 = vunpack.c.l.b16 %v314
        %v448 = vunpack.c.h.b16 %v314
        %v449 = vunpack.c.l.b16 %v315
        %v450 = vunpack.c.h.b16 %v315
        %v451 = vunpack.c.l.b16 %v316
        %v452 = vunpack.c.h.b16 %v316
        %v453 = vunpack.c.l.b16 %v317
        %v454 = vunpack.c.h.b16 %v317
        %v455 = vunpack.c.l.b16 %v318
        %v456 = vunpack.c.h.b16 %v318
        %v457 = vunpack.c.l.b16 %v319
        %v458 = vunpack.c.h.b16 %v319
        %v459 = vunpack.c.l.b16 %v320
        %v460 = vunpack.c.h.b16 %v320
        %v461 = vunpack.c.l.b16 %v321
        %v462 = vunpack.c.h.b16 %v321
        %v463 = vunpack.c.l.b16 %v322
        %v464 = vunpack.c.h.b16 %v322
        %v465 = vunpack.c.l.b16 %v323
        %v466 = vunpack.c.h.b16 %v323
        %v467 = vunpack.c.l.b16 %v324
        %v468 = vunpack.c.h.b16 %v324
        %v469 = vunpack.c.l.b16 %v325
        %v470 = vunpack.c.h.b16 %v325
        %v471 = vunpack.c.l.b16 %v326
        %v472 = vunpack.c.h.b16 %v326
        %v473 = vunpack.c.l.b16 %v327
        %v474 = vunpack.c.h.b16 %v327
        %v475 = vunpack.c.l.b16 %v328
        %v476 = vunpack.c.h.b16 %v328
        %v477 = vunpack.c.l.b16 %v329
        %v478 = vunpack.c.h.b16 %v329
        %v479 = vunpack.c.l.b16 %v330
        %v480 = vunpack.c.h.b16 %v330
        %v481 = vunpack.c.l.b16 %v331
        %v482 = vunpack.c.h.b16 %v331
        %v483 = vunpack.c.l.b16 %v332
        %v484 = vunpack.c.h.b16 %v332
        %v485 = vunpack.c.l.b16 %v333
        %v486 = vunpack.c.h.b16 %v333
        %v487 = vunpack.c.l.b16 %v334
        %v488 = vunpack.c.h.b16 %v334
        %v489 = vunpack.c.l.b16 %v335
        %v490 = vunpack.c.h.b16 %v335
        %v491 = vunpack.c.l.b16 %v336
        %v492 = vunpack.c.h.b16 %v336
        %v493 = vunpack.c.l.b16 %v337
        %v494 = vunpack.c.h.b16 %v337
        %v495 = vunpack.c.l.b16 %v338
        %v496 = vunpack.c.h.b16 %v338
        %v497 = vunpack.c.l.b16 %v339
        %v498 = vunpack.c.h.b16 %v339
        %v499 = vunpack.c.l.b16 %v340
        %v500 = vunpack.c.h.b16 %v340
        %v501 = vunpack.c.l.b16 %v341
        %v502 = vunpack.c.h.b16 %v341
        %v503 = vunpack.c.l.b16 %v342
        %v504 = vunpack.c.h.b16 %v342
        %v505 = vunpack.c.l.b16 %v343
        %v506 = vunpack.c.h.b16 %v343
        %v507 = vunpack.c.l.b16 %v344
        %v508 = vunpack.c.h.b16 %v344
        %v509 = vunpack.c.l.b16 %v345
        %v510 = vunpack.c.h.b16 %v345
        %v511 = vunpack.c.l.b16 %v346
        %v512 = vunpack.c.h.b16 %v346
        %v513 = vunpack.c.l.b16 %v347
        %v514 = vunpack.c.h.b16 %v347
        %v515 = vunpack.c.l.b16 %v348
        %v516 = vunpack.c.h.b16 %v348
        %v517 = vunpack.c.l.b16 %v349
        %v518 = vunpack.c.h.b16 %v349
        %v519 = vunpack.c.l.b16 %v350
        %v520 = vunpack.c.h.b16 %v350
        %v521 = vunpack.c.l.b16 %v351
        %v522 = vunpack.c.h.b16 %v351
        %v523 = vunpack.c.l.b16 %v352
        %v524 = vunpack.c.h.b16 %v352
        %v525 = vunpack.c.l.b16 %v353
        %v526 = vunpack.c.h.b16 %v353
        %v527 = vunpack.c.l.b16 %v354
        %v528 = vunpack.c.h.b16 %v354
        %v529 = vpack.c.b16 %v425, %v421
        %v530 = vpack.c.b16 %v426, %v422
        %v531 = vpack.c.b16 %v427, %v423
        %v532 = vpack.c.b16 %v428, %v424
        %v533 = vpack.c.b16 %v433, %v429
        %v534 = vpack.c.b16 %v434, %v430
        %v535 = vpack.c.b16 %v435, %v431
        %v536 = vpack.c.b16 %v436, %v432
        %v537 = vpack.c.b16 %v441, %v437
        %v538 = vpack.c.b16 %v442, %v438
        %v539 = vpack.c.b16 %v443, %v439
        %v540 = vpack.c.b16 %v444, %v440
        %v541 = vpack.c.b16 %v449, %v445
        %v542 = vpack.c.b16 %v450, %v446
        %v543 = vpack.c.b16 %v451, %v447
        %v544 = vpack.c.b16 %v452, %v448
        %v545 = vpack.c.b16 %v457, %v453
        %v546 = vpack.c.b16 %v458, %v454
        %v547 = vpack.c.b16 %v459, %v455
        %v548 = vpack.c.b16 %v460, %v456
        %v549 = vpack.c.b16 %v465, %v461
        %v550 = vpack.c.b16 %v466, %v462
        %v551 = vpack.c.b16 %v467, %v463
        %v552 = vpack.c.b16 %v468, %v464
        %v553 = vpack.c.b16 %v473, %v469
        %v554 = vpack.c.b16 %v474, %v470
        %v555 = vpack.c.b16 %v475, %v471
        %v556 = vpack.c.b16 %v476, %v472
        %v557 = vpack.c.b16 %v481, %v477
        %v558 = vpack.c.b16 %v482, %v478
        %v559 = vpack.c.b16 %v483, %v479
        %v560 = vpack.c.b16 %v484, %v480
        %v561 = vpack.c.b16 %v489, %v485
        %v562 = vpack.c.b16 %v490, %v486
        %v563 = vpack.c.b16 %v491, %v487
        %v564 = vpack.c.b16 %v492, %v488
        %v565 = vpack.c.b16 %v497, %v493
        %v566 = vpack.c.b16 %v498, %v494
        %v567 = vpack.c.b16 %v499, %v495
        %v568 = vpack.c.b16 %v500, %v496
        %v569 = vpack.c.b16 %v505, %v501
        %v570 = vpack.c.b16 %v506, %v502
        %v571 = vpack.c.b16 %v507, %v503
        %v572 = vpack.c.b16 %v508, %v504
        %v573 = vpack.c.b16 %v513, %v509
        %v574 = vpack.c.b16 %v514, %v510
        %v575 = vpack.c.b16 %v515, %v511
        %v576 = vpack.c.b16 %v516, %v512
        %v577 = vpack.c.b16 %v521, %v517
        %v578 = vpack.c.b16 %v522, %v518
        %v579 = vpack.c.b16 %v523, %v519
        %v580 = vpack.c.b16 %v524, %v520
        %v581 = vpack.c.b16 %v525, %v525
        %v582 = vpack.c.b16 %v526, %v526
        %v583 = vpack.c.b16 %v527, %v527
        %v584 = vpack.c.b16 %v528, %v528
        %vm637 = vcmask 719872
        %v639 = vsel %vm637, %v365, 0
        %vm641 = vcmask 1043456
        %v643 = vsel %vm641, %v581, 0
        %v646 = vsel %vm641, %v582, 0
        %v649 = vsel %vm641, %v583, 0
        %v652 = vsel %vm641, %v584, 0
        %654 = vmatprep.subr.bf16.mxu0 %v530
        %655 = vmatpush1.bf16.msra.mxu0 %v529
        %656 = vmatprep.subr.bf16.mxu0 %v534
        %657 = vmatpush1.bf16.msra.mxu0 %v533
        %658 = vmatprep.subr.bf16.mxu0 %v538
        %659 = vmatpush1.bf16.msra.mxu0 %v537
        %660 = vmatprep.subr.bf16.mxu0 %v542
        %661 = vmatpush1.bf16.msra.mxu0 %v541
        %662 = vmatprep.subr.bf16.mxu0 %v546
        %663 = vmatpush1.bf16.msra.mxu0 %v545
        %664 = vmatprep.subr.bf16.mxu0 %v550
        %665 = vmatpush1.bf16.msra.mxu0 %v549
        %666 = vmatprep.subr.bf16.mxu0 %v554
        %667 = vmatpush1.bf16.msra.mxu0 %v553
        %668 = vmatprep.subr.bf16.mxu0 %v558
        %669 = vmatpush1.bf16.msra.mxu0 %v557
        %670 = vmatprep.subr.bf16.mxu0 %v562
        %671 = vmatpush1.bf16.msra.mxu0 %v561
        %672 = vmatprep.subr.bf16.mxu0 %v566
        %673 = vmatpush1.bf16.msra.mxu0 %v565
        %674 = vmatprep.subr.bf16.mxu0 %v570
        %675 = vmatpush1.bf16.msra.mxu0 %v569
        %676 = vmatprep.subr.bf16.mxu0 %v574
        %677 = vmatpush1.bf16.msra.mxu0 %v573
        %678 = vmatprep.subr.bf16.mxu0 %v578
        %679 = vmatpush1.bf16.msra.mxu0 %v577
        %680 = vmatprep.subr.bf16.mxu0 %v646
        %681 = vmatpush1.bf16.msra.mxu0 %v643
        %682 = vmatprep.subr.bf16.mxu0 0
        %683 = vmatpush1.bf16.msra.mxu0 0
        %684 = vmatprep.subr.bf16.mxu0 0
        %685 = vmatpush1.bf16.msra.mxu0 0
        %686 = vmatprep.mubr.bf16.mxu0 %v639
        %687 = vmatmul.mubr.bf16.gmra.mrb[0].mxu0 %v364
        %v688 = vpop.f32.mrb[0].mxu0
        %v689 = vadd.f32 %v359, %v688
        %v690 = vpop.f32.mrb[0].mxu0
        %v691 = vadd.f32 %v359, %v690
        %v692 = vpop.f32.mrb[0].mxu0
        %v693 = vpop.f32.mrb[0].mxu0
        %694 = vdwg.mxu0
        %695 = vmatprep.subr.bf16.mxu0 %v532
        %696 = vmatpush1.bf16.msra.mxu0 %v531
        %697 = vmatprep.subr.bf16.mxu0 %v536
        %698 = vmatpush1.bf16.msra.mxu0 %v535
        %699 = vmatprep.subr.bf16.mxu0 %v540
        %700 = vmatpush1.bf16.msra.mxu0 %v539
        %701 = vmatprep.subr.bf16.mxu0 %v544
        %702 = vmatpush1.bf16.msra.mxu0 %v543
        %703 = vmatprep.subr.bf16.mxu0 %v548
        %704 = vmatpush1.bf16.msra.mxu0 %v547
        %705 = vmatprep.subr.bf16.mxu0 %v552
        %706 = vmatpush1.bf16.msra.mxu0 %v551
        %707 = vmatprep.subr.bf16.mxu0 %v556
        %708 = vmatpush1.bf16.msra.mxu0 %v555
        %709 = vmatprep.subr.bf16.mxu0 %v560
        %710 = vmatpush1.bf16.msra.mxu0 %v559
        %711 = vmatprep.subr.bf16.mxu0 %v564
        %712 = vmatpush1.bf16.msra.mxu0 %v563
        %713 = vmatprep.subr.bf16.mxu0 %v568
        %714 = vmatpush1.bf16.msra.mxu0 %v567
        %715 = vmatprep.subr.bf16.mxu0 %v572
        %716 = vmatpush1.bf16.msra.mxu0 %v571
        %717 = vmatprep.subr.bf16.mxu0 %v576
        %718 = vmatpush1.bf16.msra.mxu0 %v575
        %719 = vmatprep.subr.bf16.mxu0 %v580
        %720 = vmatpush1.bf16.msra.mxu0 %v579
        %721 = vmatprep.subr.bf16.mxu0 %v652
        %722 = vmatpush1.bf16.msra.mxu0 %v649
        %723 = vmatprep.subr.bf16.mxu0 0
        %724 = vmatpush1.bf16.msra.mxu0 0
        %725 = vmatprep.subr.bf16.mxu0 0
        %726 = vmatpush1.bf16.msra.mxu0 0
        %727 = vmatprep.mubr.bf16.mxu0 %v639
        %728 = vmatmul.mubr.bf16.gmra.mrb[0].mxu0 %v364
        %v729 = vpop.f32.mrb[0].mxu0
        %v730 = vadd.f32 %v359, %v729
        %v731 = vpop.f32.mrb[0].mxu0
        %v732 = vadd.f32 %v359, %v731
        %v733 = vpop.f32.mrb[0].mxu0
        %v734 = vpop.f32.mrb[0].mxu0
        %735 = vdwg.mxu0
        %vm736 = vcmp.ge.f32.partialorder %v689, 0.0
        %vm737 = vcmp.ge.f32.partialorder %v691, 0.0
        %vm738 = vcmp.ge.f32.partialorder %v730, 0.0
        %vm739 = vcmp.ge.f32.partialorder %v732, 0.0
        %v740 = vmul.f32 %v689, 0.2
        %v741 = vmul.f32 %v691, 0.2
        %v742 = vmul.f32 %v730, 0.2
        %v743 = vmul.f32 %v732, 0.2
        %v744 = vsel %vm736, %v689, %v740
        %v745 = vsel %vm737, %v691, %v741
        %v746 = vsel %vm738, %v730, %v742
        %v747 = vsel %vm739, %v732, %v743
        %748 = vst [vmem:[%s297] sm:$0xff] %v744
        %749 = vst [vmem:[%s297 + $0x8] sm:$0xff] %v745
        %750 = vst [vmem:[%s297 + $0x10] sm:$0xff] %v746
        %751 = vst [vmem:[%s297 + $0x18] sm:$0xff] %v747
        %s752 = smul.u32 4, %s14
        %p753 = scmp.lt.s32.totalorder %s752, 127
        %s754 = scalar_select %p753, %s752, 127
        %s755 = smul.addr %s754, 8
        %s756 = scalar_lea.vmem %s3, %s755
        // Predicated region
        $region56: #{generator_forward.29} parent=50 // pred_check
          %p757 = pneg %p100
        $region57: #{generator_forward.29} parent=50 // pred_check_branch
          %759 = sbr.rel (%p757) target = $region59
        $region58: #{generator_forward.29} parent=50 // pred_region
          %s760 = smul.u32 4, %s14
        $region59: #{generator_forward.29} parent=50 // pred_fallthru
          _
      $region51: #{generator_forward.29} parent=5 // pred_fallthru
        _
      %p761 = scmp.le.s32.totalorder 2, %s9
      // Predicated region
      $region60: #{generator_forward.29} parent=5 // pred_check
        %p762 = pneg %p761
      $region61: #{generator_forward.29} parent=5 // pred_check_branch
        %764 = sbr.rel (%p762) target = $region63
      $region62: #{generator_forward.29} parent=5 // pred_region
        %s765 = ssub.s32 %s9, 2
        // Predicated region
        $region64: #{generator_forward.29} parent=62 // pred_check
          %p766 = pneg %p106
        $region65: #{generator_forward.29} parent=62 // pred_check_branch
          %768 = sbr.rel (%p766) target = $region67
        $region66: #{generator_forward.29} parent=62 // pred_region
          %s769 = smul.u32 4, %s15
          %p770 = scmp.lt.s32.totalorder %s769, 127
          %s771 = scalar_select %p770, %s769, 127
          %s772 = smul.addr %s771, 8
          %s773 = scalar_lea.vmem %s3, %s772
        $region67: #{generator_forward.29} parent=62 // pred_fallthru
          _
      $region63: #{generator_forward.29} parent=5 // pred_fallthru
        _
    $region6: #{generator_forward.29} parent=1 // loop_footer
      %s13 = sadd.s32 1, %s9
    $region7: #{generator_forward.29} parent=1 // loop_footer_branch
      %8 = sbr.rel target = $region3
    $region8: #{generator_forward.29} parent=1 // loop_exit
      _

// kernel: generator_forward.32
$region0: #{generator_forward.32}
  #allocation0 [shape = 'u32[]', space=smem, size = 0x4, offset = 0x4, fixed_abs, tag = 'smem constant byte address 0x4 - core index']
  #allocation1 [shape = 'u32[144,128]{1,0:T(1,128)}', space=vmem, size = 0x12000, scoped, tag = 'internal scratch']
  %s0 = inlined_call_operand.vmem [shape: bf16[12,324], index: 0, kind: input, shape index: {}]
  %s1 = inlined_call_operand.vmem [shape: bf16[324,16384], index: 1, kind: input, shape index: {}]
  %s2 = inlined_call_operand.vmem [shape: f32[12,1], index: 2, kind: input, shape index: {}]
  %s3 = inlined_call_operand.vmem [shape: f32[12,16384], index: 3, kind: output, shape index: {}]
  %s4 = sld [smem:[#allocation0]]
  $region87: #{generator_forward.32} parent=0
    _
  %s6 = ssub.s32 1, %s4
  %s7 = scalar_select 0, %s6, %s4
  $region1: #{generator_forward.32} parent=0
    #allocation2 [shape = 'u8[671744]{0}', space=vmem, size = 0xa4000, scoped, tag = 'input window, operand 1']
    #allocation3 [shape = 'u8[65536]{0}', space=vmem, size = 0x10000, scoped, tag = 'output window, operand 0']
    loop: start=0, step=1, limit=34
    $region2: #{generator_forward.32} parent=1 // loop_pre_header
      _
    $region3: #{generator_forward.32} parent=1 // loop_header
      %s9 = sphi 0, %s13
      %p10 = scmp.ge.s32.totalorder %s9, 34
      %s17 = sphi 0, %s17
      %s19 = sphi 0, %s17
      %s20 = sphi 0, %s19
      %s34 = sphi 0, %s20
      %s40 = sphi 0, %s42
      %s43 = sphi 0, %s40
      %s44 = sphi 0, %s43
      %s60 = sphi 0, %s44
      %s64 = sphi 0, %s64
      %s66 = sphi 0, %s64
      %s67 = sphi 0, %s66
      %s81 = sphi 0, %s67
      %s87 = sphi 0, %s89
      %s90 = sphi 0, %s87
      %s91 = sphi 0, %s90
      %s107 = sphi 0, %s91
    $region4: #{generator_forward.32} parent=1 // loop_header_branch
      %12 = sbr.rel (%p10) target = $region8
    $region5: #{generator_forward.32} parent=1 // loop_body
      %s14 = ssub.s32 %s9, 1
      %s15 = ssub.s32 %s9, 2
      %s16 = sadd.s32 %s9, 1
      %s18 = sadd.s32 %s17, 1
      %p21 = scmp.eq.s32.totalorder %s9, 31
      %p22 = scmp.ne.s32.totalorder %s17, %s19
      %p23 = scmp.eq.s32.totalorder %s9, 0
      %p24 = por %p22, %p23
      %p25 = scmp.ne.s32.totalorder %s17, %s19
      %p26 = scmp.eq.s32.totalorder %s14, 31
      %p27 = por %p25, %p26
      %p28 = scmp.ne.s32.totalorder %s19, %s20
      %p29 = scmp.eq.s32.totalorder %s14, 0
      %p30 = por %p28, %p29
      %p31 = scmp.ne.s32.totalorder %s19, %s20
      %p32 = scmp.eq.s32.totalorder %s15, 31
      %p33 = por %p31, %p32
      %p35 = scmp.ne.s32.totalorder %s20, %s34
      %p36 = scmp.eq.s32.totalorder %s15, 0
      %p37 = por %p35, %p36
      %s38 = ssub.s32 %s9, %s16
      %p39 = scmp.eq.s32.totalorder %s38, 0
      %s41 = sadd.s32 %s40, 1
      %s42 = scalar_select %p39, %s40, %s41
      %p45 = pneg %p39
      %p46 = scmp.eq.s32.totalorder %s9, 31
      %p47 = por %p45, %p46
      %p48 = scmp.ne.s32.totalorder %s40, %s43
      %p49 = scmp.eq.s32.totalorder %s9, 0
      %p50 = por %p48, %p49
      %p51 = scmp.ne.s32.totalorder %s40, %s43
      %p52 = scmp.eq.s32.totalorder %s14, 31
      %p53 = por %p51, %p52
      %p54 = scmp.ne.s32.totalorder %s43, %s44
      %p55 = scmp.eq.s32.totalorder %s14, 0
      %p56 = por %p54, %p55
      %p57 = scmp.ne.s32.totalorder %s43, %s44
      %p58 = scmp.eq.s32.totalorder %s15, 31
      %p59 = por %p57, %p58
      %p61 = scmp.ne.s32.totalorder %s44, %s60
      %p62 = scmp.eq.s32.totalorder %s15, 0
      %p63 = por %p61, %p62
      %s65 = sadd.s32 %s64, 1
      %p68 = scmp.eq.s32.totalorder %s9, 31
      %p69 = scmp.ne.s32.totalorder %s64, %s66
      %p70 = scmp.eq.s32.totalorder %s9, 0
      %p71 = por %p69, %p70
      %p72 = scmp.ne.s32.totalorder %s64, %s66
      %p73 = scmp.eq.s32.totalorder %s14, 31
      %p74 = por %p72, %p73
      %p75 = scmp.ne.s32.totalorder %s66, %s67
      %p76 = scmp.eq.s32.totalorder %s14, 0
      %p77 = por %p75, %p76
      %p78 = scmp.ne.s32.totalorder %s66, %s67
      %p79 = scmp.eq.s32.totalorder %s15, 31
      %p80 = por %p78, %p79
      %p82 = scmp.ne.s32.totalorder %s67, %s81
      %p83 = scmp.eq.s32.totalorder %s15, 0
      %p84 = por %p82, %p83
      %s85 = ssub.s32 %s9, %s16
      %p86 = scmp.eq.s32.totalorder %s85, 0
      %s88 = sadd.s32 %s87, 1
      %s89 = scalar_select %p86, %s87, %s88
      %p92 = pneg %p86
      %p93 = scmp.eq.s32.totalorder %s9, 31
      %p94 = por %p92, %p93
      %p95 = scmp.ne.s32.totalorder %s87, %s90
      %p96 = scmp.eq.s32.totalorder %s9, 0
      %p97 = por %p95, %p96
      %p98 = scmp.ne.s32.totalorder %s87, %s90
      %p99 = scmp.eq.s32.totalorder %s14, 31
      %p100 = por %p98, %p99
      %p101 = scmp.ne.s32.totalorder %s90, %s91
      %p102 = scmp.eq.s32.totalorder %s14, 0
      %p103 = por %p101, %p102
      %p104 = scmp.ne.s32.totalorder %s90, %s91
      %p105 = scmp.eq.s32.totalorder %s15, 31
      %p106 = por %p104, %p105
      %p108 = scmp.ne.s32.totalorder %s91, %s107
      %p109 = scmp.eq.s32.totalorder %s15, 0
      %p110 = por %p108, %p109
      %p111 = scmp.le.s32.totalorder 1, %s9
      %p112 = scmp.lt.s32.totalorder %s9, 33
      %p113 = pnand %p111, %p112
      %p114 = pneg %p113
      // Predicated region
      $region9: #{generator_forward.32} parent=5 // pred_check
        _
      $region10: #{generator_forward.32} parent=5 // pred_check_branch
        %116 = sbr.rel (%p113) target = $region12
      $region11: #{generator_forward.32} parent=5 // pred_region
        %s117 = ssub.s32 %s9, 1
        // Predicated region
        $region13: #{generator_forward.32} parent=11 // pred_check
          %p118 = pneg %p30
        $region14: #{generator_forward.32} parent=11 // pred_check_branch
          %120 = sbr.rel (%p118) target = $region16
        $region15: #{generator_forward.32} parent=11 // pred_region
          _
        $region16: #{generator_forward.32} parent=11 // pred_fallthru
          _
        // Predicated region
        $region17: #{generator_forward.32} parent=11 // pred_check
          %p121 = pneg %p77
        $region18: #{generator_forward.32} parent=11 // pred_check_branch
          %123 = sbr.rel (%p121) target = $region20
        $region19: #{generator_forward.32} parent=11 // pred_region
          _
        $region20: #{generator_forward.32} parent=11 // pred_fallthru
          _
      $region12: #{generator_forward.32} parent=5 // pred_fallthru
        _
      %p124 = scmp.lt.s32.totalorder %s9, 32
      // Predicated region
      $region21: #{generator_forward.32} parent=5 // pred_check
        %p125 = pneg %p124
      $region22: #{generator_forward.32} parent=5 // pred_check_branch
        %127 = sbr.rel (%p125) target = $region24
      $region23: #{generator_forward.32} parent=5 // pred_region
        // Predicated region
        $region25: #{generator_forward.32} parent=23 // pred_check
          %p128 = pneg %p50
        $region26: #{generator_forward.32} parent=23 // pred_check_branch
          %130 = sbr.rel (%p128) target = $region28
        $region27: #{generator_forward.32} parent=23 // pred_region
          %s131 = sand.u32 %s40, 1
          %s132 = sand.u32 %s40, 1
          %s133 = smul.addr %s132, 656
          %s134 = scalar_lea.vmem [#allocation2], %s133
          %s135 = smul.u32 4, %s9
          %s136 = smul.addr %s135, 4
          %s137 = scalar_lea.vmem %s1, %s136
          // Predicated region
          $region29: #{generator_forward.32} parent=27 // pred_check
            _
          $region30: #{generator_forward.32} parent=27 // pred_check_branch
            %139 = sbr.rel (0) target = $region32
          $region31: #{generator_forward.32} parent=27 // pred_region
            // Predicated region
            $region33: #{generator_forward.32} parent=31 // pred_check
              _
            $region34: #{generator_forward.32} parent=31 // pred_check_branch
              %141 = sbr.rel (0) target = $region36
            $region35: #{generator_forward.32} parent=31 // pred_region
              loop: start=0, step=1, limit=1
              $region37: #{generator_forward.32} parent=35 // loop_pre_header
                _
              $region38: #{generator_forward.32} parent=35 // loop_header
                %s143 = sphi 0, %s147
                %p144 = scmp.ge.s32.totalorder %s143, 1
                %s148 = sphi %s137, %s137
                %s149 = sphi %s134, %s134
              $region39: #{generator_forward.32} parent=35 // loop_header_branch
                %146 = sbr.rel (%p144) target = $region43
              $region40: #{generator_forward.32} parent=35 // loop_body
                %v150 = vld [vmem:[%s148] sm:$0xff]
                %151 = vst [vmem:[%s149] sm:$0xff] %v150
                %v152 = vld [vmem:[%s148 + $0x8] sm:$0xff]
                %153 = vst [vmem:[%s149 + $0x8] sm:$0xff] %v152
                %v154 = vld [vmem:[%s148 + $0x200] sm:$0xff]
                %155 = vst [vmem:[%s149 + $0x10] sm:$0xff] %v154
                %v156 = vld [vmem:[%s148 + $0x208] sm:$0xff]
                %157 = vst [vmem:[%s149 + $0x18] sm:$0xff] %v156
                %v158 = vld [vmem:[%s148 + $0x400] sm:$0xff]
                %159 = vst [vmem:[%s149 + $0x20] sm:$0xff] %v158
                %v160 = vld [vmem:[%s148 + $0x408] sm:$0xff]
                %161 = vst [vmem:[%s149 + $0x28] sm:$0xff] %v160
                %v162 = vld [vmem:[%s148 + $0x600] sm:$0xff]
                %163 = vst [vmem:[%s149 + $0x30] sm:$0xff] %v162
                %v164 = vld [vmem:[%s148 + $0x608] sm:$0xff]
                %165 = vst [vmem:[%s149 + $0x38] sm:$0xff] %v164
                %v166 = vld [vmem:[%s148 + $0x800] sm:$0xff]
                %167 = vst [vmem:[%s149 + $0x40] sm:$0xff] %v166
                %v168 = vld [vmem:[%s148 + $0x808] sm:$0xff]
                %169 = vst [vmem:[%s149 + $0x48] sm:$0xff] %v168
                %v170 = vld [vmem:[%s148 + $0xa00] sm:$0xff]
                %171 = vst [vmem:[%s149 + $0x50] sm:$0xff] %v170
                %v172 = vld [vmem:[%s148 + $0xa08] sm:$0xff]
                %173 = vst [vmem:[%s149 + $0x58] sm:$0xff] %v172
                %v174 = vld [vmem:[%s148 + $0xc00] sm:$0xff]
                %175 = vst [vmem:[%s149 + $0x60] sm:$0xff] %v174
                %v176 = vld [vmem:[%s148 + $0xc08] sm:$0xff]
                %177 = vst [vmem:[%s149 + $0x68] sm:$0xff] %v176
                %v178 = vld [vmem:[%s148 + $0xe00] sm:$0xff]
                %179 = vst [vmem:[%s149 + $0x70] sm:$0xff] %v178
                %v180 = vld [vmem:[%s148 + $0xe08] sm:$0xff]
                %181 = vst [vmem:[%s149 + $0x78] sm:$0xff] %v180
                %v182 = vld [vmem:[%s148 + $0x1000] sm:$0xff]
                %183 = vst [vmem:[%s149 + $0x80] sm:$0xff] %v182
                %v184 = vld [vmem:[%s148 + $0x1008] sm:$0xff]
                %185 = vst [vmem:[%s149 + $0x88] sm:$0xff] %v184
                %v186 = vld [vmem:[%s148 + $0x1200] sm:$0xff]
                %187 = vst [vmem:[%s149 + $0x90] sm:$0xff] %v186
                %v188 = vld [vmem:[%s148 + $0x1208] sm:$0xff]
                %189 = vst [vmem:[%s149 + $0x98] sm:$0xff] %v188
                %v190 = vld [vmem:[%s148 + $0x1400] sm:$0xff]
                %191 = vst [vmem:[%s149 + $0xa0] sm:$0xff] %v190
                %v192 = vld [vmem:[%s148 + $0x1408] sm:$0xff]
                %193 = vst [vmem:[%s149 + $0xa8] sm:$0xff] %v192
                %v194 = vld [vmem:[%s148 + $0x1600] sm:$0xff]
                %195 = vst [vmem:[%s149 + $0xb0] sm:$0xff] %v194
                %v196 = vld [vmem:[%s148 + $0x1608] sm:$0xff]
                %197 = vst [vmem:[%s149 + $0xb8] sm:$0xff] %v196
                %v198 = vld [vmem:[%s148 + $0x1800] sm:$0xff]
                %199 = vst [vmem:[%s149 + $0xc0] sm:$0xff] %v198
                %v200 = vld [vmem:[%s148 + $0x1808] sm:$0xff]
                %201 = vst [vmem:[%s149 + $0xc8] sm:$0xff] %v200
                %v202 = vld [vmem:[%s148 + $0x1a00] sm:$0xff]
                %203 = vst [vmem:[%s149 + $0xd0] sm:$0xff] %v202
                %v204 = vld [vmem:[%s148 + $0x1a08] sm:$0xff]
                %205 = vst [vmem:[%s149 + $0xd8] sm:$0xff] %v204
                %v206 = vld [vmem:[%s148 + $0x1c00] sm:$0xff]
                %207 = vst [vmem:[%s149 + $0xe0] sm:$0xff] %v206
                %v208 = vld [vmem:[%s148 + $0x1c08] sm:$0xff]
                %209 = vst [vmem:[%s149 + $0xe8] sm:$0xff] %v208
                %v210 = vld [vmem:[%s148 + $0x1e00] sm:$0xff]
                %211 = vst [vmem:[%s149 + $0xf0] sm:$0xff] %v210
                %v212 = vld [vmem:[%s148 + $0x1e08] sm:$0xff]
                %213 = vst [vmem:[%s149 + $0xf8] sm:$0xff] %v212
                %v214 = vld [vmem:[%s148 + $0x2000] sm:$0xff]
                %215 = vst [vmem:[%s149 + $0x100] sm:$0xff] %v214
                %v216 = vld [vmem:[%s148 + $0x2008] sm:$0xff]
                %217 = vst [vmem:[%s149 + $0x108] sm:$0xff] %v216
                %v218 = vld [vmem:[%s148 + $0x2200] sm:$0xff]
                %219 = vst [vmem:[%s149 + $0x110] sm:$0xff] %v218
                %v220 = vld [vmem:[%s148 + $0x2208] sm:$0xff]
                %221 = vst [vmem:[%s149 + $0x118] sm:$0xff] %v220
                %v222 = vld [vmem:[%s148 + $0x2400] sm:$0xff]
                %223 = vst [vmem:[%s149 + $0x120] sm:$0xff] %v222
                %v224 = vld [vmem:[%s148 + $0x2408] sm:$0xff]
                %225 = vst [vmem:[%s149 + $0x128] sm:$0xff] %v224
                %v226 = vld [vmem:[%s148 + $0x2600] sm:$0xff]
                %227 = vst [vmem:[%s149 + $0x130] sm:$0xff] %v226
                %v228 = vld [vmem:[%s148 + $0x2608] sm:$0xff]
                %229 = vst [vmem:[%s149 + $0x138] sm:$0xff] %v228
                %v230 = vld [vmem:[%s148 + $0x2800] sm:$0xff]
                %231 = vst [vmem:[%s149 + $0x140] sm:$0xff] %v230
                %v232 = vld [vmem:[%s148 + $0x2808] sm:$0xff]
                %233 = vst [vmem:[%s149 + $0x148] sm:$0xff] %v232
                %v234 = vld [vmem:[%s148 + $0x2a00] sm:$0xff]
                %235 = vst [vmem:[%s149 + $0x150] sm:$0xff] %v234
                %v236 = vld [vmem:[%s148 + $0x2a08] sm:$0xff]
                %237 = vst [vmem:[%s149 + $0x158] sm:$0xff] %v236
                %v238 = vld [vmem:[%s148 + $0x2c00] sm:$0xff]
                %239 = vst [vmem:[%s149 + $0x160] sm:$0xff] %v238
                %v240 = vld [vmem:[%s148 + $0x2c08] sm:$0xff]
                %241 = vst [vmem:[%s149 + $0x168] sm:$0xff] %v240
                %v242 = vld [vmem:[%s148 + $0x2e00] sm:$0xff]
                %243 = vst [vmem:[%s149 + $0x170] sm:$0xff] %v242
                %v244 = vld [vmem:[%s148 + $0x2e08] sm:$0xff]
                %245 = vst [vmem:[%s149 + $0x178] sm:$0xff] %v244
                %v246 = vld [vmem:[%s148 + $0x3000] sm:$0xff]
                %247 = vst [vmem:[%s149 + $0x180] sm:$0xff] %v246
                %v248 = vld [vmem:[%s148 + $0x3008] sm:$0xff]
                %249 = vst [vmem:[%s149 + $0x188] sm:$0xff] %v248
                %v250 = vld [vmem:[%s148 + $0x3200] sm:$0xff]
                %251 = vst [vmem:[%s149 + $0x190] sm:$0xff] %v250
                %v252 = vld [vmem:[%s148 + $0x3208] sm:$0xff]
                %253 = vst [vmem:[%s149 + $0x198] sm:$0xff] %v252
                %v254 = vld [vmem:[%s148 + $0x3400] sm:$0xff]
                %255 = vst [vmem:[%s149 + $0x1a0] sm:$0xff] %v254
                %v256 = vld [vmem:[%s148 + $0x3408] sm:$0xff]
                %257 = vst [vmem:[%s149 + $0x1a8] sm:$0xff] %v256
                %v258 = vld [vmem:[%s148 + $0x3600] sm:$0xff]
                %259 = vst [vmem:[%s149 + $0x1b0] sm:$0xff] %v258
                %v260 = vld [vmem:[%s148 + $0x3608] sm:$0xff]
                %261 = vst [vmem:[%s149 + $0x1b8] sm:$0xff] %v260
                %v262 = vld [vmem:[%s148 + $0x3800] sm:$0xff]
                %263 = vst [vmem:[%s149 + $0x1c0] sm:$0xff] %v262
                %v264 = vld [vmem:[%s148 + $0x3808] sm:$0xff]
                %265 = vst [vmem:[%s149 + $0x1c8] sm:$0xff] %v264
                %v266 = vld [vmem:[%s148 + $0x3a00] sm:$0xff]
                %267 = vst [vmem:[%s149 + $0x1d0] sm:$0xff] %v266
                %v268 = vld [vmem:[%s148 + $0x3a08] sm:$0xff]
                %269 = vst [vmem:[%s149 + $0x1d8] sm:$0xff] %v268
                %v270 = vld [vmem:[%s148 + $0x3c00] sm:$0xff]
                %271 = vst [vmem:[%s149 + $0x1e0] sm:$0xff] %v270
                %v272 = vld [vmem:[%s148 + $0x3c08] sm:$0xff]
                %273 = vst [vmem:[%s149 + $0x1e8] sm:$0xff] %v272
                %v274 = vld [vmem:[%s148 + $0x3e00] sm:$0xff]
                %275 = vst [vmem:[%s149 + $0x1f0] sm:$0xff] %v274
                %v276 = vld [vmem:[%s148 + $0x3e08] sm:$0xff]
                %277 = vst [vmem:[%s149 + $0x1f8] sm:$0xff] %v276
                %v278 = vld [vmem:[%s148 + $0x4000] sm:$0xff]
                %279 = vst [vmem:[%s149 + $0x200] sm:$0xff] %v278
                %v280 = vld [vmem:[%s148 + $0x4008] sm:$0xff]
                %281 = vst [vmem:[%s149 + $0x208] sm:$0xff] %v280
                %v282 = vld [vmem:[%s148 + $0x4200] sm:$0xff]
                %283 = vst [vmem:[%s149 + $0x210] sm:$0xff] %v282
                %v284 = vld [vmem:[%s148 + $0x4208] sm:$0xff]
                %285 = vst [vmem:[%s149 + $0x218] sm:$0xff] %v284
                %v286 = vld [vmem:[%s148 + $0x4400] sm:$0xff]
                %287 = vst [vmem:[%s149 + $0x220] sm:$0xff] %v286
                %v288 = vld [vmem:[%s148 + $0x4408] sm:$0xff]
                %289 = vst [vmem:[%s149 + $0x228] sm:$0xff] %v288
                %v290 = vld [vmem:[%s148 + $0x4600] sm:$0xff]
                %291 = vst [vmem:[%s149 + $0x230] sm:$0xff] %v290
                %v292 = vld [vmem:[%s148 + $0x4608] sm:$0xff]
                %293 = vst [vmem:[%s149 + $0x238] sm:$0xff] %v292
                %v294 = vld [vmem:[%s148 + $0x4800] sm:$0xff]
                %295 = vst [vmem:[%s149 + $0x240] sm:$0xff] %v294
                %v296 = vld [vmem:[%s148 + $0x4808] sm:$0xff]
                %297 = vst [vmem:[%s149 + $0x248] sm:$0xff] %v296
                %v298 = vld [vmem:[%s148 + $0x4a00] sm:$0xff]
                %299 = vst [vmem:[%s149 + $0x250] sm:$0xff] %v298
                %v300 = vld [vmem:[%s148 + $0x4a08] sm:$0xff]
                %301 = vst [vmem:[%s149 + $0x258] sm:$0xff] %v300
                %v302 = vld [vmem:[%s148 + $0x4c00] sm:$0xff]
                %303 = vst [vmem:[%s149 + $0x260] sm:$0xff] %v302
                %v304 = vld [vmem:[%s148 + $0x4c08] sm:$0xff]
                %305 = vst [vmem:[%s149 + $0x268] sm:$0xff] %v304
                %v306 = vld [vmem:[%s148 + $0x4e00] sm:$0xff]
                %307 = vst [vmem:[%s149 + $0x270] sm:$0xff] %v306
                %v308 = vld [vmem:[%s148 + $0x4e08] sm:$0xff]
                %309 = vst [vmem:[%s149 + $0x278] sm:$0xff] %v308
                %v310 = vld [vmem:[%s148 + $0x5000] sm:$0xff]
                %311 = vst [vmem:[%s149 + $0x280] sm:$0xff] %v310
                %v312 = vld [vmem:[%s148 + $0x5008] sm:$0xff]
                %313 = vst [vmem:[%s149 + $0x288] sm:$0xff] %v312
              $region41: #{generator_forward.32} parent=35 // loop_footer
                %s147 = sadd.s32 1, %s143
              $region42: #{generator_forward.32} parent=35 // loop_footer_branch
                %142 = sbr.rel target = $region38
              $region43: #{generator_forward.32} parent=35 // loop_exit
                _
            $region36: #{generator_forward.32} parent=31 // pred_fallthru
              _
            // Predicated region
            $region44: #{generator_forward.32} parent=31 // pred_check
              _
            $region45: #{generator_forward.32} parent=31 // pred_check_branch
              %315 = sbr.rel target = $region47
            $region46: #{generator_forward.32} parent=31 // pred_region
              _
            $region47: #{generator_forward.32} parent=31 // pred_fallthru
              _
          $region32: #{generator_forward.32} parent=27 // pred_fallthru
            _
          %316 = vnop
        $region28: #{generator_forward.32} parent=23 // pred_fallthru
          _
      $region24: #{generator_forward.32} parent=5 // pred_fallthru
        _
      %p317 = scmp.le.s32.totalorder 1, %s9
      %p318 = scmp.lt.s32.totalorder %s9, 33
      %p319 = pnand %p317, %p318
      %p320 = pneg %p319
      // Predicated region
      $region48: #{generator_forward.32} parent=5 // pred_check
        _
      $region49: #{generator_forward.32} parent=5 // pred_check_branch
        %322 = sbr.rel (%p319) target = $region51
      $region50: #{generator_forward.32} parent=5 // pred_region
        %s323 = ssub.s32 %s9, 1
        %s324 = sand.u32 %s43, 1
        %s325 = sand.u32 %s43, 1
        %s326 = smul.addr %s325, 656
        %s327 = scalar_lea.vmem [#allocation2], %s326
        // Predicated region
        $region52: #{generator_forward.32} parent=50 // pred_check
          %p328 = pneg %p56
        $region53: #{generator_forward.32} parent=50 // pred_check_branch
          %330 = sbr.rel (%p328) target = $region55
        $region54: #{generator_forward.32} parent=50 // pred_region
          _
        $region55: #{generator_forward.32} parent=50 // pred_fallthru
          _
        %p331 = pneg %p30
        %p332 = pneg %p27
        %s333 = sand.u32 %s43, 1
        %s334 = sand.u32 %s43, 1
        %s335 = smul.addr %s334, 656
        %s336 = scalar_lea.vmem [#allocation2], %s335
        %p337 = pneg %p56
        %p338 = pneg %p53
        %p339 = pneg %p77
        %p340 = pneg %p74
        %p341 = pneg %p103
        %p342 = pneg %p100
        %s343 = sand.u32 %s90, 1
        %s344 = sand.u32 %s90, 1
        %s345 = smul.addr %s344, 64
        %s346 = scalar_lea.vmem [#allocation3], %s345
        %s347 = smul.u32 4, %s14
        %s348 = smul.u32 4, %s14
        %v350 = vld [vmem:[%s0] sm:$0xff]
        %v351 = vld [vmem:[%s0 + $0x8] sm:$0xf]
        %v352 = vld [vmem:[%s0 + $0xc] sm:$0x33]
        %v353 = vld [vmem:[%s0 + $0x14] sm:$0x3]
        %v354 = vld [vmem:[%s327] sm:$0xff]
        %v355 = vld [vmem:[%s327 + $0x8] sm:$0xff]
        %v356 = vld [vmem:[%s327 + $0x10] sm:$0xff]
        %v357 = vld [vmem:[%s327 + $0x18] sm:$0xff]
        %v358 = vld [vmem:[%s327 + $0x20] sm:$0xff]
        %v359 = vld [vmem:[%s327 + $0x28] sm:$0xff]
        %v360 = vld [vmem:[%s327 + $0x30] sm:$0xff]
        %v361 = vld [vmem:[%s327 + $0x38] sm:$0xff]
        %v362 = vld [vmem:[%s327 + $0x40] sm:$0xff]
        %v363 = vld [vmem:[%s327 + $0x48] sm:$0xff]
        %v364 = vld [vmem:[%s327 + $0x50] sm:$0xff]
        %v365 = vld [vmem:[%s327 + $0x58] sm:$0xff]
        %v366 = vld [vmem:[%s327 + $0x60] sm:$0xff]
        %v367 = vld [vmem:[%s327 + $0x68] sm:$0xff]
        %v368 = vld [vmem:[%s327 + $0x70] sm:$0xff]
        %v369 = vld [vmem:[%s327 + $0x78] sm:$0xff]
        %v370 = vld [vmem:[%s327 + $0x80] sm:$0xff]
        %v371 = vld [vmem:[%s327 + $0x88] sm:$0xff]
        %v372 = vld [vmem:[%s327 + $0x90] sm:$0xff]
        %v373 = vld [vmem:[%s327 + $0x98] sm:$0xff]
        %v374 = vld [vmem:[%s327 + $0xa0] sm:$0xff]
        %v375 = vld [vmem:[%s327 + $0xa8] sm:$0xff]
        %v376 = vld [vmem:[%s327 + $0xb0] sm:$0xff]
        %v377 = vld [vmem:[%s327 + $0xb8] sm:$0xff]
        %v378 = vld [vmem:[%s327 + $0xc0] sm:$0xff]
        %v379 = vld [vmem:[%s327 + $0xc8] sm:$0xff]
        %v380 = vld [vmem:[%s327 + $0xd0] sm:$0xff]
        %v381 = vld [vmem:[%s327 + $0xd8] sm:$0xff]
        %v382 = vld [vmem:[%s327 + $0xe0] sm:$0xff]
        %v383 = vld [vmem:[%s327 + $0xe8] sm:$0xff]
        %v384 = vld [vmem:[%s327 + $0xf0] sm:$0xff]
        %v385 = vld [vmem:[%s327 + $0xf8] sm:$0xff]
        %v386 = vld [vmem:[%s327 + $0x100] sm:$0xff]
        %v387 = vld [vmem:[%s327 + $0x108] sm:$0xff]
        %v388 = vld [vmem:[%s327 + $0x110] sm:$0xff]
        %v389 = vld [vmem:[%s327 + $0x118] sm:$0xff]
        %v390 = vld [vmem:[%s327 + $0x120] sm:$0xff]
        %v391 = vld [vmem:[%s327 + $0x128] sm:$0xff]
        %v392 = vld [vmem:[%s327 + $0x130] sm:$0xff]
        %v393 = vld [vmem:[%s327 + $0x138] sm:$0xff]
        %v394 = vld [vmem:[%s327 + $0x140] sm:$0xff]
        %v395 = vld [vmem:[%s327 + $0x148] sm:$0xff]
        %v396 = vld [vmem:[%s327 + $0x150] sm:$0xff]
        %v397 = vld [vmem:[%s327 + $0x158] sm:$0xff]
        %v398 = vld [vmem:[%s327 + $0x160] sm:$0xff]
        %v399 = vld [vmem:[%s327 + $0x168] sm:$0xff]
        %v400 = vld [vmem:[%s327 + $0x170] sm:$0xff]
        %v401 = vld [vmem:[%s327 + $0x178] sm:$0xff]
        %v402 = vld [vmem:[%s327 + $0x180] sm:$0xff]
        %v403 = vld [vmem:[%s327 + $0x188] sm:$0xff]
        %v404 = vld [vmem:[%s327 + $0x190] sm:$0xff]
        %v405 = vld [vmem:[%s327 + $0x198] sm:$0xff]
        %v406 = vld [vmem:[%s327 + $0x1a0] sm:$0xff]
        %v407 = vld [vmem:[%s327 + $0x1a8] sm:$0xff]
        %v408 = vld [vmem:[%s327 + $0x1b0] sm:$0xff]
        %v409 = vld [vmem:[%s327 + $0x1b8] sm:$0xff]
        %v410 = vld [vmem:[%s327 + $0x1c0] sm:$0xff]
        %v411 = vld [vmem:[%s327 + $0x1c8] sm:$0xff]
        %v412 = vld [vmem:[%s327 + $0x1d0] sm:$0xff]
        %v413 = vld [vmem:[%s327 + $0x1d8] sm:$0xff]
        %v414 = vld [vmem:[%s327 + $0x1e0] sm:$0xff]
        %v415 = vld [vmem:[%s327 + $0x1e8] sm:$0xff]
        %v416 = vld [vmem:[%s327 + $0x1f0] sm:$0xff]
        %v417 = vld [vmem:[%s327 + $0x1f8] sm:$0xff]
        %v418 = vld [vmem:[%s327 + $0x200] sm:$0xff]
        %v419 = vld [vmem:[%s327 + $0x208] sm:$0xff]
        %v420 = vld [vmem:[%s327 + $0x210] sm:$0xff]
        %v421 = vld [vmem:[%s327 + $0x218] sm:$0xff]
        %v422 = vld [vmem:[%s327 + $0x220] sm:$0xff]
        %v423 = vld [vmem:[%s327 + $0x228] sm:$0xff]
        %v424 = vld [vmem:[%s327 + $0x230] sm:$0xff]
        %v425 = vld [vmem:[%s327 + $0x238] sm:$0xff]
        %v426 = vld [vmem:[%s327 + $0x240] sm:$0xff]
        %v427 = vld [vmem:[%s327 + $0x248] sm:$0xff]
        %v428 = vld [vmem:[%s327 + $0x250] sm:$0xff]
        %v429 = vld [vmem:[%s327 + $0x258] sm:$0xff]
        %v430 = vld [vmem:[%s327 + $0x260] sm:$0xff]
        %v431 = vld [vmem:[%s327 + $0x268] sm:$0xff]
        %v432 = vld [vmem:[%s327 + $0x270] sm:$0xff]
        %v433 = vld [vmem:[%s327 + $0x278] sm:$0xff]
        %v434 = vld [vmem:[%s327 + $0x280] sm:$0x33]
        %v435 = vld [vmem:[%s327 + $0x288] sm:$0x33]
        %v436 = vld [vmem:[%s2] sm:$0xff]
        %v437 = vld [vmem:[%s2 + $0x8] sm:$0xf]
        %439 = vset.pattern.permute.xlu0 0
        %440 = vperm.xlu0 %439, %v436
        %v441 = vpop.permute.xlu0 %440
        %444 = vset.pattern.permute.xlu0 0
        %445 = vperm.xlu0 %444, %v437
        %v446 = vpop.permute.xlu0 %445
        %v452 = vunpack.c.l.b16 %v350
        %v453 = vunpack.c.h.b16 %v350
        %v454 = vunpack.c.l.b16 %v351
        %v455 = vunpack.c.l.b16 %v352
        %v456 = vunpack.c.h.b16 %v352
        %v457 = vunpack.c.l.b16 %v353
        %v458 = vpack.c.b16 %v455, %v452
        %v459 = vpack.c.b16 %v456, %v453
        %v460 = vpack.c.b16 %v457, %v454
        %v545 = vunpack.c.l.b16 %v354
        %v546 = vunpack.c.h.b16 %v354
        %v547 = vunpack.c.l.b16 %v355
        %v548 = vunpack.c.h.b16 %v355
        %v549 = vunpack.c.l.b16 %v356
        %v550 = vunpack.c.h.b16 %v356
        %v551 = vunpack.c.l.b16 %v357
        %v552 = vunpack.c.h.b16 %v357
        %v553 = vunpack.c.l.b16 %v358
        %v554 = vunpack.c.h.b16 %v358
        %v555 = vunpack.c.l.b16 %v359
        %v556 = vunpack.c.h.b16 %v359
        %v557 = vunpack.c.l.b16 %v360
        %v558 = vunpack.c.h.b16 %v360
        %v559 = vunpack.c.l.b16 %v361
        %v560 = vunpack.c.h.b16 %v361
        %v561 = vunpack.c.l.b16 %v362
        %v562 = vunpack.c.h.b16 %v362
        %v563 = vunpack.c.l.b16 %v363
        %v564 = vunpack.c.h.b16 %v363
        %v565 = vunpack.c.l.b16 %v364
        %v566 = vunpack.c.h.b16 %v364
        %v567 = vunpack.c.l.b16 %v365
        %v568 = vunpack.c.h.b16 %v365
        %v569 = vunpack.c.l.b16 %v366
        %v570 = vunpack.c.h.b16 %v366
        %v571 = vunpack.c.l.b16 %v367
        %v572 = vunpack.c.h.b16 %v367
        %v573 = vunpack.c.l.b16 %v368
        %v574 = vunpack.c.h.b16 %v368
        %v575 = vunpack.c.l.b16 %v369
        %v576 = vunpack.c.h.b16 %v369
        %v577 = vunpack.c.l.b16 %v370
        %v578 = vunpack.c.h.b16 %v370
        %v579 = vunpack.c.l.b16 %v371
        %v580 = vunpack.c.h.b16 %v371
        %v581 = vunpack.c.l.b16 %v372
        %v582 = vunpack.c.h.b16 %v372
        %v583 = vunpack.c.l.b16 %v373
        %v584 = vunpack.c.h.b16 %v373
        %v585 = vunpack.c.l.b16 %v374
        %v586 = vunpack.c.h.b16 %v374
        %v587 = vunpack.c.l.b16 %v375
        %v588 = vunpack.c.h.b16 %v375
        %v589 = vunpack.c.l.b16 %v376
        %v590 = vunpack.c.h.b16 %v376
        %v591 = vunpack.c.l.b16 %v377
        %v592 = vunpack.c.h.b16 %v377
        %v593 = vunpack.c.l.b16 %v378
        %v594 = vunpack.c.h.b16 %v378
        %v595 = vunpack.c.l.b16 %v379
        %v596 = vunpack.c.h.b16 %v379
        %v597 = vunpack.c.l.b16 %v380
        %v598 = vunpack.c.h.b16 %v380
        %v599 = vunpack.c.l.b16 %v381
        %v600 = vunpack.c.h.b16 %v381
        %v601 = vunpack.c.l.b16 %v382
        %v602 = vunpack.c.h.b16 %v382
        %v603 = vunpack.c.l.b16 %v383
        %v604 = vunpack.c.h.b16 %v383
        %v605 = vunpack.c.l.b16 %v384
        %v606 = vunpack.c.h.b16 %v384
        %v607 = vunpack.c.l.b16 %v385
        %v608 = vunpack.c.h.b16 %v385
        %v609 = vunpack.c.l.b16 %v386
        %v610 = vunpack.c.h.b16 %v386
        %v611 = vunpack.c.l.b16 %v387
        %v612 = vunpack.c.h.b16 %v387
        %v613 = vunpack.c.l.b16 %v388
        %v614 = vunpack.c.h.b16 %v388
        %v615 = vunpack.c.l.b16 %v389
        %v616 = vunpack.c.h.b16 %v389
        %v617 = vunpack.c.l.b16 %v390
        %v618 = vunpack.c.h.b16 %v390
        %v619 = vunpack.c.l.b16 %v391
        %v620 = vunpack.c.h.b16 %v391
        %v621 = vunpack.c.l.b16 %v392
        %v622 = vunpack.c.h.b16 %v392
        %v623 = vunpack.c.l.b16 %v393
        %v624 = vunpack.c.h.b16 %v393
        %v625 = vunpack.c.l.b16 %v394
        %v626 = vunpack.c.h.b16 %v394
        %v627 = vunpack.c.l.b16 %v395
        %v628 = vunpack.c.h.b16 %v395
        %v629 = vunpack.c.l.b16 %v396
        %v630 = vunpack.c.h.b16 %v396
        %v631 = vunpack.c.l.b16 %v397
        %v632 = vunpack.c.h.b16 %v397
        %v633 = vunpack.c.l.b16 %v398
        %v634 = vunpack.c.h.b16 %v398
        %v635 = vunpack.c.l.b16 %v399
        %v636 = vunpack.c.h.b16 %v399
        %v637 = vunpack.c.l.b16 %v400
        %v638 = vunpack.c.h.b16 %v400
        %v639 = vunpack.c.l.b16 %v401
        %v640 = vunpack.c.h.b16 %v401
        %v641 = vunpack.c.l.b16 %v402
        %v642 = vunpack.c.h.b16 %v402
        %v643 = vunpack.c.l.b16 %v403
        %v644 = vunpack.c.h.b16 %v403
        %v645 = vunpack.c.l.b16 %v404
        %v646 = vunpack.c.h.b16 %v404
        %v647 = vunpack.c.l.b16 %v405
        %v648 = vunpack.c.h.b16 %v405
        %v649 = vunpack.c.l.b16 %v406
        %v650 = vunpack.c.h.b16 %v406
        %v651 = vunpack.c.l.b16 %v407
        %v652 = vunpack.c.h.b16 %v407
        %v653 = vunpack.c.l.b16 %v408
        %v654 = vunpack.c.h.b16 %v408
        %v655 = vunpack.c.l.b16 %v409
        %v656 = vunpack.c.h.b16 %v409
        %v657 = vunpack.c.l.b16 %v410
        %v658 = vunpack.c.h.b16 %v410
        %v659 = vunpack.c.l.b16 %v411
        %v660 = vunpack.c.h.b16 %v411
        %v661 = vunpack.c.l.b16 %v412
        %v662 = vunpack.c.h.b16 %v412
        %v663 = vunpack.c.l.b16 %v413
        %v664 = vunpack.c.h.b16 %v413
        %v665 = vunpack.c.l.b16 %v414
        %v666 = vunpack.c.h.b16 %v414
        %v667 = vunpack.c.l.b16 %v415
        %v668 = vunpack.c.h.b16 %v415
        %v669 = vunpack.c.l.b16 %v416
        %v670 = vunpack.c.h.b16 %v416
        %v671 = vunpack.c.l.b16 %v417
        %v672 = vunpack.c.h.b16 %v417
        %v673 = vunpack.c.l.b16 %v418
        %v674 = vunpack.c.h.b16 %v418
        %v675 = vunpack.c.l.b16 %v419
        %v676 = vunpack.c.h.b16 %v419
        %v677 = vunpack.c.l.b16 %v420
        %v678 = vunpack.c.h.b16 %v420
        %v679 = vunpack.c.l.b16 %v421
        %v680 = vunpack.c.h.b16 %v421
        %v681 = vunpack.c.l.b16 %v422
        %v682 = vunpack.c.h.b16 %v422
        %v683 = vunpack.c.l.b16 %v423
        %v684 = vunpack.c.h.b16 %v423
        %v685 = vunpack.c.l.b16 %v424
        %v686 = vunpack.c.h.b16 %v424
        %v687 = vunpack.c.l.b16 %v425
        %v688 = vunpack.c.h.b16 %v425
        %v689 = vunpack.c.l.b16 %v426
        %v690 = vunpack.c.h.b16 %v426
        %v691 = vunpack.c.l.b16 %v427
        %v692 = vunpack.c.h.b16 %v427
        %v693 = vunpack.c.l.b16 %v428
        %v694 = vunpack.c.h.b16 %v428
        %v695 = vunpack.c.l.b16 %v429
        %v696 = vunpack.c.h.b16 %v429
        %v697 = vunpack.c.l.b16 %v430
        %v698 = vunpack.c.h.b16 %v430
        %v699 = vunpack.c.l.b16 %v431
        %v700 = vunpack.c.h.b16 %v431
        %v701 = vunpack.c.l.b16 %v432
        %v702 = vunpack.c.h.b16 %v432
        %v703 = vunpack.c.l.b16 %v433
        %v704 = vunpack.c.h.b16 %v433
        %v705 = vunpack.c.l.b16 %v434
        %v706 = vunpack.c.h.b16 %v434
        %v707 = vunpack.c.l.b16 %v435
        %v708 = vunpack.c.h.b16 %v435
        %v709 = vpack.c.b16 %v549, %v545
        %v710 = vpack.c.b16 %v550, %v546
        %v711 = vpack.c.b16 %v551, %v547
        %v712 = vpack.c.b16 %v552, %v548
        %v713 = vpack.c.b16 %v557, %v553
        %v714 = vpack.c.b16 %v558, %v554
        %v715 = vpack.c.b16 %v559, %v555
        %v716 = vpack.c.b16 %v560, %v556
        %v717 = vpack.c.b16 %v565, %v561
        %v718 = vpack.c.b16 %v566, %v562
        %v719 = vpack.c.b16 %v567, %v563
        %v720 = vpack.c.b16 %v568, %v564
        %v721 = vpack.c.b16 %v573, %v569
        %v722 = vpack.c.b16 %v574, %v570
        %v723 = vpack.c.b16 %v575, %v571
        %v724 = vpack.c.b16 %v576, %v572
        %v725 = vpack.c.b16 %v581, %v577
        %v726 = vpack.c.b16 %v582, %v578
        %v727 = vpack.c.b16 %v583, %v579
        %v728 = vpack.c.b16 %v584, %v580
        %v729 = vpack.c.b16 %v589, %v585
        %v730 = vpack.c.b16 %v590, %v586
        %v731 = vpack.c.b16 %v591, %v587
        %v732 = vpack.c.b16 %v592, %v588
        %v733 = vpack.c.b16 %v597, %v593
        %v734 = vpack.c.b16 %v598, %v594
        %v735 = vpack.c.b16 %v599, %v595
        %v736 = vpack.c.b16 %v600, %v596
        %v737 = vpack.c.b16 %v605, %v601
        %v738 = vpack.c.b16 %v606, %v602
        %v739 = vpack.c.b16 %v607, %v603
        %v740 = vpack.c.b16 %v608, %v604
        %v741 = vpack.c.b16 %v613, %v609
        %v742 = vpack.c.b16 %v614, %v610
        %v743 = vpack.c.b16 %v615, %v611
        %v744 = vpack.c.b16 %v616, %v612
        %v745 = vpack.c.b16 %v621, %v617
        %v746 = vpack.c.b16 %v622, %v618
        %v747 = vpack.c.b16 %v623, %v619
        %v748 = vpack.c.b16 %v624, %v620
        %v749 = vpack.c.b16 %v629, %v625
        %v750 = vpack.c.b16 %v630, %v626
        %v751 = vpack.c.b16 %v631, %v627
        %v752 = vpack.c.b16 %v632, %v628
        %v753 = vpack.c.b16 %v637, %v633
        %v754 = vpack.c.b16 %v638, %v634
        %v755 = vpack.c.b16 %v639, %v635
        %v756 = vpack.c.b16 %v640, %v636
        %v757 = vpack.c.b16 %v645, %v641
        %v758 = vpack.c.b16 %v646, %v642
        %v759 = vpack.c.b16 %v647, %v643
        %v760 = vpack.c.b16 %v648, %v644
        %v761 = vpack.c.b16 %v653, %v649
        %v762 = vpack.c.b16 %v654, %v650
        %v763 = vpack.c.b16 %v655, %v651
        %v764 = vpack.c.b16 %v656, %v652
        %v765 = vpack.c.b16 %v661, %v657
        %v766 = vpack.c.b16 %v662, %v658
        %v767 = vpack.c.b16 %v663, %v659
        %v768 = vpack.c.b16 %v664, %v660
        %v769 = vpack.c.b16 %v669, %v665
        %v770 = vpack.c.b16 %v670, %v666
        %v771 = vpack.c.b16 %v671, %v667
        %v772 = vpack.c.b16 %v672, %v668
        %v773 = vpack.c.b16 %v677, %v673
        %v774 = vpack.c.b16 %v678, %v674
        %v775 = vpack.c.b16 %v679, %v675
        %v776 = vpack.c.b16 %v680, %v676
        %v777 = vpack.c.b16 %v685, %v681
        %v778 = vpack.c.b16 %v686, %v682
        %v779 = vpack.c.b16 %v687, %v683
        %v780 = vpack.c.b16 %v688, %v684
        %v781 = vpack.c.b16 %v693, %v689
        %v782 = vpack.c.b16 %v694, %v690
        %v783 = vpack.c.b16 %v695, %v691
        %v784 = vpack.c.b16 %v696, %v692
        %v785 = vpack.c.b16 %v701, %v697
        %v786 = vpack.c.b16 %v702, %v698
        %v787 = vpack.c.b16 %v703, %v699
        %v788 = vpack.c.b16 %v704, %v700
        %v789 = vpack.c.b16 %v705, %v705
        %v790 = vpack.c.b16 %v706, %v706
        %v791 = vpack.c.b16 %v707, %v707
        %v792 = vpack.c.b16 %v708, %v708
        %vm873 = vcmask 556032
        %v875 = vsel %vm873, %v460, 0
        %vm877 = vcmask 1041408
        %v879 = vsel %vm877, %v789, 0
        %v882 = vsel %vm877, %v790, 0
        %v885 = vsel %vm877, %v791, 0
        %v888 = vsel %vm877, %v792, 0
        %890 = vmatprep.subr.bf16.mxu0 %v710
        %891 = vmatpush1.bf16.msra.mxu0 %v709
        %892 = vmatprep.subr.bf16.mxu0 %v714
        %893 = vmatpush1.bf16.msra.mxu0 %v713
        %894 = vmatprep.subr.bf16.mxu0 %v718
        %895 = vmatpush1.bf16.msra.mxu0 %v717
        %896 = vmatprep.subr.bf16.mxu0 %v722
        %897 = vmatpush1.bf16.msra.mxu0 %v721
        %898 = vmatprep.subr.bf16.mxu0 %v726
        %899 = vmatpush1.bf16.msra.mxu0 %v725
        %900 = vmatprep.subr.bf16.mxu0 %v730
        %901 = vmatpush1.bf16.msra.mxu0 %v729
        %902 = vmatprep.subr.bf16.mxu0 %v734
        %903 = vmatpush1.bf16.msra.mxu0 %v733
        %904 = vmatprep.subr.bf16.mxu0 %v738
        %905 = vmatpush1.bf16.msra.mxu0 %v737
        %906 = vmatprep.subr.bf16.mxu0 %v742
        %907 = vmatpush1.bf16.msra.mxu0 %v741
        %908 = vmatprep.subr.bf16.mxu0 %v746
        %909 = vmatpush1.bf16.msra.mxu0 %v745
        %910 = vmatprep.subr.bf16.mxu0 %v750
        %911 = vmatpush1.bf16.msra.mxu0 %v749
        %912 = vmatprep.subr.bf16.mxu0 %v754
        %913 = vmatpush1.bf16.msra.mxu0 %v753
        %914 = vmatprep.subr.bf16.mxu0 %v758
        %915 = vmatpush1.bf16.msra.mxu0 %v757
        %916 = vmatprep.subr.bf16.mxu0 %v762
        %917 = vmatpush1.bf16.msra.mxu0 %v761
        %918 = vmatprep.subr.bf16.mxu0 %v766
        %919 = vmatpush1.bf16.msra.mxu0 %v765
        %920 = vmatprep.subr.bf16.mxu0 %v770
        %921 = vmatpush1.bf16.msra.mxu0 %v769
        %922 = vmatprep.mubr.bf16.mxu0 %v459
        %923 = vmatmul.mubr.bf16.gmra.mrb[0].mxu0 %v458
        %v924 = vpop.f32.mrb[0].mxu0
        %v925 = vadd.f32 %v441, %v924
        %v926 = vpop.f32.mrb[0].mxu0
        %v927 = vadd.f32 %v441, %v926
        %v928 = vpop.f32.mrb[0].mxu0
        %v929 = vadd.f32 %v446, %v928
        %v930 = vpop.f32.mrb[0].mxu0
        %v931 = vadd.f32 %v446, %v930
        %932 = vdwg.mxu0
        %933 = vmatprep.subr.bf16.mxu0 %v774
        %934 = vmatpush1.bf16.msra.mxu0 %v773
        %935 = vmatprep.subr.bf16.mxu0 %v778
        %936 = vmatpush1.bf16.msra.mxu0 %v777
        %937 = vmatprep.subr.bf16.mxu0 %v782
        %938 = vmatpush1.bf16.msra.mxu0 %v781
        %939 = vmatprep.subr.bf16.mxu0 %v786
        %940 = vmatpush1.bf16.msra.mxu0 %v785
        %941 = vmatprep.subr.bf16.mxu0 %v882
        %942 = vmatpush1.bf16.msra.mxu0 %v879
        %943 = vmatprep.subr.bf16.mxu0 0
        %944 = vmatpush1.bf16.msra.mxu0 0
        %945 = vmatprep.subr.bf16.mxu0 0
        %946 = vmatpush1.bf16.msra.mxu0 0
        %947 = vmatprep.subr.bf16.mxu0 0
        %948 = vmatpush1.bf16.msra.mxu0 0
        %949 = vmatprep.subr.bf16.mxu0 0
        %950 = vmatpush1.bf16.msra.mxu0 0
        %951 = vmatprep.subr.bf16.mxu0 0
        %952 = vmatpush1.bf16.msra.mxu0 0
        %953 = vmatprep.subr.bf16.mxu0 0
        %954 = vmatpush1.bf16.msra.mxu0 0
        %955 = vmatprep.subr.bf16.mxu0 0
        %956 = vmatpush1.bf16.msra.mxu0 0
        %957 = vmatprep.subr.bf16.mxu0 0
        %958 = vmatpush1.bf16.msra.mxu0 0
        %959 = vmatprep.subr.bf16.mxu0 0
        %960 = vmatpush1.bf16.msra.mxu0 0
        %961 = vmatprep.subr.bf16.mxu0 0
        %962 = vmatpush1.bf16.msra.mxu0 0
        %963 = vmatprep.subr.bf16.mxu0 0
        %964 = vmatpush1.bf16.msra.mxu0 0
        %965 = vmatprep.mubr.bf16.mxu0 0
        %966 = vmatmul.mubr.bf16.gmra.mrb[0].mxu0 %v875
        %v967 = vpop.f32.mrb[0].mxu0
        %v968 = vadd.f32 %v925, %v967
        %v969 = vpop.f32.mrb[0].mxu0
        %v970 = vadd.f32 %v927, %v969
        %v971 = vpop.f32.mrb[0].mxu0
        %v972 = vadd.f32 %v929, %v971
        %v973 = vpop.f32.mrb[0].mxu0
        %v974 = vadd.f32 %v931, %v973
        %975 = vdwg.mxu0
        %976 = vmatprep.subr.bf16.mxu0 %v712
        %977 = vmatpush1.bf16.msra.mxu0 %v711
        %978 = vmatprep.subr.bf16.mxu0 %v716
        %979 = vmatpush1.bf16.msra.mxu0 %v715
        %980 = vmatprep.subr.bf16.mxu0 %v720
        %981 = vmatpush1.bf16.msra.mxu0 %v719
        %982 = vmatprep.subr.bf16.mxu0 %v724
        %983 = vmatpush1.bf16.msra.mxu0 %v723
        %984 = vmatprep.subr.bf16.mxu0 %v728
        %985 = vmatpush1.bf16.msra.mxu0 %v727
        %986 = vmatprep.subr.bf16.mxu0 %v732
        %987 = vmatpush1.bf16.msra.mxu0 %v731
        %988 = vmatprep.subr.bf16.mxu0 %v736
        %989 = vmatpush1.bf16.msra.mxu0 %v735
        %990 = vmatprep.subr.bf16.mxu0 %v740
        %991 = vmatpush1.bf16.msra.mxu0 %v739
        %992 = vmatprep.subr.bf16.mxu0 %v744
        %993 = vmatpush1.bf16.msra.mxu0 %v743
        %994 = vmatprep.subr.bf16.mxu0 %v748
        %995 = vmatpush1.bf16.msra.mxu0 %v747
        %996 = vmatprep.subr.bf16.mxu0 %v752
        %997 = vmatpush1.bf16.msra.mxu0 %v751
        %998 = vmatprep.subr.bf16.mxu0 %v756
        %999 = vmatpush1.bf16.msra.mxu0 %v755
        %1000 = vmatprep.subr.bf16.mxu0 %v760
        %1001 = vmatpush1.bf16.msra.mxu0 %v759
        %1002 = vmatprep.subr.bf16.mxu0 %v764
        %1003 = vmatpush1.bf16.msra.mxu0 %v763
        %1004 = vmatprep.subr.bf16.mxu0 %v768
        %1005 = vmatpush1.bf16.msra.mxu0 %v767
        %1006 = vmatprep.subr.bf16.mxu0 %v772
        %1007 = vmatpush1.bf16.msra.mxu0 %v771
        %1008 = vmatprep.mubr.bf16.mxu0 %v459
        %1009 = vmatmul.mubr.bf16.gmra.mrb[0].mxu0 %v458
        %v1010 = vpop.f32.mrb[0].mxu0
        %v1011 = vadd.f32 %v441, %v1010
        %v1012 = vpop.f32.mrb[0].mxu0
        %v1013 = vadd.f32 %v441, %v1012
        %v1014 = vpop.f32.mrb[0].mxu0
        %v1015 = vadd.f32 %v446, %v1014
        %v1016 = vpop.f32.mrb[0].mxu0
        %v1017 = vadd.f32 %v446, %v1016
        %1018 = vdwg.mxu0
        %1019 = vmatprep.subr.bf16.mxu0 %v776
        %1020 = vmatpush1.bf16.msra.mxu0 %v775
        %1021 = vmatprep.subr.bf16.mxu0 %v780
        %1022 = vmatpush1.bf16.msra.mxu0 %v779
        %1023 = vmatprep.subr.bf16.mxu0 %v784
        %1024 = vmatpush1.bf16.msra.mxu0 %v783
        %1025 = vmatprep.subr.bf16.mxu0 %v788
        %1026 = vmatpush1.bf16.msra.mxu0 %v787
        %1027 = vmatprep.subr.bf16.mxu0 %v888
        %1028 = vmatpush1.bf16.msra.mxu0 %v885
        %1029 = vmatprep.subr.bf16.mxu0 0
        %1030 = vmatpush1.bf16.msra.mxu0 0
        %1031 = vmatprep.subr.bf16.mxu0 0
        %1032 = vmatpush1.bf16.msra.mxu0 0
        %1033 = vmatprep.subr.bf16.mxu0 0
        %1034 = vmatpush1.bf16.msra.mxu0 0
        %1035 = vmatprep.subr.bf16.mxu0 0
        %1036 = vmatpush1.bf16.msra.mxu0 0
        %1037 = vmatprep.subr.bf16.mxu0 0
        %1038 = vmatpush1.bf16.msra.mxu0 0
        %1039 = vmatprep.subr.bf16.mxu0 0
        %1040 = vmatpush1.bf16.msra.mxu0 0
        %1041 = vmatprep.subr.bf16.mxu0 0
        %1042 = vmatpush1.bf16.msra.mxu0 0
        %1043 = vmatprep.subr.bf16.mxu0 0
        %1044 = vmatpush1.bf16.msra.mxu0 0
        %1045 = vmatprep.subr.bf16.mxu0 0
        %1046 = vmatpush1.bf16.msra.mxu0 0
        %1047 = vmatprep.subr.bf16.mxu0 0
        %1048 = vmatpush1.bf16.msra.mxu0 0
        %1049 = vmatprep.subr.bf16.mxu0 0
        %1050 = vmatpush1.bf16.msra.mxu0 0
        %1051 = vmatprep.mubr.bf16.mxu0 0
        %1052 = vmatmul.mubr.bf16.gmra.mrb[0].mxu0 %v875
        %v1053 = vpop.f32.mrb[0].mxu0
        %v1054 = vadd.f32 %v1011, %v1053
        %v1055 = vpop.f32.mrb[0].mxu0
        %v1056 = vadd.f32 %v1013, %v1055
        %v1057 = vpop.f32.mrb[0].mxu0
        %v1058 = vadd.f32 %v1015, %v1057
        %v1059 = vpop.f32.mrb[0].mxu0
        %v1060 = vadd.f32 %v1017, %v1059
        %1061 = vdwg.mxu0
        %vm1062 = vcmp.ge.f32.partialorder %v968, 0.0
        %vm1063 = vcmp.ge.f32.partialorder %v970, 0.0
        %vm1064 = vcmp.ge.f32.partialorder %v1054, 0.0
        %vm1065 = vcmp.ge.f32.partialorder %v1056, 0.0
        %vm1066 = vcmp.ge.f32.partialorder %v972, 0.0
        %vm1067 = vcmp.ge.f32.partialorder %v974, 0.0
        %vm1068 = vcmp.ge.f32.partialorder %v1058, 0.0
        %vm1069 = vcmp.ge.f32.partialorder %v1060, 0.0
        %v1070 = vmul.f32 %v968, 0.2
        %v1071 = vmul.f32 %v970, 0.2
        %v1072 = vmul.f32 %v1054, 0.2
        %v1073 = vmul.f32 %v1056, 0.2
        %v1074 = vmul.f32 %v972, 0.2
        %v1075 = vmul.f32 %v974, 0.2
        %v1076 = vmul.f32 %v1058, 0.2
        %v1077 = vmul.f32 %v1060, 0.2
        %v1078 = vsel %vm1062, %v968, %v1070
        %v1079 = vsel %vm1063, %v970, %v1071
        %v1080 = vsel %vm1064, %v1054, %v1072
        %v1081 = vsel %vm1065, %v1056, %v1073
        %v1082 = vsel %vm1066, %v972, %v1074
        %v1083 = vsel %vm1067, %v974, %v1075
        %v1084 = vsel %vm1068, %v1058, %v1076
        %v1085 = vsel %vm1069, %v1060, %v1077
        %1086 = vst [vmem:[%s346] sm:$0xff] %v1078
        %1087 = vst [vmem:[%s346 + $0x8] sm:$0xff] %v1079
        %1088 = vst [vmem:[%s346 + $0x10] sm:$0xff] %v1080
        %1089 = vst [vmem:[%s346 + $0x18] sm:$0xff] %v1081
        %1090 = vst [vmem:[%s346 + $0x20] sm:$0xf] %v1082
        %1091 = vst [vmem:[%s346 + $0x28] sm:$0xf] %v1083
        %1092 = vst [vmem:[%s346 + $0x30] sm:$0xf] %v1084
        %1093 = vst [vmem:[%s346 + $0x38] sm:$0xf] %v1085
        %s1094 = sand.u32 %s90, 1
        %s1095 = sand.u32 %s90, 1
        %s1096 = smul.addr %s1095, 64
        %s1097 = scalar_lea.vmem [#allocation3], %s1096
        // Predicated region
        $region56: #{generator_forward.32} parent=50 // pred_check
          %p1098 = pneg %p100
        $region57: #{generator_forward.32} parent=50 // pred_check_branch
          %1100 = sbr.rel (%p1098) target = $region59
        $region58: #{generator_forward.32} parent=50 // pred_region
          %s1101 = smul.u32 4, %s14
          %s1102 = smul.addr %s1101, 8
          %s1103 = scalar_lea.vmem %s3, %s1102
          // Predicated region
          $region60: #{generator_forward.32} parent=58 // pred_check
            _
          $region61: #{generator_forward.32} parent=58 // pred_check_branch
            %1105 = sbr.rel (0) target = $region63
          $region62: #{generator_forward.32} parent=58 // pred_region
            // Predicated region
            $region64: #{generator_forward.32} parent=62 // pred_check
              _
            $region65: #{generator_forward.32} parent=62 // pred_check_branch
              %1107 = sbr.rel (0) target = $region67
            $region66: #{generator_forward.32} parent=62 // pred_region
              loop: start=0, step=1, limit=1
              $region68: #{generator_forward.32} parent=66 // loop_pre_header
                _
              $region69: #{generator_forward.32} parent=66 // loop_header
                %s1109 = sphi 0, %s1113
                %p1110 = scmp.ge.s32.totalorder %s1109, 1
                %s1114 = sphi %s1097, %s1097
                %s1115 = sphi %s1103, %s1103
              $region70: #{generator_forward.32} parent=66 // loop_header_branch
                %1112 = sbr.rel (%p1110) target = $region74
              $region71: #{generator_forward.32} parent=66 // loop_body
                %v1116 = vld [vmem:[%s1114] sm:$0xff]
                %1117 = vst [vmem:[%s1115] sm:$0xff] %v1116
                %v1118 = vld [vmem:[%s1114 + $0x8] sm:$0xff]
                %1119 = vst [vmem:[%s1115 + $0x8] sm:$0xff] %v1118
                %v1120 = vld [vmem:[%s1114 + $0x10] sm:$0xff]
                %1121 = vst [vmem:[%s1115 + $0x10] sm:$0xff] %v1120
                %v1122 = vld [vmem:[%s1114 + $0x18] sm:$0xff]
                %1123 = vst [vmem:[%s1115 + $0x18] sm:$0xff] %v1122
                %v1124 = vld [vmem:[%s1114 + $0x20] sm:$0xff]
                %1125 = vst [vmem:[%s1115 + $0x400] sm:$0xff] %v1124
                %v1126 = vld [vmem:[%s1114 + $0x28] sm:$0xff]
                %1127 = vst [vmem:[%s1115 + $0x408] sm:$0xff] %v1126
                %v1128 = vld [vmem:[%s1114 + $0x30] sm:$0xff]
                %1129 = vst [vmem:[%s1115 + $0x410] sm:$0xff] %v1128
                %v1130 = vld [vmem:[%s1114 + $0x38] sm:$0xff]
                %1131 = vst [vmem:[%s1115 + $0x418] sm:$0xff] %v1130
              $region72: #{generator_forward.32} parent=66 // loop_footer
                %s1113 = sadd.s32 1, %s1109
              $region73: #{generator_forward.32} parent=66 // loop_footer_branch
                %1108 = sbr.rel target = $region69
              $region74: #{generator_forward.32} parent=66 // loop_exit
                _
            $region67: #{generator_forward.32} parent=62 // pred_fallthru
              _
            // Predicated region
            $region75: #{generator_forward.32} parent=62 // pred_check
              _
            $region76: #{generator_forward.32} parent=62 // pred_check_branch
              %1133 = sbr.rel target = $region78
            $region77: #{generator_forward.32} parent=62 // pred_region
              _
            $region78: #{generator_forward.32} parent=62 // pred_fallthru
              _
          $region63: #{generator_forward.32} parent=58 // pred_fallthru
            _
          %1134 = vnop
        $region59: #{generator_forward.32} parent=50 // pred_fallthru
          _
      $region51: #{generator_forward.32} parent=5 // pred_fallthru
        _
      %p1135 = scmp.le.s32.totalorder 2, %s9
      // Predicated region
      $region79: #{generator_forward.32} parent=5 // pred_check
        %p1136 = pneg %p1135
      $region80: #{generator_forward.32} parent=5 // pred_check_branch
        %1138 = sbr.rel (%p1136) target = $region82
      $region81: #{generator_forward.32} parent=5 // pred_region
        %s1139 = ssub.s32 %s9, 2
        // Predicated region
        $region83: #{generator_forward.32} parent=81 // pred_check
          %p1140 = pneg %p106
        $region84: #{generator_forward.32} parent=81 // pred_check_branch
          %1142 = sbr.rel (%p1140) target = $region86
        $region85: #{generator_forward.32} parent=81 // pred_region
          %s1143 = sand.u32 %s91, 1
          %s1144 = sand.u32 %s91, 1
          %s1145 = smul.addr %s1144, 64
          %s1146 = scalar_lea.vmem [#allocation3], %s1145
        $region86: #{generator_forward.32} parent=81 // pred_fallthru
          _
      $region82: #{generator_forward.32} parent=5 // pred_fallthru
        _
    $region6: #{generator_forward.32} parent=1 // loop_footer
      %s13 = sadd.s32 1, %s9
    $region7: #{generator_forward.32} parent=1 // loop_footer_branch
      %8 = sbr.rel target = $region3
    $region8: #{generator_forward.32} parent=1 // loop_exit
      _

// kernel: generator_forward.33
$region0: #{generator_forward.33}
  #allocation0 [shape = 'u32[]', space=smem, size = 0x4, offset = 0x4, fixed_abs, tag = 'smem constant byte address 0x4 - core index']
  #allocation1 [shape = 'u32[144,128]{1,0:T(1,128)}', space=vmem, size = 0x12000, scoped, tag = 'internal scratch']
  %s0 = inlined_call_operand.vmem [shape: bf16[3,324], index: 0, kind: input, shape index: {}]
  %s1 = inlined_call_operand.vmem [shape: bf16[324,16384], index: 1, kind: input, shape index: {}]
  %s2 = inlined_call_operand.vmem [shape: f32[3,1], index: 2, kind: input, shape index: {}]
  %s3 = inlined_call_operand.vmem [shape: f32[3,16384], index: 3, kind: output, shape index: {}]
  %s4 = sld [smem:[#allocation0]]
  $region68: #{generator_forward.33} parent=0
    _
  %s6 = ssub.s32 1, %s4
  %s7 = scalar_select 0, %s6, %s4
  $region1: #{generator_forward.33} parent=0
    #allocation2 [shape = 'u8[671744]{0}', space=vmem, size = 0xa4000, scoped, tag = 'input window, operand 1']
    loop: start=0, step=1, limit=34
    $region2: #{generator_forward.33} parent=1 // loop_pre_header
      _
    $region3: #{generator_forward.33} parent=1 // loop_header
      %s9 = sphi 0, %s13
      %p10 = scmp.ge.s32.totalorder %s9, 34
      %s17 = sphi 0, %s17
      %s19 = sphi 0, %s17
      %s20 = sphi 0, %s19
      %s34 = sphi 0, %s20
      %s40 = sphi 0, %s42
      %s43 = sphi 0, %s40
      %s44 = sphi 0, %s43
      %s60 = sphi 0, %s44
      %s64 = sphi 0, %s64
      %s66 = sphi 0, %s64
      %s67 = sphi 0, %s66
      %s81 = sphi 0, %s67
      %s87 = sphi 0, %s89
      %s90 = sphi 0, %s87
      %s91 = sphi 0, %s90
      %s107 = sphi 0, %s91
    $region4: #{generator_forward.33} parent=1 // loop_header_branch
      %12 = sbr.rel (%p10) target = $region8
    $region5: #{generator_forward.33} parent=1 // loop_body
      %s14 = ssub.s32 %s9, 1
      %s15 = ssub.s32 %s9, 2
      %s16 = sadd.s32 %s9, 1
      %s18 = sadd.s32 %s17, 1
      %p21 = scmp.eq.s32.totalorder %s9, 31
      %p22 = scmp.ne.s32.totalorder %s17, %s19
      %p23 = scmp.eq.s32.totalorder %s9, 0
      %p24 = por %p22, %p23
      %p25 = scmp.ne.s32.totalorder %s17, %s19
      %p26 = scmp.eq.s32.totalorder %s14, 31
      %p27 = por %p25, %p26
      %p28 = scmp.ne.s32.totalorder %s19, %s20
      %p29 = scmp.eq.s32.totalorder %s14, 0
      %p30 = por %p28, %p29
      %p31 = scmp.ne.s32.totalorder %s19, %s20
      %p32 = scmp.eq.s32.totalorder %s15, 31
      %p33 = por %p31, %p32
      %p35 = scmp.ne.s32.totalorder %s20, %s34
      %p36 = scmp.eq.s32.totalorder %s15, 0
      %p37 = por %p35, %p36
      %s38 = ssub.s32 %s9, %s16
      %p39 = scmp.eq.s32.totalorder %s38, 0
      %s41 = sadd.s32 %s40, 1
      %s42 = scalar_select %p39, %s40, %s41
      %p45 = pneg %p39
      %p46 = scmp.eq.s32.totalorder %s9, 31
      %p47 = por %p45, %p46
      %p48 = scmp.ne.s32.totalorder %s40, %s43
      %p49 = scmp.eq.s32.totalorder %s9, 0
      %p50 = por %p48, %p49
      %p51 = scmp.ne.s32.totalorder %s40, %s43
      %p52 = scmp.eq.s32.totalorder %s14, 31
      %p53 = por %p51, %p52
      %p54 = scmp.ne.s32.totalorder %s43, %s44
      %p55 = scmp.eq.s32.totalorder %s14, 0
      %p56 = por %p54, %p55
      %p57 = scmp.ne.s32.totalorder %s43, %s44
      %p58 = scmp.eq.s32.totalorder %s15, 31
      %p59 = por %p57, %p58
      %p61 = scmp.ne.s32.totalorder %s44, %s60
      %p62 = scmp.eq.s32.totalorder %s15, 0
      %p63 = por %p61, %p62
      %s65 = sadd.s32 %s64, 1
      %p68 = scmp.eq.s32.totalorder %s9, 31
      %p69 = scmp.ne.s32.totalorder %s64, %s66
      %p70 = scmp.eq.s32.totalorder %s9, 0
      %p71 = por %p69, %p70
      %p72 = scmp.ne.s32.totalorder %s64, %s66
      %p73 = scmp.eq.s32.totalorder %s14, 31
      %p74 = por %p72, %p73
      %p75 = scmp.ne.s32.totalorder %s66, %s67
      %p76 = scmp.eq.s32.totalorder %s14, 0
      %p77 = por %p75, %p76
      %p78 = scmp.ne.s32.totalorder %s66, %s67
      %p79 = scmp.eq.s32.totalorder %s15, 31
      %p80 = por %p78, %p79
      %p82 = scmp.ne.s32.totalorder %s67, %s81
      %p83 = scmp.eq.s32.totalorder %s15, 0
      %p84 = por %p82, %p83
      %s85 = ssub.s32 %s9, %s16
      %p86 = scmp.eq.s32.totalorder %s85, 0
      %s88 = sadd.s32 %s87, 1
      %s89 = scalar_select %p86, %s87, %s88
      %p92 = pneg %p86
      %p93 = scmp.eq.s32.totalorder %s9, 31
      %p94 = por %p92, %p93
      %p95 = scmp.ne.s32.totalorder %s87, %s90
      %p96 = scmp.eq.s32.totalorder %s9, 0
      %p97 = por %p95, %p96
      %p98 = scmp.ne.s32.totalorder %s87, %s90
      %p99 = scmp.eq.s32.totalorder %s14, 31
      %p100 = por %p98, %p99
      %p101 = scmp.ne.s32.totalorder %s90, %s91
      %p102 = scmp.eq.s32.totalorder %s14, 0
      %p103 = por %p101, %p102
      %p104 = scmp.ne.s32.totalorder %s90, %s91
      %p105 = scmp.eq.s32.totalorder %s15, 31
      %p106 = por %p104, %p105
      %p108 = scmp.ne.s32.totalorder %s91, %s107
      %p109 = scmp.eq.s32.totalorder %s15, 0
      %p110 = por %p108, %p109
      %p111 = scmp.le.s32.totalorder 1, %s9
      %p112 = scmp.lt.s32.totalorder %s9, 33
      %p113 = pnand %p111, %p112
      %p114 = pneg %p113
      // Predicated region
      $region9: #{generator_forward.33} parent=5 // pred_check
        _
      $region10: #{generator_forward.33} parent=5 // pred_check_branch
        %116 = sbr.rel (%p113) target = $region12
      $region11: #{generator_forward.33} parent=5 // pred_region
        %s117 = ssub.s32 %s9, 1
        // Predicated region
        $region13: #{generator_forward.33} parent=11 // pred_check
          %p118 = pneg %p30
        $region14: #{generator_forward.33} parent=11 // pred_check_branch
          %120 = sbr.rel (%p118) target = $region16
        $region15: #{generator_forward.33} parent=11 // pred_region
          _
        $region16: #{generator_forward.33} parent=11 // pred_fallthru
          _
        // Predicated region
        $region17: #{generator_forward.33} parent=11 // pred_check
          %p121 = pneg %p77
        $region18: #{generator_forward.33} parent=11 // pred_check_branch
          %123 = sbr.rel (%p121) target = $region20
        $region19: #{generator_forward.33} parent=11 // pred_region
          _
        $region20: #{generator_forward.33} parent=11 // pred_fallthru
          _
      $region12: #{generator_forward.33} parent=5 // pred_fallthru
        _
      %p124 = scmp.lt.s32.totalorder %s9, 32
      // Predicated region
      $region21: #{generator_forward.33} parent=5 // pred_check
        %p125 = pneg %p124
      $region22: #{generator_forward.33} parent=5 // pred_check_branch
        %127 = sbr.rel (%p125) target = $region24
      $region23: #{generator_forward.33} parent=5 // pred_region
        // Predicated region
        $region25: #{generator_forward.33} parent=23 // pred_check
          %p128 = pneg %p50
        $region26: #{generator_forward.33} parent=23 // pred_check_branch
          %130 = sbr.rel (%p128) target = $region28
        $region27: #{generator_forward.33} parent=23 // pred_region
          %s131 = sand.u32 %s40, 1
          %s132 = sand.u32 %s40, 1
          %s133 = smul.addr %s132, 656
          %s134 = scalar_lea.vmem [#allocation2], %s133
          %s135 = smul.u32 4, %s9
          %s136 = smul.addr %s135, 4
          %s137 = scalar_lea.vmem %s1, %s136
          // Predicated region
          $region29: #{generator_forward.33} parent=27 // pred_check
            _
          $region30: #{generator_forward.33} parent=27 // pred_check_branch
            %139 = sbr.rel (0) target = $region32
          $region31: #{generator_forward.33} parent=27 // pred_region
            // Predicated region
            $region33: #{generator_forward.33} parent=31 // pred_check
              _
            $region34: #{generator_forward.33} parent=31 // pred_check_branch
              %141 = sbr.rel (0) target = $region36
            $region35: #{generator_forward.33} parent=31 // pred_region
              loop: start=0, step=1, limit=1
              $region37: #{generator_forward.33} parent=35 // loop_pre_header
                _
              $region38: #{generator_forward.33} parent=35 // loop_header
                %s143 = sphi 0, %s147
                %p144 = scmp.ge.s32.totalorder %s143, 1
                %s148 = sphi %s137, %s137
                %s149 = sphi %s134, %s134
              $region39: #{generator_forward.33} parent=35 // loop_header_branch
                %146 = sbr.rel (%p144) target = $region43
              $region40: #{generator_forward.33} parent=35 // loop_body
                %v150 = vld [vmem:[%s148] sm:$0xff]
                %151 = vst [vmem:[%s149] sm:$0xff] %v150
                %v152 = vld [vmem:[%s148 + $0x8] sm:$0xff]
                %153 = vst [vmem:[%s149 + $0x8] sm:$0xff] %v152
                %v154 = vld [vmem:[%s148 + $0x200] sm:$0xff]
                %155 = vst [vmem:[%s149 + $0x10] sm:$0xff] %v154
                %v156 = vld [vmem:[%s148 + $0x208] sm:$0xff]
                %157 = vst [vmem:[%s149 + $0x18] sm:$0xff] %v156
                %v158 = vld [vmem:[%s148 + $0x400] sm:$0xff]
                %159 = vst [vmem:[%s149 + $0x20] sm:$0xff] %v158
                %v160 = vld [vmem:[%s148 + $0x408] sm:$0xff]
                %161 = vst [vmem:[%s149 + $0x28] sm:$0xff] %v160
                %v162 = vld [vmem:[%s148 + $0x600] sm:$0xff]
                %163 = vst [vmem:[%s149 + $0x30] sm:$0xff] %v162
                %v164 = vld [vmem:[%s148 + $0x608] sm:$0xff]
                %165 = vst [vmem:[%s149 + $0x38] sm:$0xff] %v164
                %v166 = vld [vmem:[%s148 + $0x800] sm:$0xff]
                %167 = vst [vmem:[%s149 + $0x40] sm:$0xff] %v166
                %v168 = vld [vmem:[%s148 + $0x808] sm:$0xff]
                %169 = vst [vmem:[%s149 + $0x48] sm:$0xff] %v168
                %v170 = vld [vmem:[%s148 + $0xa00] sm:$0xff]
                %171 = vst [vmem:[%s149 + $0x50] sm:$0xff] %v170
                %v172 = vld [vmem:[%s148 + $0xa08] sm:$0xff]
                %173 = vst [vmem:[%s149 + $0x58] sm:$0xff] %v172
                %v174 = vld [vmem:[%s148 + $0xc00] sm:$0xff]
                %175 = vst [vmem:[%s149 + $0x60] sm:$0xff] %v174
                %v176 = vld [vmem:[%s148 + $0xc08] sm:$0xff]
                %177 = vst [vmem:[%s149 + $0x68] sm:$0xff] %v176
                %v178 = vld [vmem:[%s148 + $0xe00] sm:$0xff]
                %179 = vst [vmem:[%s149 + $0x70] sm:$0xff] %v178
                %v180 = vld [vmem:[%s148 + $0xe08] sm:$0xff]
                %181 = vst [vmem:[%s149 + $0x78] sm:$0xff] %v180
                %v182 = vld [vmem:[%s148 + $0x1000] sm:$0xff]
                %183 = vst [vmem:[%s149 + $0x80] sm:$0xff] %v182
                %v184 = vld [vmem:[%s148 + $0x1008] sm:$0xff]
                %185 = vst [vmem:[%s149 + $0x88] sm:$0xff] %v184
                %v186 = vld [vmem:[%s148 + $0x1200] sm:$0xff]
                %187 = vst [vmem:[%s149 + $0x90] sm:$0xff] %v186
                %v188 = vld [vmem:[%s148 + $0x1208] sm:$0xff]
                %189 = vst [vmem:[%s149 + $0x98] sm:$0xff] %v188
                %v190 = vld [vmem:[%s148 + $0x1400] sm:$0xff]
                %191 = vst [vmem:[%s149 + $0xa0] sm:$0xff] %v190
                %v192 = vld [vmem:[%s148 + $0x1408] sm:$0xff]
                %193 = vst [vmem:[%s149 + $0xa8] sm:$0xff] %v192
                %v194 = vld [vmem:[%s148 + $0x1600] sm:$0xff]
                %195 = vst [vmem:[%s149 + $0xb0] sm:$0xff] %v194
                %v196 = vld [vmem:[%s148 + $0x1608] sm:$0xff]
                %197 = vst [vmem:[%s149 + $0xb8] sm:$0xff] %v196
                %v198 = vld [vmem:[%s148 + $0x1800] sm:$0xff]
                %199 = vst [vmem:[%s149 + $0xc0] sm:$0xff] %v198
                %v200 = vld [vmem:[%s148 + $0x1808] sm:$0xff]
                %201 = vst [vmem:[%s149 + $0xc8] sm:$0xff] %v200
                %v202 = vld [vmem:[%s148 + $0x1a00] sm:$0xff]
                %203 = vst [vmem:[%s149 + $0xd0] sm:$0xff] %v202
                %v204 = vld [vmem:[%s148 + $0x1a08] sm:$0xff]
                %205 = vst [vmem:[%s149 + $0xd8] sm:$0xff] %v204
                %v206 = vld [vmem:[%s148 + $0x1c00] sm:$0xff]
                %207 = vst [vmem:[%s149 + $0xe0] sm:$0xff] %v206
                %v208 = vld [vmem:[%s148 + $0x1c08] sm:$0xff]
                %209 = vst [vmem:[%s149 + $0xe8] sm:$0xff] %v208
                %v210 = vld [vmem:[%s148 + $0x1e00] sm:$0xff]
                %211 = vst [vmem:[%s149 + $0xf0] sm:$0xff] %v210
                %v212 = vld [vmem:[%s148 + $0x1e08] sm:$0xff]
                %213 = vst [vmem:[%s149 + $0xf8] sm:$0xff] %v212
                %v214 = vld [vmem:[%s148 + $0x2000] sm:$0xff]
                %215 = vst [vmem:[%s149 + $0x100] sm:$0xff] %v214
                %v216 = vld [vmem:[%s148 + $0x2008] sm:$0xff]
                %217 = vst [vmem:[%s149 + $0x108] sm:$0xff] %v216
                %v218 = vld [vmem:[%s148 + $0x2200] sm:$0xff]
                %219 = vst [vmem:[%s149 + $0x110] sm:$0xff] %v218
                %v220 = vld [vmem:[%s148 + $0x2208] sm:$0xff]
                %221 = vst [vmem:[%s149 + $0x118] sm:$0xff] %v220
                %v222 = vld [vmem:[%s148 + $0x2400] sm:$0xff]
                %223 = vst [vmem:[%s149 + $0x120] sm:$0xff] %v222
                %v224 = vld [vmem:[%s148 + $0x2408] sm:$0xff]
                %225 = vst [vmem:[%s149 + $0x128] sm:$0xff] %v224
                %v226 = vld [vmem:[%s148 + $0x2600] sm:$0xff]
                %227 = vst [vmem:[%s149 + $0x130] sm:$0xff] %v226
                %v228 = vld [vmem:[%s148 + $0x2608] sm:$0xff]
                %229 = vst [vmem:[%s149 + $0x138] sm:$0xff] %v228
                %v230 = vld [vmem:[%s148 + $0x2800] sm:$0xff]
                %231 = vst [vmem:[%s149 + $0x140] sm:$0xff] %v230
                %v232 = vld [vmem:[%s148 + $0x2808] sm:$0xff]
                %233 = vst [vmem:[%s149 + $0x148] sm:$0xff] %v232
                %v234 = vld [vmem:[%s148 + $0x2a00] sm:$0xff]
                %235 = vst [vmem:[%s149 + $0x150] sm:$0xff] %v234
                %v236 = vld [vmem:[%s148 + $0x2a08] sm:$0xff]
                %237 = vst [vmem:[%s149 + $0x158] sm:$0xff] %v236
                %v238 = vld [vmem:[%s148 + $0x2c00] sm:$0xff]
                %239 = vst [vmem:[%s149 + $0x160] sm:$0xff] %v238
                %v240 = vld [vmem:[%s148 + $0x2c08] sm:$0xff]
                %241 = vst [vmem:[%s149 + $0x168] sm:$0xff] %v240
                %v242 = vld [vmem:[%s148 + $0x2e00] sm:$0xff]
                %243 = vst [vmem:[%s149 + $0x170] sm:$0xff] %v242
                %v244 = vld [vmem:[%s148 + $0x2e08] sm:$0xff]
                %245 = vst [vmem:[%s149 + $0x178] sm:$0xff] %v244
                %v246 = vld [vmem:[%s148 + $0x3000] sm:$0xff]
                %247 = vst [vmem:[%s149 + $0x180] sm:$0xff] %v246
                %v248 = vld [vmem:[%s148 + $0x3008] sm:$0xff]
                %249 = vst [vmem:[%s149 + $0x188] sm:$0xff] %v248
                %v250 = vld [vmem:[%s148 + $0x3200] sm:$0xff]
                %251 = vst [vmem:[%s149 + $0x190] sm:$0xff] %v250
                %v252 = vld [vmem:[%s148 + $0x3208] sm:$0xff]
                %253 = vst [vmem:[%s149 + $0x198] sm:$0xff] %v252
                %v254 = vld [vmem:[%s148 + $0x3400] sm:$0xff]
                %255 = vst [vmem:[%s149 + $0x1a0] sm:$0xff] %v254
                %v256 = vld [vmem:[%s148 + $0x3408] sm:$0xff]
                %257 = vst [vmem:[%s149 + $0x1a8] sm:$0xff] %v256
                %v258 = vld [vmem:[%s148 + $0x3600] sm:$0xff]
                %259 = vst [vmem:[%s149 + $0x1b0] sm:$0xff] %v258
                %v260 = vld [vmem:[%s148 + $0x3608] sm:$0xff]
                %261 = vst [vmem:[%s149 + $0x1b8] sm:$0xff] %v260
                %v262 = vld [vmem:[%s148 + $0x3800] sm:$0xff]
                %263 = vst [vmem:[%s149 + $0x1c0] sm:$0xff] %v262
                %v264 = vld [vmem:[%s148 + $0x3808] sm:$0xff]
                %265 = vst [vmem:[%s149 + $0x1c8] sm:$0xff] %v264
                %v266 = vld [vmem:[%s148 + $0x3a00] sm:$0xff]
                %267 = vst [vmem:[%s149 + $0x1d0] sm:$0xff] %v266
                %v268 = vld [vmem:[%s148 + $0x3a08] sm:$0xff]
                %269 = vst [vmem:[%s149 + $0x1d8] sm:$0xff] %v268
                %v270 = vld [vmem:[%s148 + $0x3c00] sm:$0xff]
                %271 = vst [vmem:[%s149 + $0x1e0] sm:$0xff] %v270
                %v272 = vld [vmem:[%s148 + $0x3c08] sm:$0xff]
                %273 = vst [vmem:[%s149 + $0x1e8] sm:$0xff] %v272
                %v274 = vld [vmem:[%s148 + $0x3e00] sm:$0xff]
                %275 = vst [vmem:[%s149 + $0x1f0] sm:$0xff] %v274
                %v276 = vld [vmem:[%s148 + $0x3e08] sm:$0xff]
                %277 = vst [vmem:[%s149 + $0x1f8] sm:$0xff] %v276
                %v278 = vld [vmem:[%s148 + $0x4000] sm:$0xff]
                %279 = vst [vmem:[%s149 + $0x200] sm:$0xff] %v278
                %v280 = vld [vmem:[%s148 + $0x4008] sm:$0xff]
                %281 = vst [vmem:[%s149 + $0x208] sm:$0xff] %v280
                %v282 = vld [vmem:[%s148 + $0x4200] sm:$0xff]
                %283 = vst [vmem:[%s149 + $0x210] sm:$0xff] %v282
                %v284 = vld [vmem:[%s148 + $0x4208] sm:$0xff]
                %285 = vst [vmem:[%s149 + $0x218] sm:$0xff] %v284
                %v286 = vld [vmem:[%s148 + $0x4400] sm:$0xff]
                %287 = vst [vmem:[%s149 + $0x220] sm:$0xff] %v286
                %v288 = vld [vmem:[%s148 + $0x4408] sm:$0xff]
                %289 = vst [vmem:[%s149 + $0x228] sm:$0xff] %v288
                %v290 = vld [vmem:[%s148 + $0x4600] sm:$0xff]
                %291 = vst [vmem:[%s149 + $0x230] sm:$0xff] %v290
                %v292 = vld [vmem:[%s148 + $0x4608] sm:$0xff]
                %293 = vst [vmem:[%s149 + $0x238] sm:$0xff] %v292
                %v294 = vld [vmem:[%s148 + $0x4800] sm:$0xff]
                %295 = vst [vmem:[%s149 + $0x240] sm:$0xff] %v294
                %v296 = vld [vmem:[%s148 + $0x4808] sm:$0xff]
                %297 = vst [vmem:[%s149 + $0x248] sm:$0xff] %v296
                %v298 = vld [vmem:[%s148 + $0x4a00] sm:$0xff]
                %299 = vst [vmem:[%s149 + $0x250] sm:$0xff] %v298
                %v300 = vld [vmem:[%s148 + $0x4a08] sm:$0xff]
                %301 = vst [vmem:[%s149 + $0x258] sm:$0xff] %v300
                %v302 = vld [vmem:[%s148 + $0x4c00] sm:$0xff]
                %303 = vst [vmem:[%s149 + $0x260] sm:$0xff] %v302
                %v304 = vld [vmem:[%s148 + $0x4c08] sm:$0xff]
                %305 = vst [vmem:[%s149 + $0x268] sm:$0xff] %v304
                %v306 = vld [vmem:[%s148 + $0x4e00] sm:$0xff]
                %307 = vst [vmem:[%s149 + $0x270] sm:$0xff] %v306
                %v308 = vld [vmem:[%s148 + $0x4e08] sm:$0xff]
                %309 = vst [vmem:[%s149 + $0x278] sm:$0xff] %v308
                %v310 = vld [vmem:[%s148 + $0x5000] sm:$0xff]
                %311 = vst [vmem:[%s149 + $0x280] sm:$0xff] %v310
                %v312 = vld [vmem:[%s148 + $0x5008] sm:$0xff]
                %313 = vst [vmem:[%s149 + $0x288] sm:$0xff] %v312
              $region41: #{generator_forward.33} parent=35 // loop_footer
                %s147 = sadd.s32 1, %s143
              $region42: #{generator_forward.33} parent=35 // loop_footer_branch
                %142 = sbr.rel target = $region38
              $region43: #{generator_forward.33} parent=35 // loop_exit
                _
            $region36: #{generator_forward.33} parent=31 // pred_fallthru
              _
            // Predicated region
            $region44: #{generator_forward.33} parent=31 // pred_check
              _
            $region45: #{generator_forward.33} parent=31 // pred_check_branch
              %315 = sbr.rel target = $region47
            $region46: #{generator_forward.33} parent=31 // pred_region
              _
            $region47: #{generator_forward.33} parent=31 // pred_fallthru
              _
          $region32: #{generator_forward.33} parent=27 // pred_fallthru
            _
          %316 = vnop
        $region28: #{generator_forward.33} parent=23 // pred_fallthru
          _
      $region24: #{generator_forward.33} parent=5 // pred_fallthru
        _
      %p317 = scmp.le.s32.totalorder 1, %s9
      %p318 = scmp.lt.s32.totalorder %s9, 33
      %p319 = pnand %p317, %p318
      %p320 = pneg %p319
      // Predicated region
      $region48: #{generator_forward.33} parent=5 // pred_check
        _
      $region49: #{generator_forward.33} parent=5 // pred_check_branch
        %322 = sbr.rel (%p319) target = $region51
      $region50: #{generator_forward.33} parent=5 // pred_region
        %s323 = ssub.s32 %s9, 1
        %s324 = sand.u32 %s43, 1
        %s325 = sand.u32 %s43, 1
        %s326 = smul.addr %s325, 656
        %s327 = scalar_lea.vmem [#allocation2], %s326
        // Predicated region
        $region52: #{generator_forward.33} parent=50 // pred_check
          %p328 = pneg %p56
        $region53: #{generator_forward.33} parent=50 // pred_check_branch
          %330 = sbr.rel (%p328) target = $region55
        $region54: #{generator_forward.33} parent=50 // pred_region
          _
        $region55: #{generator_forward.33} parent=50 // pred_fallthru
          _
        %p331 = pneg %p30
        %p332 = pneg %p27
        %s333 = sand.u32 %s43, 1
        %s334 = sand.u32 %s43, 1
        %s335 = smul.addr %s334, 656
        %s336 = scalar_lea.vmem [#allocation2], %s335
        %p337 = pneg %p56
        %p338 = pneg %p53
        %p339 = pneg %p77
        %p340 = pneg %p74
        %p341 = pneg %p103
        %p342 = pneg %p100
        %s343 = smul.u32 4, %s14
        %p344 = scmp.lt.s32.totalorder %s343, 127
        %s345 = scalar_select %p344, %s343, 127
        %s346 = smul.addr %s345, 4
        %s347 = scalar_lea.vmem %s3, %s346
        %s348 = smul.u32 4, %s14
        %s349 = smul.u32 4, %s14
        %p350 = scmp.lt.s32.totalorder %s349, 127
        %s351 = scalar_select %p350, %s349, 127
        %s352 = smul.addr %s351, 4
        %s353 = scalar_lea.vmem %s3, %s352
        %s354 = smul.u32 4, %s14
        %v356 = vld [vmem:[%s0] sm:$0x3f]
        %v357 = vld [vmem:[%s327] sm:$0xff]
        %v358 = vld [vmem:[%s327 + $0x8] sm:$0xff]
        %v359 = vld [vmem:[%s327 + $0x10] sm:$0xff]
        %v360 = vld [vmem:[%s327 + $0x18] sm:$0xff]
        %v361 = vld [vmem:[%s327 + $0x20] sm:$0xff]
        %v362 = vld [vmem:[%s327 + $0x28] sm:$0xff]
        %v363 = vld [vmem:[%s327 + $0x30] sm:$0xff]
        %v364 = vld [vmem:[%s327 + $0x38] sm:$0xff]
        %v365 = vld [vmem:[%s327 + $0x40] sm:$0xff]
        %v366 = vld [vmem:[%s327 + $0x48] sm:$0xff]
        %v367 = vld [vmem:[%s327 + $0x50] sm:$0xff]
        %v368 = vld [vmem:[%s327 + $0x58] sm:$0xff]
        %v369 = vld [vmem:[%s327 + $0x60] sm:$0xff]
        %v370 = vld [vmem:[%s327 + $0x68] sm:$0xff]
        %v371 = vld [vmem:[%s327 + $0x70] sm:$0xff]
        %v372 = vld [vmem:[%s327 + $0x78] sm:$0xff]
        %v373 = vld [vmem:[%s327 + $0x80] sm:$0xff]
        %v374 = vld [vmem:[%s327 + $0x88] sm:$0xff]
        %v375 = vld [vmem:[%s327 + $0x90] sm:$0xff]
        %v376 = vld [vmem:[%s327 + $0x98] sm:$0xff]
        %v377 = vld [vmem:[%s327 + $0xa0] sm:$0xff]
        %v378 = vld [vmem:[%s327 + $0xa8] sm:$0xff]
        %v379 = vld [vmem:[%s327 + $0xb0] sm:$0xff]
        %v380 = vld [vmem:[%s327 + $0xb8] sm:$0xff]
        %v381 = vld [vmem:[%s327 + $0xc0] sm:$0xff]
        %v382 = vld [vmem:[%s327 + $0xc8] sm:$0xff]
        %v383 = vld [vmem:[%s327 + $0xd0] sm:$0xff]
        %v384 = vld [vmem:[%s327 + $0xd8] sm:$0xff]
        %v385 = vld [vmem:[%s327 + $0xe0] sm:$0xff]
        %v386 = vld [vmem:[%s327 + $0xe8] sm:$0xff]
        %v387 = vld [vmem:[%s327 + $0xf0] sm:$0xff]
        %v388 = vld [vmem:[%s327 + $0xf8] sm:$0xff]
        %v389 = vld [vmem:[%s327 + $0x100] sm:$0xff]
        %v390 = vld [vmem:[%s327 + $0x108] sm:$0xff]
        %v391 = vld [vmem:[%s327 + $0x110] sm:$0xff]
        %v392 = vld [vmem:[%s327 + $0x118] sm:$0xff]
        %v393 = vld [vmem:[%s327 + $0x120] sm:$0xff]
        %v394 = vld [vmem:[%s327 + $0x128] sm:$0xff]
        %v395 = vld [vmem:[%s327 + $0x130] sm:$0xff]
        %v396 = vld [vmem:[%s327 + $0x138] sm:$0xff]
        %v397 = vld [vmem:[%s327 + $0x140] sm:$0xff]
        %v398 = vld [vmem:[%s327 + $0x148] sm:$0xff]
        %v399 = vld [vmem:[%s327 + $0x150] sm:$0xff]
        %v400 = vld [vmem:[%s327 + $0x158] sm:$0xff]
        %v401 = vld [vmem:[%s327 + $0x160] sm:$0xff]
        %v402 = vld [vmem:[%s327 + $0x168] sm:$0xff]
        %v403 = vld [vmem:[%s327 + $0x170] sm:$0xff]
        %v404 = vld [vmem:[%s327 + $0x178] sm:$0xff]
        %v405 = vld [vmem:[%s327 + $0x180] sm:$0xff]
        %v406 = vld [vmem:[%s327 + $0x188] sm:$0xff]
        %v407 = vld [vmem:[%s327 + $0x190] sm:$0xff]
        %v408 = vld [vmem:[%s327 + $0x198] sm:$0xff]
        %v409 = vld [vmem:[%s327 + $0x1a0] sm:$0xff]
        %v410 = vld [vmem:[%s327 + $0x1a8] sm:$0xff]
        %v411 = vld [vmem:[%s327 + $0x1b0] sm:$0xff]
        %v412 = vld [vmem:[%s327 + $0x1b8] sm:$0xff]
        %v413 = vld [vmem:[%s327 + $0x1c0] sm:$0xff]
        %v414 = vld [vmem:[%s327 + $0x1c8] sm:$0xff]
        %v415 = vld [vmem:[%s327 + $0x1d0] sm:$0xff]
        %v416 = vld [vmem:[%s327 + $0x1d8] sm:$0xff]
        %v417 = vld [vmem:[%s327 + $0x1e0] sm:$0xff]
        %v418 = vld [vmem:[%s327 + $0x1e8] sm:$0xff]
        %v419 = vld [vmem:[%s327 + $0x1f0] sm:$0xff]
        %v420 = vld [vmem:[%s327 + $0x1f8] sm:$0xff]
        %v421 = vld [vmem:[%s327 + $0x200] sm:$0xff]
        %v422 = vld [vmem:[%s327 + $0x208] sm:$0xff]
        %v423 = vld [vmem:[%s327 + $0x210] sm:$0xff]
        %v424 = vld [vmem:[%s327 + $0x218] sm:$0xff]
        %v425 = vld [vmem:[%s327 + $0x220] sm:$0xff]
        %v426 = vld [vmem:[%s327 + $0x228] sm:$0xff]
        %v427 = vld [vmem:[%s327 + $0x230] sm:$0xff]
        %v428 = vld [vmem:[%s327 + $0x238] sm:$0xff]
        %v429 = vld [vmem:[%s327 + $0x240] sm:$0xff]
        %v430 = vld [vmem:[%s327 + $0x248] sm:$0xff]
        %v431 = vld [vmem:[%s327 + $0x250] sm:$0xff]
        %v432 = vld [vmem:[%s327 + $0x258] sm:$0xff]
        %v433 = vld [vmem:[%s327 + $0x260] sm:$0xff]
        %v434 = vld [vmem:[%s327 + $0x268] sm:$0xff]
        %v435 = vld [vmem:[%s327 + $0x270] sm:$0xff]
        %v436 = vld [vmem:[%s327 + $0x278] sm:$0xff]
        %v437 = vld [vmem:[%s327 + $0x280] sm:$0x33]
        %v438 = vld [vmem:[%s327 + $0x288] sm:$0x33]
        %v439 = vld [vmem:[%s2] sm:$0x7]
        %441 = vset.pattern.permute.xlu0 0
        %442 = vperm.xlu0 %441, %v439
        %v443 = vpop.permute.xlu0 %442
        %v446 = vcombine.high %v356, %v356
        %v448 = vunpack.c.l.s4 1983009808
        %v449 = vunpack.c.0.s8 %v448
        %v450 = vlaneseq
        %v451 = vshrl.u32 %v450, 7
        %v452 = vsub.s32 %v449, %v451
        %v453 = vrot.slane %v356, %v452
        %v455 = vunpack.c.l.s4 1983009808
        %v456 = vunpack.c.0.s8 %v455
        %v457 = vlaneseq
        %v458 = vshrl.u32 %v457, 7
        %v459 = vsub.s32 %v456, %v458
        %v460 = vrot.slane %v446, %v459
        %v461 = vcombine.high %v453, %v453
        %v546 = vunpack.c.l.b16 %v357
        %v547 = vunpack.c.h.b16 %v357
        %v548 = vunpack.c.l.b16 %v358
        %v549 = vunpack.c.h.b16 %v358
        %v550 = vunpack.c.l.b16 %v359
        %v551 = vunpack.c.h.b16 %v359
        %v552 = vunpack.c.l.b16 %v360
        %v553 = vunpack.c.h.b16 %v360
        %v554 = vunpack.c.l.b16 %v361
        %v555 = vunpack.c.h.b16 %v361
        %v556 = vunpack.c.l.b16 %v362
        %v557 = vunpack.c.h.b16 %v362
        %v558 = vunpack.c.l.b16 %v363
        %v559 = vunpack.c.h.b16 %v363
        %v560 = vunpack.c.l.b16 %v364
        %v561 = vunpack.c.h.b16 %v364
        %v562 = vunpack.c.l.b16 %v365
        %v563 = vunpack.c.h.b16 %v365
        %v564 = vunpack.c.l.b16 %v366
        %v565 = vunpack.c.h.b16 %v366
        %v566 = vunpack.c.l.b16 %v367
        %v567 = vunpack.c.h.b16 %v367
        %v568 = vunpack.c.l.b16 %v368
        %v569 = vunpack.c.h.b16 %v368
        %v570 = vunpack.c.l.b16 %v369
        %v571 = vunpack.c.h.b16 %v369
        %v572 = vunpack.c.l.b16 %v370
        %v573 = vunpack.c.h.b16 %v370
        %v574 = vunpack.c.l.b16 %v371
        %v575 = vunpack.c.h.b16 %v371
        %v576 = vunpack.c.l.b16 %v372
        %v577 = vunpack.c.h.b16 %v372
        %v578 = vunpack.c.l.b16 %v373
        %v579 = vunpack.c.h.b16 %v373
        %v580 = vunpack.c.l.b16 %v374
        %v581 = vunpack.c.h.b16 %v374
        %v582 = vunpack.c.l.b16 %v375
        %v583 = vunpack.c.h.b16 %v375
        %v584 = vunpack.c.l.b16 %v376
        %v585 = vunpack.c.h.b16 %v376
        %v586 = vunpack.c.l.b16 %v377
        %v587 = vunpack.c.h.b16 %v377
        %v588 = vunpack.c.l.b16 %v378
        %v589 = vunpack.c.h.b16 %v378
        %v590 = vunpack.c.l.b16 %v379
        %v591 = vunpack.c.h.b16 %v379
        %v592 = vunpack.c.l.b16 %v380
        %v593 = vunpack.c.h.b16 %v380
        %v594 = vunpack.c.l.b16 %v381
        %v595 = vunpack.c.h.b16 %v381
        %v596 = vunpack.c.l.b16 %v382
        %v597 = vunpack.c.h.b16 %v382
        %v598 = vunpack.c.l.b16 %v383
        %v599 = vunpack.c.h.b16 %v383
        %v600 = vunpack.c.l.b16 %v384
        %v601 = vunpack.c.h.b16 %v384
        %v602 = vunpack.c.l.b16 %v385
        %v603 = vunpack.c.h.b16 %v385
        %v604 = vunpack.c.l.b16 %v386
        %v605 = vunpack.c.h.b16 %v386
        %v606 = vunpack.c.l.b16 %v387
        %v607 = vunpack.c.h.b16 %v387
        %v608 = vunpack.c.l.b16 %v388
        %v609 = vunpack.c.h.b16 %v388
        %v610 = vunpack.c.l.b16 %v389
        %v611 = vunpack.c.h.b16 %v389
        %v612 = vunpack.c.l.b16 %v390
        %v613 = vunpack.c.h.b16 %v390
        %v614 = vunpack.c.l.b16 %v391
        %v615 = vunpack.c.h.b16 %v391
        %v616 = vunpack.c.l.b16 %v392
        %v617 = vunpack.c.h.b16 %v392
        %v618 = vunpack.c.l.b16 %v393
        %v619 = vunpack.c.h.b16 %v393
        %v620 = vunpack.c.l.b16 %v394
        %v621 = vunpack.c.h.b16 %v394
        %v622 = vunpack.c.l.b16 %v395
        %v623 = vunpack.c.h.b16 %v395
        %v624 = vunpack.c.l.b16 %v396
        %v625 = vunpack.c.h.b16 %v396
        %v626 = vunpack.c.l.b16 %v397
        %v627 = vunpack.c.h.b16 %v397
        %v628 = vunpack.c.l.b16 %v398
        %v629 = vunpack.c.h.b16 %v398
        %v630 = vunpack.c.l.b16 %v399
        %v631 = vunpack.c.h.b16 %v399
        %v632 = vunpack.c.l.b16 %v400
        %v633 = vunpack.c.h.b16 %v400
        %v634 = vunpack.c.l.b16 %v401
        %v635 = vunpack.c.h.b16 %v401
        %v636 = vunpack.c.l.b16 %v402
        %v637 = vunpack.c.h.b16 %v402
        %v638 = vunpack.c.l.b16 %v403
        %v639 = vunpack.c.h.b16 %v403
        %v640 = vunpack.c.l.b16 %v404
        %v641 = vunpack.c.h.b16 %v404
        %v642 = vunpack.c.l.b16 %v405
        %v643 = vunpack.c.h.b16 %v405
        %v644 = vunpack.c.l.b16 %v406
        %v645 = vunpack.c.h.b16 %v406
        %v646 = vunpack.c.l.b16 %v407
        %v647 = vunpack.c.h.b16 %v407
        %v648 = vunpack.c.l.b16 %v408
        %v649 = vunpack.c.h.b16 %v408
        %v650 = vunpack.c.l.b16 %v409
        %v651 = vunpack.c.h.b16 %v409
        %v652 = vunpack.c.l.b16 %v410
        %v653 = vunpack.c.h.b16 %v410
        %v654 = vunpack.c.l.b16 %v411
        %v655 = vunpack.c.h.b16 %v411
        %v656 = vunpack.c.l.b16 %v412
        %v657 = vunpack.c.h.b16 %v412
        %v658 = vunpack.c.l.b16 %v413
        %v659 = vunpack.c.h.b16 %v413
        %v660 = vunpack.c.l.b16 %v414
        %v661 = vunpack.c.h.b16 %v414
        %v662 = vunpack.c.l.b16 %v415
        %v663 = vunpack.c.h.b16 %v415
        %v664 = vunpack.c.l.b16 %v416
        %v665 = vunpack.c.h.b16 %v416
        %v666 = vunpack.c.l.b16 %v417
        %v667 = vunpack.c.h.b16 %v417
        %v668 = vunpack.c.l.b16 %v418
        %v669 = vunpack.c.h.b16 %v418
        %v670 = vunpack.c.l.b16 %v419
        %v671 = vunpack.c.h.b16 %v419
        %v672 = vunpack.c.l.b16 %v420
        %v673 = vunpack.c.h.b16 %v420
        %v674 = vunpack.c.l.b16 %v421
        %v675 = vunpack.c.h.b16 %v421
        %v676 = vunpack.c.l.b16 %v422
        %v677 = vunpack.c.h.b16 %v422
        %v678 = vunpack.c.l.b16 %v423
        %v679 = vunpack.c.h.b16 %v423
        %v680 = vunpack.c.l.b16 %v424
        %v681 = vunpack.c.h.b16 %v424
        %v682 = vunpack.c.l.b16 %v425
        %v683 = vunpack.c.h.b16 %v425
        %v684 = vunpack.c.l.b16 %v426
        %v685 = vunpack.c.h.b16 %v426
        %v686 = vunpack.c.l.b16 %v427
        %v687 = vunpack.c.h.b16 %v427
        %v688 = vunpack.c.l.b16 %v428
        %v689 = vunpack.c.h.b16 %v428
        %v690 = vunpack.c.l.b16 %v429
        %v691 = vunpack.c.h.b16 %v429
        %v692 = vunpack.c.l.b16 %v430
        %v693 = vunpack.c.h.b16 %v430
        %v694 = vunpack.c.l.b16 %v431
        %v695 = vunpack.c.h.b16 %v431
        %v696 = vunpack.c.l.b16 %v432
        %v697 = vunpack.c.h.b16 %v432
        %v698 = vunpack.c.l.b16 %v433
        %v699 = vunpack.c.h.b16 %v433
        %v700 = vunpack.c.l.b16 %v434
        %v701 = vunpack.c.h.b16 %v434
        %v702 = vunpack.c.l.b16 %v435
        %v703 = vunpack.c.h.b16 %v435
        %v704 = vunpack.c.l.b16 %v436
        %v705 = vunpack.c.h.b16 %v436
        %v706 = vunpack.c.l.b16 %v437
        %v707 = vunpack.c.h.b16 %v437
        %v708 = vunpack.c.l.b16 %v438
        %v709 = vunpack.c.h.b16 %v438
        %v710 = vpack.c.b16 %v550, %v546
        %v711 = vpack.c.b16 %v551, %v547
        %v712 = vpack.c.b16 %v552, %v548
        %v713 = vpack.c.b16 %v553, %v549
        %v714 = vpack.c.b16 %v558, %v554
        %v715 = vpack.c.b16 %v559, %v555
        %v716 = vpack.c.b16 %v560, %v556
        %v717 = vpack.c.b16 %v561, %v557
        %v718 = vpack.c.b16 %v566, %v562
        %v719 = vpack.c.b16 %v567, %v563
        %v720 = vpack.c.b16 %v568, %v564
        %v721 = vpack.c.b16 %v569, %v565
        %v722 = vpack.c.b16 %v574, %v570
        %v723 = vpack.c.b16 %v575, %v571
        %v724 = vpack.c.b16 %v576, %v572
        %v725 = vpack.c.b16 %v577, %v573
        %v726 = vpack.c.b16 %v582, %v578
        %v727 = vpack.c.b16 %v583, %v579
        %v728 = vpack.c.b16 %v584, %v580
        %v729 = vpack.c.b16 %v585, %v581
        %v730 = vpack.c.b16 %v590, %v586
        %v731 = vpack.c.b16 %v591, %v587
        %v732 = vpack.c.b16 %v592, %v588
        %v733 = vpack.c.b16 %v593, %v589
        %v734 = vpack.c.b16 %v598, %v594
        %v735 = vpack.c.b16 %v599, %v595
        %v736 = vpack.c.b16 %v600, %v596
        %v737 = vpack.c.b16 %v601, %v597
        %v738 = vpack.c.b16 %v606, %v602
        %v739 = vpack.c.b16 %v607, %v603
        %v740 = vpack.c.b16 %v608, %v604
        %v741 = vpack.c.b16 %v609, %v605
        %v742 = vpack.c.b16 %v614, %v610
        %v743 = vpack.c.b16 %v615, %v611
        %v744 = vpack.c.b16 %v616, %v612
        %v745 = vpack.c.b16 %v617, %v613
        %v746 = vpack.c.b16 %v622, %v618
        %v747 = vpack.c.b16 %v623, %v619
        %v748 = vpack.c.b16 %v624, %v620
        %v749 = vpack.c.b16 %v625, %v621
        %v750 = vpack.c.b16 %v630, %v626
        %v751 = vpack.c.b16 %v631, %v627
        %v752 = vpack.c.b16 %v632, %v628
        %v753 = vpack.c.b16 %v633, %v629
        %v754 = vpack.c.b16 %v638, %v634
        %v755 = vpack.c.b16 %v639, %v635
        %v756 = vpack.c.b16 %v640, %v636
        %v757 = vpack.c.b16 %v641, %v637
        %v758 = vpack.c.b16 %v646, %v642
        %v759 = vpack.c.b16 %v647, %v643
        %v760 = vpack.c.b16 %v648, %v644
        %v761 = vpack.c.b16 %v649, %v645
        %v762 = vpack.c.b16 %v654, %v650
        %v763 = vpack.c.b16 %v655, %v651
        %v764 = vpack.c.b16 %v656, %v652
        %v765 = vpack.c.b16 %v657, %v653
        %v766 = vpack.c.b16 %v662, %v658
        %v767 = vpack.c.b16 %v663, %v659
        %v768 = vpack.c.b16 %v664, %v660
        %v769 = vpack.c.b16 %v665, %v661
        %v770 = vpack.c.b16 %v670, %v666
        %v771 = vpack.c.b16 %v671, %v667
        %v772 = vpack.c.b16 %v672, %v668
        %v773 = vpack.c.b16 %v673, %v669
        %v774 = vpack.c.b16 %v678, %v674
        %v775 = vpack.c.b16 %v679, %v675
        %v776 = vpack.c.b16 %v680, %v676
        %v777 = vpack.c.b16 %v681, %v677
        %v778 = vpack.c.b16 %v686, %v682
        %v779 = vpack.c.b16 %v687, %v683
        %v780 = vpack.c.b16 %v688, %v684
        %v781 = vpack.c.b16 %v689, %v685
        %v782 = vpack.c.b16 %v694, %v690
        %v783 = vpack.c.b16 %v695, %v691
        %v784 = vpack.c.b16 %v696, %v692
        %v785 = vpack.c.b16 %v697, %v693
        %v786 = vpack.c.b16 %v702, %v698
        %v787 = vpack.c.b16 %v703, %v699
        %v788 = vpack.c.b16 %v704, %v700
        %v789 = vpack.c.b16 %v705, %v701
        %v790 = vpack.c.b16 %v706, %v706
        %v791 = vpack.c.b16 %v707, %v707
        %v792 = vpack.c.b16 %v708, %v708
        %v793 = vpack.c.b16 %v709, %v709
        %vm874 = vcmask 556032
        %v876 = vsel %vm874, %v460, 0
        %vm878 = vcmask 1041408
        %v880 = vsel %vm878, %v790, 0
        %v883 = vsel %vm878, %v791, 0
        %v886 = vsel %vm878, %v792, 0
        %v889 = vsel %vm878, %v793, 0
        %891 = vmatprep.subr.bf16.mxu0 %v711
        %892 = vmatpush1.bf16.msra.mxu0 %v710
        %893 = vmatprep.subr.bf16.mxu0 %v715
        %894 = vmatpush1.bf16.msra.mxu0 %v714
        %895 = vmatprep.subr.bf16.mxu0 %v719
        %896 = vmatpush1.bf16.msra.mxu0 %v718
        %897 = vmatprep.subr.bf16.mxu0 %v723
        %898 = vmatpush1.bf16.msra.mxu0 %v722
        %899 = vmatprep.subr.bf16.mxu0 %v727
        %900 = vmatpush1.bf16.msra.mxu0 %v726
        %901 = vmatprep.subr.bf16.mxu0 %v731
        %902 = vmatpush1.bf16.msra.mxu0 %v730
        %903 = vmatprep.subr.bf16.mxu0 %v735
        %904 = vmatpush1.bf16.msra.mxu0 %v734
        %905 = vmatprep.subr.bf16.mxu0 %v739
        %906 = vmatpush1.bf16.msra.mxu0 %v738
        %907 = vmatprep.subr.bf16.mxu0 %v743
        %908 = vmatpush1.bf16.msra.mxu0 %v742
        %909 = vmatprep.subr.bf16.mxu0 %v747
        %910 = vmatpush1.bf16.msra.mxu0 %v746
        %911 = vmatprep.subr.bf16.mxu0 %v751
        %912 = vmatpush1.bf16.msra.mxu0 %v750
        %913 = vmatprep.subr.bf16.mxu0 %v755
        %914 = vmatpush1.bf16.msra.mxu0 %v754
        %915 = vmatprep.subr.bf16.mxu0 %v759
        %916 = vmatpush1.bf16.msra.mxu0 %v758
        %917 = vmatprep.subr.bf16.mxu0 %v763
        %918 = vmatpush1.bf16.msra.mxu0 %v762
        %919 = vmatprep.subr.bf16.mxu0 %v767
        %920 = vmatpush1.bf16.msra.mxu0 %v766
        %921 = vmatprep.subr.bf16.mxu0 %v771
        %922 = vmatpush1.bf16.msra.mxu0 %v770
        %923 = vmatprep.mubr.bf16.mxu0 %v461
        %924 = vmatmul.mubr.bf16.gmra.mrb[0].mxu0 %v453
        %v925 = vpop.f32.mrb[0].mxu0
        %v926 = vadd.f32 %v443, %v925
        %v927 = vpop.f32.mrb[0].mxu0
        %v928 = vadd.f32 %v443, %v927
        %v929 = vpop.f32.mrb[0].mxu0
        %v930 = vpop.f32.mrb[0].mxu0
        %931 = vdwg.mxu0
        %932 = vmatprep.subr.bf16.mxu0 %v775
        %933 = vmatpush1.bf16.msra.mxu0 %v774
        %934 = vmatprep.subr.bf16.mxu0 %v779
        %935 = vmatpush1.bf16.msra.mxu0 %v778
        %936 = vmatprep.subr.bf16.mxu0 %v783
        %937 = vmatpush1.bf16.msra.mxu0 %v782
        %938 = vmatprep.subr.bf16.mxu0 %v787
        %939 = vmatpush1.bf16.msra.mxu0 %v786
        %940 = vmatprep.subr.bf16.mxu0 %v883
        %941 = vmatpush1.bf16.msra.mxu0 %v880
        %942 = vmatprep.subr.bf16.mxu0 0
        %943 = vmatpush1.bf16.msra.mxu0 0
        %944 = vmatprep.subr.bf16.mxu0 0
        %945 = vmatpush1.bf16.msra.mxu0 0
        %946 = vmatprep.subr.bf16.mxu0 0
        %947 = vmatpush1.bf16.msra.mxu0 0
        %948 = vmatprep.subr.bf16.mxu0 0
        %949 = vmatpush1.bf16.msra.mxu0 0
        %950 = vmatprep.subr.bf16.mxu0 0
        %951 = vmatpush1.bf16.msra.mxu0 0
        %952 = vmatprep.subr.bf16.mxu0 0
        %953 = vmatpush1.bf16.msra.mxu0 0
        %954 = vmatprep.subr.bf16.mxu0 0
        %955 = vmatpush1.bf16.msra.mxu0 0
        %956 = vmatprep.subr.bf16.mxu0 0
        %957 = vmatpush1.bf16.msra.mxu0 0
        %958 = vmatprep.subr.bf16.mxu0 0
        %959 = vmatpush1.bf16.msra.mxu0 0
        %960 = vmatprep.subr.bf16.mxu0 0
        %961 = vmatpush1.bf16.msra.mxu0 0
        %962 = vmatprep.subr.bf16.mxu0 0
        %963 = vmatpush1.bf16.msra.mxu0 0
        %964 = vmatprep.mubr.bf16.mxu0 0
        %965 = vmatmul.mubr.bf16.gmra.mrb[0].mxu0 %v876
        %v966 = vpop.f32.mrb[0].mxu0
        %v967 = vadd.f32 %v926, %v966
        %v968 = vpop.f32.mrb[0].mxu0
        %v969 = vadd.f32 %v928, %v968
        %v970 = vpop.f32.mrb[0].mxu0
        %v971 = vpop.f32.mrb[0].mxu0
        %972 = vdwg.mxu0
        %973 = vmatprep.subr.bf16.mxu0 %v713
        %974 = vmatpush1.bf16.msra.mxu0 %v712
        %975 = vmatprep.subr.bf16.mxu0 %v717
        %976 = vmatpush1.bf16.msra.mxu0 %v716
        %977 = vmatprep.subr.bf16.mxu0 %v721
        %978 = vmatpush1.bf16.msra.mxu0 %v720
        %979 = vmatprep.subr.bf16.mxu0 %v725
        %980 = vmatpush1.bf16.msra.mxu0 %v724
        %981 = vmatprep.subr.bf16.mxu0 %v729
        %982 = vmatpush1.bf16.msra.mxu0 %v728
        %983 = vmatprep.subr.bf16.mxu0 %v733
        %984 = vmatpush1.bf16.msra.mxu0 %v732
        %985 = vmatprep.subr.bf16.mxu0 %v737
        %986 = vmatpush1.bf16.msra.mxu0 %v736
        %987 = vmatprep.subr.bf16.mxu0 %v741
        %988 = vmatpush1.bf16.msra.mxu0 %v740
        %989 = vmatprep.subr.bf16.mxu0 %v745
        %990 = vmatpush1.bf16.msra.mxu0 %v744
        %991 = vmatprep.subr.bf16.mxu0 %v749
        %992 = vmatpush1.bf16.msra.mxu0 %v748
        %993 = vmatprep.subr.bf16.mxu0 %v753
        %994 = vmatpush1.bf16.msra.mxu0 %v752
        %995 = vmatprep.subr.bf16.mxu0 %v757
        %996 = vmatpush1.bf16.msra.mxu0 %v756
        %997 = vmatprep.subr.bf16.mxu0 %v761
        %998 = vmatpush1.bf16.msra.mxu0 %v760
        %999 = vmatprep.subr.bf16.mxu0 %v765
        %1000 = vmatpush1.bf16.msra.mxu0 %v764
        %1001 = vmatprep.subr.bf16.mxu0 %v769
        %1002 = vmatpush1.bf16.msra.mxu0 %v768
        %1003 = vmatprep.subr.bf16.mxu0 %v773
        %1004 = vmatpush1.bf16.msra.mxu0 %v772
        %1005 = vmatprep.mubr.bf16.mxu0 %v461
        %1006 = vmatmul.mubr.bf16.gmra.mrb[0].mxu0 %v453
        %v1007 = vpop.f32.mrb[0].mxu0
        %v1008 = vadd.f32 %v443, %v1007
        %v1009 = vpop.f32.mrb[0].mxu0
        %v1010 = vadd.f32 %v443, %v1009
        %v1011 = vpop.f32.mrb[0].mxu0
        %v1012 = vpop.f32.mrb[0].mxu0
        %1013 = vdwg.mxu0
        %1014 = vmatprep.subr.bf16.mxu0 %v777
        %1015 = vmatpush1.bf16.msra.mxu0 %v776
        %1016 = vmatprep.subr.bf16.mxu0 %v781
        %1017 = vmatpush1.bf16.msra.mxu0 %v780
        %1018 = vmatprep.subr.bf16.mxu0 %v785
        %1019 = vmatpush1.bf16.msra.mxu0 %v784
        %1020 = vmatprep.subr.bf16.mxu0 %v789
        %1021 = vmatpush1.bf16.msra.mxu0 %v788
        %1022 = vmatprep.subr.bf16.mxu0 %v889
        %1023 = vmatpush1.bf16.msra.mxu0 %v886
        %1024 = vmatprep.subr.bf16.mxu0 0
        %1025 = vmatpush1.bf16.msra.mxu0 0
        %1026 = vmatprep.subr.bf16.mxu0 0
        %1027 = vmatpush1.bf16.msra.mxu0 0
        %1028 = vmatprep.subr.bf16.mxu0 0
        %1029 = vmatpush1.bf16.msra.mxu0 0
        %1030 = vmatprep.subr.bf16.mxu0 0
        %1031 = vmatpush1.bf16.msra.mxu0 0
        %1032 = vmatprep.subr.bf16.mxu0 0
        %1033 = vmatpush1.bf16.msra.mxu0 0
        %1034 = vmatprep.subr.bf16.mxu0 0
        %1035 = vmatpush1.bf16.msra.mxu0 0
        %1036 = vmatprep.subr.bf16.mxu0 0
        %1037 = vmatpush1.bf16.msra.mxu0 0
        %1038 = vmatprep.subr.bf16.mxu0 0
        %1039 = vmatpush1.bf16.msra.mxu0 0
        %1040 = vmatprep.subr.bf16.mxu0 0
        %1041 = vmatpush1.bf16.msra.mxu0 0
        %1042 = vmatprep.subr.bf16.mxu0 0
        %1043 = vmatpush1.bf16.msra.mxu0 0
        %1044 = vmatprep.subr.bf16.mxu0 0
        %1045 = vmatpush1.bf16.msra.mxu0 0
        %1046 = vmatprep.mubr.bf16.mxu0 0
        %1047 = vmatmul.mubr.bf16.gmra.mrb[0].mxu0 %v876
        %v1048 = vpop.f32.mrb[0].mxu0
        %v1049 = vadd.f32 %v1008, %v1048
        %v1050 = vpop.f32.mrb[0].mxu0
        %v1051 = vadd.f32 %v1010, %v1050
        %v1052 = vpop.f32.mrb[0].mxu0
        %v1053 = vpop.f32.mrb[0].mxu0
        %1054 = vdwg.mxu0
        %v1059 = vcombine.low %v967, %v969
        %v1060 = vcombine.low %v1049, %v1051
        %1063 = vst [vmem:[%s353] sm:$0x77] %v1059
        %1064 = vst [vmem:[%s353 + $0x8] sm:$0x77] %v1060
        %s1065 = smul.u32 4, %s14
        %p1066 = scmp.lt.s32.totalorder %s1065, 127
        %s1067 = scalar_select %p1066, %s1065, 127
        %s1068 = smul.addr %s1067, 4
        %s1069 = scalar_lea.vmem %s3, %s1068
        // Predicated region
        $region56: #{generator_forward.33} parent=50 // pred_check
          %p1070 = pneg %p100
        $region57: #{generator_forward.33} parent=50 // pred_check_branch
          %1072 = sbr.rel (%p1070) target = $region59
        $region58: #{generator_forward.33} parent=50 // pred_region
          %s1073 = smul.u32 4, %s14
        $region59: #{generator_forward.33} parent=50 // pred_fallthru
          _
      $region51: #{generator_forward.33} parent=5 // pred_fallthru
        _
      %p1074 = scmp.le.s32.totalorder 2, %s9
      // Predicated region
      $region60: #{generator_forward.33} parent=5 // pred_check
        %p1075 = pneg %p1074
      $region61: #{generator_forward.33} parent=5 // pred_check_branch
        %1077 = sbr.rel (%p1075) target = $region63
      $region62: #{generator_forward.33} parent=5 // pred_region
        %s1078 = ssub.s32 %s9, 2
        // Predicated region
        $region64: #{generator_forward.33} parent=62 // pred_check
          %p1079 = pneg %p106
        $region65: #{generator_forward.33} parent=62 // pred_check_branch
          %1081 = sbr.rel (%p1079) target = $region67
        $region66: #{generator_forward.33} parent=62 // pred_region
          %s1082 = smul.u32 4, %s15
          %p1083 = scmp.lt.s32.totalorder %s1082, 127
          %s1084 = scalar_select %p1083, %s1082, 127
          %s1085 = smul.addr %s1084, 4
          %s1086 = scalar_lea.vmem %s3, %s1085
        $region67: #{generator_forward.33} parent=62 // pred_fallthru
          _
      $region63: #{generator_forward.33} parent=5 // pred_fallthru
        _
    $region6: #{generator_forward.33} parent=1 // loop_footer
      %s13 = sadd.s32 1, %s9
    $region7: #{generator_forward.33} parent=1 // loop_footer_branch
      %8 = sbr.rel target = $region3
    $region8: #{generator_forward.33} parent=1 // loop_exit
      _

</llo_original>
